<compile_context>
chip_gen: v7x
topology: tpu7x:2x2x1
jax: 0.10.0
libtpu: 0.0.40
codegen_flags: <defaults>
</compile_context>

<pallas_src>
import numpy as np
import jax
import jax.numpy as jnp
from jax.experimental import pallas as pl
from jax.experimental.pallas import tpu as pltpu


# ------------------------------ kernel factories -----------------------------------

def _make_deconv_kernel(H, W, Cin, Cout, apply_prelu):
    """[prev-block BN2 affine + ReLU] -> ConvTranspose2d(3x3, stride (1,2)) as ONE
    width-folded block-Toeplitz matmul -> BN1 row-stats on the UNcropped output ->
    crop [1:-1, :-1] -> lane-dense (H, 2W*Cout) store."""
    OH = H + 2
    WC = W * Cin

    def body(x2, w_ref, y_ref, st_ref):
        xb = x2.astype(jnp.bfloat16)                              # (H, W*Cin)
        zrow = jnp.zeros((2, WC), jnp.bfloat16)
        xp = jnp.concatenate([zrow, xb, zrow], axis=0)            # (H+4, W*Cin)
        # patch row oh = [xp[oh] | xp[oh+1] | xp[oh+2]] : whole-128-lane chunks only
        P = jnp.concatenate([xp[0:OH], xp[1:1 + OH], xp[2:2 + OH]], axis=1)
        out = jnp.dot(P, w_ref[...], preferred_element_type=jnp.float32)  # (OH, (2W+1)*Cout)
        # BN1 batch-stats over the UNcropped output (per-channel reduce done outside)
        st_ref[0] = jnp.concatenate(
            [jnp.sum(out, axis=0, keepdims=True),
             jnp.sum(out * out, axis=0, keepdims=True)], axis=0)  # (2, (2W+1)*Cout)
        # crop rows 1..H and drop the last output column -> already lane-dense
        y_ref[0] = out[1:H + 1, 0:2 * W * Cout]                   # (H, 2W*Cout)

    if apply_prelu:
        def kernel(x_ref, aff_ref, w_ref, y_ref, st_ref):
            aff = aff_ref[...]                                    # (2, W*Cin), lane-tiled
            x2 = jnp.maximum(x_ref[0].astype(jnp.float32) * aff[0:1, :] + aff[1:2, :], 0.0)
            body(x2, w_ref, y_ref, st_ref)
    else:
        def kernel(x_ref, w_ref, y_ref, st_ref):
            body(x_ref[0].astype(jnp.float32), w_ref, y_ref, st_ref)

    return kernel


def _make_convblock_kernel(H, Wy, C):
    """BN1 affine + ReLU -> Conv2d(3x3, pad 1) over [deconv ; skip] as ONE merged
    width-folded matmul (K = 6*Wy*C) -> BN2 row-stats -> lane-dense store."""
    WC = Wy * C

    def kernel(y_ref, s_ref, aff_ref, w_ref, z_ref, st_ref):
        aff = aff_ref[...]                                        # (2, Wy*C), lane-tiled
        a = jnp.maximum(y_ref[0].astype(jnp.float32) * aff[0:1, :] + aff[1:2, :], 0.0)
        ab = a.astype(jnp.bfloat16)
        sb = s_ref[0].astype(jnp.bfloat16)
        zrow = jnp.zeros((1, WC), jnp.bfloat16)
        ap = jnp.concatenate([zrow, ab, zrow], axis=0)            # (H+2, Wy*C)
        sp = jnp.concatenate([zrow, sb, zrow], axis=0)
        # patch row oh = [a[oh-1]|s[oh-1]|a[oh]|s[oh]|a[oh+1]|s[oh+1]]
        P = jnp.concatenate([t[kh:kh + H] for kh in range(3) for t in (ap, sp)],
                            axis=1)                               # (H, 6*Wy*C)
        z = jnp.dot(P, w_ref[...], preferred_element_type=jnp.float32)   # (H, Wy*C)
        st_ref[0] = jnp.concatenate(
            [jnp.sum(z, axis=0, keepdims=True),
             jnp.sum(z * z, axis=0, keepdims=True)], axis=0)      # (2, Wy*C)
        z_ref[0] = z

    return kernel


def _make_bottom_kernel(H, Wy, Cin, Cout):
    """Final BN2 affine + ReLU + 1x1 conv (block-diagonal matmul) + bias."""
    def kernel(x_ref, aff_ref, w_ref, b_ref, o_ref):
        aff = aff_ref[...]
        a = jnp.maximum(x_ref[0].astype(jnp.float32) * aff[0:1, :] + aff[1:2, :], 0.0)
        y = jnp.dot(a.astype(jnp.bfloat16), w_ref[...],
                    preferred_element_type=jnp.float32) + b_ref[...]
        o_ref[0] = y                                              # (H, Wy*Cout)
    return kernel


# ------------------------------ pallas_call wrappers --------------------------------

def deconv_block_pallas(x, w_pack, aff_tiled, H, W, Cin, Cout):
    N = x.shape[0]
    OW = 2 * W + 1
    apply_prelu = aff_tiled is not None
    kern = _make_deconv_kernel(H, W, Cin, Cout, apply_prelu)

    in_specs = [pl.BlockSpec((1, H, W * Cin), lambda n: (n, 0, 0))]
    args = [x]
    if apply_prelu:
        in_specs.append(pl.BlockSpec((2, W * Cin), lambda n: (0, 0)))
        args.append(aff_tiled)
    in_specs.append(pl.BlockSpec((3 * W * Cin, OW * Cout), lambda n: (0, 0)))
    args.append(w_pack)

    return pl.pallas_call(
        kern,
        out_shape=(jax.ShapeDtypeStruct((N, H, 2 * W * Cout), jnp.float32),
                   jax.ShapeDtypeStruct((N, 2, OW * Cout), jnp.float32)),
        grid=(N,),
        in_specs=in_specs,
        out_specs=(pl.BlockSpec((1, H, 2 * W * Cout), lambda n: (n, 0, 0)),
                   pl.BlockSpec((1, 2, OW * Cout), lambda n: (n, 0, 0))),
        compiler_params=pltpu.CompilerParams(dimension_semantics=("parallel",)),
    )(*args)


def conv_block_pallas(y, skip, aff_tiled, w_pack, H, Wy, C):
    N = y.shape[0]
    WC = Wy * C
    kern = _make_convblock_kernel(H, Wy, C)
    return pl.pallas_call(
        kern,
        out_shape=(jax.ShapeDtypeStruct((N, H, WC), jnp.float32),
                   jax.ShapeDtypeStruct((N, 2, WC), jnp.float32)),
        grid=(N,),
        in_specs=[pl.BlockSpec((1, H, WC), lambda n: (n, 0, 0)),
                  pl.BlockSpec((1, H, WC), lambda n: (n, 0, 0)),
                  pl.BlockSpec((2, WC), lambda n: (0, 0)),
                  pl.BlockSpec((6 * WC, WC), lambda n: (0, 0))],
        out_specs=(pl.BlockSpec((1, H, WC), lambda n: (n, 0, 0)),
                   pl.BlockSpec((1, 2, WC), lambda n: (n, 0, 0))),
        compiler_params=pltpu.CompilerParams(dimension_semantics=("parallel",)),
    )(y, skip, aff_tiled, w_pack)


def bottom_pallas(x, aff_tiled, w_pack, b_tiled, H, Wy, Cin, Cout):
    N = x.shape[0]
    kern = _make_bottom_kernel(H, Wy, Cin, Cout)
    return pl.pallas_call(
        kern,
        out_shape=jax.ShapeDtypeStruct((N, H, Wy * Cout), jnp.float32),
        grid=(N,),
        in_specs=[pl.BlockSpec((1, H, Wy * Cin), lambda n: (n, 0, 0)),
                  pl.BlockSpec((2, Wy * Cin), lambda n: (0, 0)),
                  pl.BlockSpec((Wy * Cin, Wy * Cout), lambda n: (0, 0)),
                  pl.BlockSpec((1, Wy * Cout), lambda n: (0, 0))],
        out_specs=pl.BlockSpec((1, H, Wy * Cout), lambda n: (n, 0, 0)),
        compiler_params=pltpu.CompilerParams(dimension_semantics=("parallel",)),
    )(x, aff_tiled, w_pack, b_tiled)


# ------------------------------ host-side weight packing (one-time) -----------------

def _deconv_width_toeplitz(w_tr, W):
    """ConvTranspose2d weight (Cin, Cout, 3, 3) -> (3*W*Cin, (2W+1)*Cout) matrix so
    that  out_row[oh] = [xp[oh] | xp[oh+1] | xp[oh+2]] @ M  (xp = 2-row zero-padded)."""
    Cin, Cout = w_tr.shape[0], w_tr.shape[1]
    OW = 2 * W + 1
    M = np.zeros((3, W * Cin, OW * Cout), np.float32)
    for kh in range(3):
        for iw in range(W):
            for kw in range(3):
                ow = 2 * iw + kw
                M[kh, iw * Cin:(iw + 1) * Cin, ow * Cout:(ow + 1) * Cout] = w_tr[:, :, kh, kw]
    # patch chunk j uses vertical tap kh = 2 - j
    return np.concatenate([M[2], M[1], M[0]], axis=0)


def _conv_width_toeplitz(w_cv, Wy):
    """Conv2d weight (Cout, 2*Cout, 3, 3) -> (6*Wy*C, Wy*Cout) matrix for the merged
    [deconv ; skip] contraction, patch order (kh=0:a,s, kh=1:a,s, kh=2:a,s)."""
    Cout = w_cv.shape[0]
    C = Cout                                  # per-branch input channels
    M = np.zeros((3, 2, Wy * C, Wy * Cout), np.float32)
    for kh in range(3):
        for br in range(2):
            wk = w_cv[:, br * C:(br + 1) * C, kh, :]      # (Cout, C, 3)
            for ow in range(Wy):
                for kw in range(3):
                    iw = ow + kw - 1
                    if 0 <= iw < Wy:
                        M[kh, br, iw * C:(iw + 1) * C,
                          ow * Cout:(ow + 1) * Cout] = wk[:, :, kw].T
    return np.concatenate([M[kh, br] for kh in range(3) for br in range(2)], axis=0)


def _bottom_block_diag(w_bottom, Wy):
    """1x1 conv weight (Cout, Cin, 1, 1) -> block-diagonal (Wy*Cin, Wy*Cout)."""
    Cout, Cin = w_bottom.shape[0], w_bottom.shape[1]
    w1 = w_bottom[:, :, 0, 0].T               # (Cin, Cout)
    M = np.zeros((Wy * Cin, Wy * Cout), np.float32)
    for w in range(Wy):
        M[w * Cin:(w + 1) * Cin, w * Cout:(w + 1) * Cout] = w1
    return M


def pack_decoder_params(params, in_channels, num_blocks, W):
    """One-time (host) repacking of all weights into the kernels' matmul layouts."""
    blocks = []
    cin, cout, w_in = in_channels, in_channels // 2, W
    for i in range(num_blocks):
        blk = params['blocks'][i]
        w_tr = np.asarray(blk['w_tr'], np.float32)          # (cin, cout, 3, 3)
        w_cv = np.asarray(blk['w_conv'], np.float32)         # (cout, 2*cout, 3, 3)
        blocks.append(dict(
            w_deconv=jnp.asarray(_deconv_width_toeplitz(w_tr, w_in), jnp.bfloat16),
            w_conv=jnp.asarray(_conv_width_toeplitz(w_cv, 2 * w_in), jnp.bfloat16),
            gamma1=blk['gamma1'], beta1=blk['beta1'],
            gamma2=blk['gamma2'], beta2=blk['beta2'],
        ))
        w_in, cin, cout = 2 * w_in, cout, cout // 2
    wb = np.asarray(params['w_bottom'], np.float32)
    bb = np.asarray(params['b_bottom'], np.float32)
    bottom = dict(
        w=jnp.asarray(_bottom_block_diag(wb, w_in), jnp.bfloat16),
        b=jnp.asarray(np.tile(bb, w_in)[None, :], np.float32),
    )
    return dict(blocks=blocks, bottom=bottom)


# ------------------------------ Decoder forward (Pallas) ----------------------------

def _affine_from_stats(stats_per_batch, count, gamma, beta, C, eps=1e-5):
    # stats_per_batch: (N, 2, G*C) lane-dense [row-sum ; row-sumsq] per batch element
    s = jnp.sum(stats_per_batch, axis=0)                  # (2, G*C)
    s = jnp.sum(s.reshape(2, -1, C), axis=1)              # (2, C)
    mean = s[0] / count
    var = jnp.maximum(s[1] / count - mean * mean, 0.0)    # biased var, as in torch BN fwd
    scale = gamma * jax.lax.rsqrt(var + eps)
    shift = beta - mean * scale
    return jnp.stack([scale, shift], axis=0)              # (2, C)


def decoder_forward_pallas(x_nchw, concat_tensors_nchw, packed):
    N, Cin0, H, W0 = x_nchw.shape
    # lane-dense (N, H, W*C) slab layout for everything between kernels
    x = jnp.transpose(x_nchw, (0, 2, 3, 1)).reshape(N, H, W0 * Cin0)
    aff = None                                            # pending BN2 affine of prev block

    for i, blk in enumerate(packed['blocks']):
        Cout = blk['gamma1'].shape[0]
        OW = blk['w_deconv'].shape[1] // Cout             # 2*W_in + 1
        W_in = (OW - 1) // 2
        Cin = blk['w_deconv'].shape[0] // (3 * W_in)
        Wy = 2 * W_in

        aff_tiled = None if aff is None else jnp.tile(aff, (1, W_in))
        y, st1 = deconv_block_pallas(x, blk['w_deconv'], aff_tiled, H, W_in, Cin, Cout)
        aff1 = _affine_from_stats(st1, N * (H + 2) * OW, blk['gamma1'], blk['beta1'], Cout)

        # skip is a runtime input at the NCHW module boundary -> one fused XLA transpose
        skip = jnp.transpose(concat_tensors_nchw[-i - 1], (0, 2, 3, 1)).reshape(N, H, Wy * Cout)
        z, st2 = conv_block_pallas(y, skip, jnp.tile(aff1, (1, Wy)), blk['w_conv'],
                                   H, Wy, Cout)
        aff = _affine_from_stats(st2, N * H * Wy, blk['gamma2'], blk['beta2'], Cout)
        x = z                                             # pre-BN2; affine fused downstream

    CinB = aff.shape[1]
    WyB = x.shape[2] // CinB
    CoutB = packed['bottom']['w'].shape[1] // WyB
    out = bottom_pallas(x, jnp.tile(aff, (1, WyB)), packed['bottom']['w'],
                        packed['bottom']['b'], H, WyB, CinB, CoutB)
    return jnp.transpose(out.reshape(N, H, WyB, CoutB), (0, 3, 1, 2))   # -> NCHW


# ------------------------------ pure-JAX reference (NCHW) ---------------------------

def _bn_relu_ref(x, gamma, beta, eps=1e-5):
    mean = jnp.mean(x, axis=(0, 2, 3), keepdims=True)
    var = jnp.var(x, axis=(0, 2, 3), keepdims=True)
    y = (x - mean) / jnp.sqrt(var + eps)
    y = y * gamma.reshape(1, -1, 1, 1) + beta.reshape(1, -1, 1, 1)
    return jnp.maximum(y, 0.0)


def decoder_forward_ref(x, concat_tensors, params):
    dn = ('NCHW', 'OIHW', 'NCHW')
    for i, blk in enumerate(params['blocks']):
        w = blk['w_tr']
        w_t = jnp.transpose(w[:, :, ::-1, ::-1], (1, 0, 2, 3))
        x = jax.lax.conv_general_dilated(x, w_t, window_strides=(1, 1),
                                         padding=((2, 2), (2, 2)),
                                         lhs_dilation=(1, 2),
                                         dimension_numbers=dn)
        x = _bn_relu_ref(x, blk['gamma1'], blk['beta1'])
        x = x[:, :, 1:-1, :-1]
        x = jnp.concatenate([x, concat_tensors[-i - 1]], axis=1)
        x = jax.lax.conv_general_dilated(x, blk['w_conv'], (1, 1),
                                         ((1, 1), (1, 1)), dimension_numbers=dn)
        x = _bn_relu_ref(x, blk['gamma2'], blk['beta2'])
    x = jax.lax.conv_general_dilated(x, params['w_bottom'], (1, 1),
                                     ((0, 0), (0, 0)), dimension_numbers=dn)
    return x + params['b_bottom'].reshape(1, -1, 1, 1)


# ------------------------------ deterministic params --------------------------------

def init_params(key, in_channels, num_blocks):
    blocks = []
    cin, cout = in_channels, in_channels // 2
    for _ in range(num_blocks):
        key, k1, k2, k3, k4, k5, k6 = jax.random.split(key, 7)
        blocks.append(dict(
            w_tr=jax.random.normal(k1, (cin, cout, 3, 3), jnp.float32) / np.sqrt(9 * cin),
            gamma1=1.0 + 0.1 * jax.random.normal(k2, (cout,), jnp.float32),
            beta1=0.1 * jax.random.normal(k3, (cout,), jnp.float32),
            w_conv=jax.random.normal(k4, (cout, 2 * cout, 3, 3), jnp.float32) / np.sqrt(18 * cout),
            gamma2=1.0 + 0.1 * jax.random.normal(k5, (cout,), jnp.float32),
            beta2=0.1 * jax.random.normal(k6, (cout,), jnp.float32),
        ))
        cin, cout = cout, cout // 2
    key, kb, kbb = jax.random.split(key, 3)
    return dict(
        blocks=blocks,
        w_bottom=jax.random.normal(kb, (cout, cin, 1, 1), jnp.float32) / np.sqrt(cin),
        b_bottom=0.1 * jax.random.normal(kbb, (cout,), jnp.float32),
    )


# ------------------------------ main -------------------------------------------------

if __name__ == "__main__":
    config = dict(in_channels=16, momentum=0.1, num_blocks=2)
    N, H, W = 2, 6, 8

    key = jax.random.PRNGKey(0)
    key, kx, kc1, kc2, kp = jax.random.split(key, 5)
    x = jax.random.normal(kx, (N, config['in_channels'], H, W), jnp.float32)
    # skip connections, ordered large-spatial -> small-spatial (forward uses [-i-1])
    concat_tensors = [
        jax.random.normal(kc1, (N, 4, H, 4 * W), jnp.float32),   # used by block 1
        jax.random.normal(kc2, (N, 8, H, 2 * W), jnp.float32),   # used by block 0
    ]
    params = init_params(kp, config['in_channels'], config['num_blocks'])
    # one-time host-side weight packing (hoisted out of the per-forward hot path)
    packed = pack_decoder_params(params, config['in_channels'], config['num_blocks'], W)

    fwd = jax.jit(decoder_forward_pallas)
    out = jax.block_until_ready(fwd(x, concat_tensors, packed))

    ref = decoder_forward_ref(x, concat_tensors, params)
    np.testing.assert_allclose(np.asarray(out), np.asarray(ref), rtol=5e-2, atol=5e-2)

    print("KERNEL_OK")
</pallas_src>

<mosaic_0001>
module attributes {stable_mosaic.version = 11 : i64} {
  func.func @kernel(%arg0: i32, %arg1: memref<1x6x128xf32, #tpu.memory_space<vmem>>, %arg2: memref<384x136xbf16, #tpu.memory_space<vmem>>, %arg3: memref<1x6x128xf32, #tpu.memory_space<vmem>>, %arg4: memref<1x2x136xf32, #tpu.memory_space<vmem>>) attributes {dimension_semantics = [#tpu.dimension_semantics<parallel>], iteration_bounds = array<i64: 2>, scalar_prefetch = 0 : i64, scratch_operands = 0 : i64, tpu.core_type = #tpu.core_type<tc>, window_params = [{transform_indices = @transform_0, window_bounds = array<i64: 1, 6, 128>}, {pipeline_mode = #tpu.pipeline_mode<synchronous>, transform_indices = @transform_1, window_bounds = array<i64: 384, 136>}, {transform_indices = @transform_2, window_bounds = array<i64: 1, 6, 128>}, {transform_indices = @transform_3, window_bounds = array<i64: 1, 2, 136>}]} {
    %c0 = arith.constant 0 : index
    %c0_0 = arith.constant 0 : index
    %c0_1 = arith.constant 0 : index
    %0 = vector.load %arg1[%c0, %c0_0, %c0_1] : memref<1x6x128xf32, #tpu.memory_space<vmem>>, vector<1x6x128xf32>
    %1 = vector.shape_cast %0 : vector<1x6x128xf32> to vector<6x128xf32>
    %2 = arith.truncf %1 : vector<6x128xf32> to vector<6x128xbf16>
    %cst = arith.constant 0.000000e+00 : bf16
    %3 = vector.broadcast %cst : bf16 to vector<2x128xbf16>
    %4 = tpu.concatenate %3, %2, %3 in 0 : vector<2x128xbf16>, vector<6x128xbf16>, vector<2x128xbf16> -> vector<10x128xbf16>
    %5 = vector.extract_strided_slice %4 {offsets = [0, 0], sizes = [8, 128], strides = [1, 1]} : vector<10x128xbf16> to vector<8x128xbf16>
    %6 = vector.extract_strided_slice %4 {offsets = [1, 0], sizes = [8, 128], strides = [1, 1]} : vector<10x128xbf16> to vector<8x128xbf16>
    %7 = vector.extract_strided_slice %4 {offsets = [2, 0], sizes = [8, 128], strides = [1, 1]} : vector<10x128xbf16> to vector<8x128xbf16>
    %8 = tpu.concatenate %5, %6, %7 in 1 : vector<8x128xbf16>, vector<8x128xbf16>, vector<8x128xbf16> -> vector<8x384xbf16>
    %c0_2 = arith.constant 0 : index
    %c0_3 = arith.constant 0 : index
    %9 = vector.load %arg2[%c0_2, %c0_3] : memref<384x136xbf16, #tpu.memory_space<vmem>>, vector<384x136xbf16>
    %cst_4 = arith.constant dense<0.000000e+00> : vector<8x136xf32>
    %10 = tpu.matmul %8, %9, %cst_4 {dimension_numbers = #tpu.dot_dimension_numbers<[1], [0], [0], [1], [0, 0, 1, 1], [], []>} : vector<8x384xbf16>, vector<384x136xbf16>, vector<8x136xf32> -> vector<8x136xf32>
    %cst_5 = arith.constant dense<0.000000e+00> : vector<136xf32>
    %11 = vector.multi_reduction <add>, %10, %cst_5 [0] : vector<8x136xf32> to vector<136xf32>
    %12 = vector.shape_cast %11 : vector<136xf32> to vector<1x136xf32>
    %13 = arith.mulf %10, %10 : vector<8x136xf32>
    %cst_6 = arith.constant dense<0.000000e+00> : vector<136xf32>
    %14 = vector.multi_reduction <add>, %13, %cst_6 [0] : vector<8x136xf32> to vector<136xf32>
    %15 = vector.shape_cast %14 : vector<136xf32> to vector<1x136xf32>
    %16 = tpu.concatenate %12, %15 in 0 : vector<1x136xf32>, vector<1x136xf32> -> vector<2x136xf32>
    %c0_7 = arith.constant 0 : index
    %c0_8 = arith.constant 0 : index
    %c0_9 = arith.constant 0 : index
    %17 = vector.load %arg4[%c0_7, %c0_8, %c0_9] : memref<1x2x136xf32, #tpu.memory_space<vmem>>, vector<1x2x136xf32>
    %18 = vector.shape_cast %17 : vector<1x2x136xf32> to vector<2x136xf32>
    %19 = vector.shape_cast %16 : vector<2x136xf32> to vector<1x2x136xf32>
    tpu.vector_store %arg4[%c0_7, %c0_8, %c0_9], %19 {strides = array<i32>} : memref<1x2x136xf32, #tpu.memory_space<vmem>>, vector<1x2x136xf32>,
    %20 = vector.extract_strided_slice %10 {offsets = [1, 0], sizes = [6, 128], strides = [1, 1]} : vector<8x136xf32> to vector<6x128xf32>
    %c0_10 = arith.constant 0 : index
    %c0_11 = arith.constant 0 : index
    %c0_12 = arith.constant 0 : index
    %21 = vector.load %arg3[%c0_10, %c0_11, %c0_12] : memref<1x6x128xf32, #tpu.memory_space<vmem>>, vector<1x6x128xf32>
    %22 = vector.shape_cast %21 : vector<1x6x128xf32> to vector<6x128xf32>
    %23 = vector.shape_cast %20 : vector<6x128xf32> to vector<1x6x128xf32>
    tpu.vector_store %arg3[%c0_10, %c0_11, %c0_12], %23 {strides = array<i32>} : memref<1x6x128xf32, #tpu.memory_space<vmem>>, vector<1x6x128xf32>,
    return
  }
  func.func @transform_0(%arg0: i32) -> (i32, i32, i32) {
    %c0_i32 = arith.constant 0 : i32
    %c0_i32_0 = arith.constant 0 : i32
    %c0_i32_1 = arith.constant 0 : i32
    return %arg0, %c0_i32, %c0_i32_0 : i32, i32, i32
  }
  func.func @transform_1(%arg0: i32) -> (i32, i32) {
    %c0_i32 = arith.constant 0 : i32
    %c0_i32_0 = arith.constant 0 : i32
    %c0_i32_1 = arith.constant 0 : i32
    return %c0_i32, %c0_i32_0 : i32, i32
  }
  func.func @transform_2(%arg0: i32) -> (i32, i32, i32) {
    %c0_i32 = arith.constant 0 : i32
    %c0_i32_0 = arith.constant 0 : i32
    %c0_i32_1 = arith.constant 0 : i32
    return %arg0, %c0_i32, %c0_i32_0 : i32, i32, i32
  }
  func.func @transform_3(%arg0: i32) -> (i32, i32, i32) {
    %c0_i32 = arith.constant 0 : i32
    %c0_i32_0 = arith.constant 0 : i32
    %c0_i32_1 = arith.constant 0 : i32
    return %arg0, %c0_i32, %c0_i32_0 : i32, i32, i32
  }
}

module attributes {stable_mosaic.version = 11 : i64} {
  func.func @kernel(%arg0: i32, %arg1: memref<1x6x128xf32, #tpu.memory_space<vmem>>, %arg2: memref<1x6x128xf32, #tpu.memory_space<vmem>>, %arg3: memref<2x128xf32, #tpu.memory_space<vmem>>, %arg4: memref<768x128xbf16, #tpu.memory_space<vmem>>, %arg5: memref<1x6x128xf32, #tpu.memory_space<vmem>>, %arg6: memref<1x2x128xf32, #tpu.memory_space<vmem>>) attributes {dimension_semantics = [#tpu.dimension_semantics<parallel>], iteration_bounds = array<i64: 2>, scalar_prefetch = 0 : i64, scratch_operands = 0 : i64, tpu.core_type = #tpu.core_type<tc>, window_params = [{transform_indices = @transform_0, window_bounds = array<i64: 1, 6, 128>}, {transform_indices = @transform_1, window_bounds = array<i64: 1, 6, 128>}, {pipeline_mode = #tpu.pipeline_mode<synchronous>, transform_indices = @transform_2, window_bounds = array<i64: 2, 128>}, {pipeline_mode = #tpu.pipeline_mode<synchronous>, transform_indices = @transform_3, window_bounds = array<i64: 768, 128>}, {transform_indices = @transform_4, window_bounds = array<i64: 1, 6, 128>}, {transform_indices = @transform_5, window_bounds = array<i64: 1, 2, 128>}]} {
    %c0 = arith.constant 0 : index
    %c0_0 = arith.constant 0 : index
    %0 = vector.load %arg3[%c0, %c0_0] : memref<2x128xf32, #tpu.memory_space<vmem>>, vector<2x128xf32>
    %c0_1 = arith.constant 0 : index
    %c0_2 = arith.constant 0 : index
    %c0_3 = arith.constant 0 : index
    %1 = vector.load %arg1[%c0_1, %c0_2, %c0_3] : memref<1x6x128xf32, #tpu.memory_space<vmem>>, vector<1x6x128xf32>
    %2 = vector.shape_cast %1 : vector<1x6x128xf32> to vector<6x128xf32>
    %3 = vector.extract_strided_slice %0 {offsets = [0, 0], sizes = [1, 128], strides = [1, 1]} : vector<2x128xf32> to vector<1x128xf32>
    %4 = vector.broadcast %3 : vector<1x128xf32> to vector<6x128xf32>
    %5 = arith.mulf %2, %4 : vector<6x128xf32>
    %6 = vector.extract_strided_slice %0 {offsets = [1, 0], sizes = [1, 128], strides = [1, 1]} : vector<2x128xf32> to vector<1x128xf32>
    %7 = vector.broadcast %6 : vector<1x128xf32> to vector<6x128xf32>
    %8 = arith.addf %5, %7 : vector<6x128xf32>
    %cst = arith.constant 0.000000e+00 : f32
    %9 = vector.broadcast %cst : f32 to vector<6x128xf32>
    %10 = arith.maximumf %8, %9 : vector<6x128xf32>
    %11 = arith.truncf %10 : vector<6x128xf32> to vector<6x128xbf16>
    %c0_4 = arith.constant 0 : index
    %c0_5 = arith.constant 0 : index
    %c0_6 = arith.constant 0 : index
    %12 = vector.load %arg2[%c0_4, %c0_5, %c0_6] : memref<1x6x128xf32, #tpu.memory_space<vmem>>, vector<1x6x128xf32>
    %13 = vector.shape_cast %12 : vector<1x6x128xf32> to vector<6x128xf32>
    %14 = arith.truncf %13 : vector<6x128xf32> to vector<6x128xbf16>
    %cst_7 = arith.constant 0.000000e+00 : bf16
    %15 = vector.broadcast %cst_7 : bf16 to vector<1x128xbf16>
    %16 = tpu.concatenate %15, %11, %15 in 0 : vector<1x128xbf16>, vector<6x128xbf16>, vector<1x128xbf16> -> vector<8x128xbf16>
    %17 = tpu.concatenate %15, %14, %15 in 0 : vector<1x128xbf16>, vector<6x128xbf16>, vector<1x128xbf16> -> vector<8x128xbf16>
    %18 = vector.extract_strided_slice %16 {offsets = [0, 0], sizes = [6, 128], strides = [1, 1]} : vector<8x128xbf16> to vector<6x128xbf16>
    %19 = vector.extract_strided_slice %17 {offsets = [0, 0], sizes = [6, 128], strides = [1, 1]} : vector<8x128xbf16> to vector<6x128xbf16>
    %20 = vector.extract_strided_slice %16 {offsets = [1, 0], sizes = [6, 128], strides = [1, 1]} : vector<8x128xbf16> to vector<6x128xbf16>
    %21 = vector.extract_strided_slice %17 {offsets = [1, 0], sizes = [6, 128], strides = [1, 1]} : vector<8x128xbf16> to vector<6x128xbf16>
    %22 = vector.extract_strided_slice %16 {offsets = [2, 0], sizes = [6, 128], strides = [1, 1]} : vector<8x128xbf16> to vector<6x128xbf16>
    %23 = vector.extract_strided_slice %17 {offsets = [2, 0], sizes = [6, 128], strides = [1, 1]} : vector<8x128xbf16> to vector<6x128xbf16>
    %24 = tpu.concatenate %18, %19, %20, %21, %22, %23 in 1 : vector<6x128xbf16>, vector<6x128xbf16>, vector<6x128xbf16>, vector<6x128xbf16>, vector<6x128xbf16>, vector<6x128xbf16> -> vector<6x768xbf16>
    %c0_8 = arith.constant 0 : index
    %c0_9 = arith.constant 0 : index
    %25 = vector.load %arg4[%c0_8, %c0_9] : memref<768x128xbf16, #tpu.memory_space<vmem>>, vector<768x128xbf16>
    %cst_10 = arith.constant dense<0.000000e+00> : vector<6x128xf32>
    %26 = tpu.matmul %24, %25, %cst_10 {dimension_numbers = #tpu.dot_dimension_numbers<[1], [0], [0], [1], [0, 0, 1, 1], [], []>} : vector<6x768xbf16>, vector<768x128xbf16>, vector<6x128xf32> -> vector<6x128xf32>
    %cst_11 = arith.constant dense<0.000000e+00> : vector<128xf32>
    %27 = vector.multi_reduction <add>, %26, %cst_11 [0] : vector<6x128xf32> to vector<128xf32>
    %28 = vector.shape_cast %27 : vector<128xf32> to vector<1x128xf32>
    %29 = arith.mulf %26, %26 : vector<6x128xf32>
    %cst_12 = arith.constant dense<0.000000e+00> : vector<128xf32>
    %30 = vector.multi_reduction <add>, %29, %cst_12 [0] : vector<6x128xf32> to vector<128xf32>
    %31 = vector.shape_cast %30 : vector<128xf32> to vector<1x128xf32>
    %32 = tpu.concatenate %28, %31 in 0 : vector<1x128xf32>, vector<1x128xf32> -> vector<2x128xf32>
    %c0_13 = arith.constant 0 : index
    %c0_14 = arith.constant 0 : index
    %c0_15 = arith.constant 0 : index
    %33 = vector.load %arg6[%c0_13, %c0_14, %c0_15] : memref<1x2x128xf32, #tpu.memory_space<vmem>>, vector<1x2x128xf32>
    %34 = vector.shape_cast %33 : vector<1x2x128xf32> to vector<2x128xf32>
    %35 = vector.shape_cast %32 : vector<2x128xf32> to vector<1x2x128xf32>
    tpu.vector_store %arg6[%c0_13, %c0_14, %c0_15], %35 {strides = array<i32>} : memref<1x2x128xf32, #tpu.memory_space<vmem>>, vector<1x2x128xf32>,
    %c0_16 = arith.constant 0 : index
    %c0_17 = arith.constant 0 : index
    %c0_18 = arith.constant 0 : index
    %36 = vector.load %arg5[%c0_16, %c0_17, %c0_18] : memref<1x6x128xf32, #tpu.memory_space<vmem>>, vector<1x6x128xf32>
    %37 = vector.shape_cast %36 : vector<1x6x128xf32> to vector<6x128xf32>
    %38 = vector.shape_cast %26 : vector<6x128xf32> to vector<1x6x128xf32>
    tpu.vector_store %arg5[%c0_16, %c0_17, %c0_18], %38 {strides = array<i32>} : memref<1x6x128xf32, #tpu.memory_space<vmem>>, vector<1x6x128xf32>,
    return
  }
  func.func @transform_0(%arg0: i32) -> (i32, i32, i32) {
    %c0_i32 = arith.constant 0 : i32
    %c0_i32_0 = arith.constant 0 : i32
    %c0_i32_1 = arith.constant 0 : i32
    return %arg0, %c0_i32, %c0_i32_0 : i32, i32, i32
  }
  func.func @transform_1(%arg0: i32) -> (i32, i32, i32) {
    %c0_i32 = arith.constant 0 : i32
    %c0_i32_0 = arith.constant 0 : i32
    %c0_i32_1 = arith.constant 0 : i32
    return %arg0, %c0_i32, %c0_i32_0 : i32, i32, i32
  }
  func.func @transform_2(%arg0: i32) -> (i32, i32) {
    %c0_i32 = arith.constant 0 : i32
    %c0_i32_0 = arith.constant 0 : i32
    %c0_i32_1 = arith.constant 0 : i32
    return %c0_i32, %c0_i32_0 : i32, i32
  }
  func.func @transform_3(%arg0: i32) -> (i32, i32) {
    %c0_i32 = arith.constant 0 : i32
    %c0_i32_0 = arith.constant 0 : i32
    %c0_i32_1 = arith.constant 0 : i32
    return %c0_i32, %c0_i32_0 : i32, i32
  }
  func.func @transform_4(%arg0: i32) -> (i32, i32, i32) {
    %c0_i32 = arith.constant 0 : i32
    %c0_i32_0 = arith.constant 0 : i32
    %c0_i32_1 = arith.constant 0 : i32
    return %arg0, %c0_i32, %c0_i32_0 : i32, i32, i32
  }
  func.func @transform_5(%arg0: i32) -> (i32, i32, i32) {
    %c0_i32 = arith.constant 0 : i32
    %c0_i32_0 = arith.constant 0 : i32
    %c0_i32_1 = arith.constant 0 : i32
    return %arg0, %c0_i32, %c0_i32_0 : i32, i32, i32
  }
}

module attributes {stable_mosaic.version = 11 : i64} {
  func.func @kernel(%arg0: i32, %arg1: memref<1x6x128xf32, #tpu.memory_space<vmem>>, %arg2: memref<2x128xf32, #tpu.memory_space<vmem>>, %arg3: memref<384x132xbf16, #tpu.memory_space<vmem>>, %arg4: memref<1x6x128xf32, #tpu.memory_space<vmem>>, %arg5: memref<1x2x132xf32, #tpu.memory_space<vmem>>) attributes {dimension_semantics = [#tpu.dimension_semantics<parallel>], iteration_bounds = array<i64: 2>, scalar_prefetch = 0 : i64, scratch_operands = 0 : i64, tpu.core_type = #tpu.core_type<tc>, window_params = [{transform_indices = @transform_0, window_bounds = array<i64: 1, 6, 128>}, {pipeline_mode = #tpu.pipeline_mode<synchronous>, transform_indices = @transform_1, window_bounds = array<i64: 2, 128>}, {pipeline_mode = #tpu.pipeline_mode<synchronous>, transform_indices = @transform_2, window_bounds = array<i64: 384, 132>}, {transform_indices = @transform_3, window_bounds = array<i64: 1, 6, 128>}, {transform_indices = @transform_4, window_bounds = array<i64: 1, 2, 132>}]} {
    %c0 = arith.constant 0 : index
    %c0_0 = arith.constant 0 : index
    %0 = vector.load %arg2[%c0, %c0_0] : memref<2x128xf32, #tpu.memory_space<vmem>>, vector<2x128xf32>
    %c0_1 = arith.constant 0 : index
    %c0_2 = arith.constant 0 : index
    %c0_3 = arith.constant 0 : index
    %1 = vector.load %arg1[%c0_1, %c0_2, %c0_3] : memref<1x6x128xf32, #tpu.memory_space<vmem>>, vector<1x6x128xf32>
    %2 = vector.shape_cast %1 : vector<1x6x128xf32> to vector<6x128xf32>
    %3 = vector.extract_strided_slice %0 {offsets = [0, 0], sizes = [1, 128], strides = [1, 1]} : vector<2x128xf32> to vector<1x128xf32>
    %4 = vector.broadcast %3 : vector<1x128xf32> to vector<6x128xf32>
    %5 = arith.mulf %2, %4 : vector<6x128xf32>
    %6 = vector.extract_strided_slice %0 {offsets = [1, 0], sizes = [1, 128], strides = [1, 1]} : vector<2x128xf32> to vector<1x128xf32>
    %7 = vector.broadcast %6 : vector<1x128xf32> to vector<6x128xf32>
    %8 = arith.addf %5, %7 : vector<6x128xf32>
    %cst = arith.constant 0.000000e+00 : f32
    %9 = vector.broadcast %cst : f32 to vector<6x128xf32>
    %10 = arith.maximumf %8, %9 : vector<6x128xf32>
    %11 = arith.truncf %10 : vector<6x128xf32> to vector<6x128xbf16>
    %cst_4 = arith.constant 0.000000e+00 : bf16
    %12 = vector.broadcast %cst_4 : bf16 to vector<2x128xbf16>
    %13 = tpu.concatenate %12, %11, %12 in 0 : vector<2x128xbf16>, vector<6x128xbf16>, vector<2x128xbf16> -> vector<10x128xbf16>
    %14 = vector.extract_strided_slice %13 {offsets = [0, 0], sizes = [8, 128], strides = [1, 1]} : vector<10x128xbf16> to vector<8x128xbf16>
    %15 = vector.extract_strided_slice %13 {offsets = [1, 0], sizes = [8, 128], strides = [1, 1]} : vector<10x128xbf16> to vector<8x128xbf16>
    %16 = vector.extract_strided_slice %13 {offsets = [2, 0], sizes = [8, 128], strides = [1, 1]} : vector<10x128xbf16> to vector<8x128xbf16>
    %17 = tpu.concatenate %14, %15, %16 in 1 : vector<8x128xbf16>, vector<8x128xbf16>, vector<8x128xbf16> -> vector<8x384xbf16>
    %c0_5 = arith.constant 0 : index
    %c0_6 = arith.constant 0 : index
    %18 = vector.load %arg3[%c0_5, %c0_6] : memref<384x132xbf16, #tpu.memory_space<vmem>>, vector<384x132xbf16>
    %cst_7 = arith.constant dense<0.000000e+00> : vector<8x132xf32>
    %19 = tpu.matmul %17, %18, %cst_7 {dimension_numbers = #tpu.dot_dimension_numbers<[1], [0], [0], [1], [0, 0, 1, 1], [], []>} : vector<8x384xbf16>, vector<384x132xbf16>, vector<8x132xf32> -> vector<8x132xf32>
    %cst_8 = arith.constant dense<0.000000e+00> : vector<132xf32>
    %20 = vector.multi_reduction <add>, %19, %cst_8 [0] : vector<8x132xf32> to vector<132xf32>
    %21 = vector.shape_cast %20 : vector<132xf32> to vector<1x132xf32>
    %22 = arith.mulf %19, %19 : vector<8x132xf32>
    %cst_9 = arith.constant dense<0.000000e+00> : vector<132xf32>
    %23 = vector.multi_reduction <add>, %22, %cst_9 [0] : vector<8x132xf32> to vector<132xf32>
    %24 = vector.shape_cast %23 : vector<132xf32> to vector<1x132xf32>
    %25 = tpu.concatenate %21, %24 in 0 : vector<1x132xf32>, vector<1x132xf32> -> vector<2x132xf32>
    %c0_10 = arith.constant 0 : index
    %c0_11 = arith.constant 0 : index
    %c0_12 = arith.constant 0 : index
    %26 = vector.load %arg5[%c0_10, %c0_11, %c0_12] : memref<1x2x132xf32, #tpu.memory_space<vmem>>, vector<1x2x132xf32>
    %27 = vector.shape_cast %26 : vector<1x2x132xf32> to vector<2x132xf32>
    %28 = vector.shape_cast %25 : vector<2x132xf32> to vector<1x2x132xf32>
    tpu.vector_store %arg5[%c0_10, %c0_11, %c0_12], %28 {strides = array<i32>} : memref<1x2x132xf32, #tpu.memory_space<vmem>>, vector<1x2x132xf32>,
    %29 = vector.extract_strided_slice %19 {offsets = [1, 0], sizes = [6, 128], strides = [1, 1]} : vector<8x132xf32> to vector<6x128xf32>
    %c0_13 = arith.constant 0 : index
    %c0_14 = arith.constant 0 : index
    %c0_15 = arith.constant 0 : index
    %30 = vector.load %arg4[%c0_13, %c0_14, %c0_15] : memref<1x6x128xf32, #tpu.memory_space<vmem>>, vector<1x6x128xf32>
    %31 = vector.shape_cast %30 : vector<1x6x128xf32> to vector<6x128xf32>
    %32 = vector.shape_cast %29 : vector<6x128xf32> to vector<1x6x128xf32>
    tpu.vector_store %arg4[%c0_13, %c0_14, %c0_15], %32 {strides = array<i32>} : memref<1x6x128xf32, #tpu.memory_space<vmem>>, vector<1x6x128xf32>,
    return
  }
  func.func @transform_0(%arg0: i32) -> (i32, i32, i32) {
    %c0_i32 = arith.constant 0 : i32
    %c0_i32_0 = arith.constant 0 : i32
    %c0_i32_1 = arith.constant 0 : i32
    return %arg0, %c0_i32, %c0_i32_0 : i32, i32, i32
  }
  func.func @transform_1(%arg0: i32) -> (i32, i32) {
    %c0_i32 = arith.constant 0 : i32
    %c0_i32_0 = arith.constant 0 : i32
    %c0_i32_1 = arith.constant 0 : i32
    return %c0_i32, %c0_i32_0 : i32, i32
  }
  func.func @transform_2(%arg0: i32) -> (i32, i32) {
    %c0_i32 = arith.constant 0 : i32
    %c0_i32_0 = arith.constant 0 : i32
    %c0_i32_1 = arith.constant 0 : i32
    return %c0_i32, %c0_i32_0 : i32, i32
  }
  func.func @transform_3(%arg0: i32) -> (i32, i32, i32) {
    %c0_i32 = arith.constant 0 : i32
    %c0_i32_0 = arith.constant 0 : i32
    %c0_i32_1 = arith.constant 0 : i32
    return %arg0, %c0_i32, %c0_i32_0 : i32, i32, i32
  }
  func.func @transform_4(%arg0: i32) -> (i32, i32, i32) {
    %c0_i32 = arith.constant 0 : i32
    %c0_i32_0 = arith.constant 0 : i32
    %c0_i32_1 = arith.constant 0 : i32
    return %arg0, %c0_i32, %c0_i32_0 : i32, i32, i32
  }
}

module attributes {stable_mosaic.version = 11 : i64} {
  func.func @kernel(%arg0: i32, %arg1: memref<1x6x128xf32, #tpu.memory_space<vmem>>, %arg2: memref<2x128xf32, #tpu.memory_space<vmem>>, %arg3: memref<128x64xbf16, #tpu.memory_space<vmem>>, %arg4: memref<1x64xf32, #tpu.memory_space<vmem>>, %arg5: memref<1x6x64xf32, #tpu.memory_space<vmem>>) attributes {dimension_semantics = [#tpu.dimension_semantics<parallel>], iteration_bounds = array<i64: 2>, scalar_prefetch = 0 : i64, scratch_operands = 0 : i64, tpu.core_type = #tpu.core_type<tc>, window_params = [{transform_indices = @transform_0, window_bounds = array<i64: 1, 6, 128>}, {pipeline_mode = #tpu.pipeline_mode<synchronous>, transform_indices = @transform_1, window_bounds = array<i64: 2, 128>}, {pipeline_mode = #tpu.pipeline_mode<synchronous>, transform_indices = @transform_2, window_bounds = array<i64: 128, 64>}, {pipeline_mode = #tpu.pipeline_mode<synchronous>, transform_indices = @transform_3, window_bounds = array<i64: 1, 64>}, {transform_indices = @transform_4, window_bounds = array<i64: 1, 6, 64>}]} {
    %c0 = arith.constant 0 : index
    %c0_0 = arith.constant 0 : index
    %0 = vector.load %arg2[%c0, %c0_0] : memref<2x128xf32, #tpu.memory_space<vmem>>, vector<2x128xf32>
    %c0_1 = arith.constant 0 : index
    %c0_2 = arith.constant 0 : index
    %c0_3 = arith.constant 0 : index
    %1 = vector.load %arg1[%c0_1, %c0_2, %c0_3] : memref<1x6x128xf32, #tpu.memory_space<vmem>>, vector<1x6x128xf32>
    %2 = vector.shape_cast %1 : vector<1x6x128xf32> to vector<6x128xf32>
    %3 = vector.extract_strided_slice %0 {offsets = [0, 0], sizes = [1, 128], strides = [1, 1]} : vector<2x128xf32> to vector<1x128xf32>
    %4 = vector.broadcast %3 : vector<1x128xf32> to vector<6x128xf32>
    %5 = arith.mulf %2, %4 : vector<6x128xf32>
    %6 = vector.extract_strided_slice %0 {offsets = [1, 0], sizes = [1, 128], strides = [1, 1]} : vector<2x128xf32> to vector<1x128xf32>
    %7 = vector.broadcast %6 : vector<1x128xf32> to vector<6x128xf32>
    %8 = arith.addf %5, %7 : vector<6x128xf32>
    %cst = arith.constant 0.000000e+00 : f32
    %9 = vector.broadcast %cst : f32 to vector<6x128xf32>
    %10 = arith.maximumf %8, %9 : vector<6x128xf32>
    %11 = arith.truncf %10 : vector<6x128xf32> to vector<6x128xbf16>
    %c0_4 = arith.constant 0 : index
    %c0_5 = arith.constant 0 : index
    %12 = vector.load %arg3[%c0_4, %c0_5] : memref<128x64xbf16, #tpu.memory_space<vmem>>, vector<128x64xbf16>
    %cst_6 = arith.constant dense<0.000000e+00> : vector<6x64xf32>
    %13 = tpu.matmul %11, %12, %cst_6 {dimension_numbers = #tpu.dot_dimension_numbers<[1], [0], [0], [1], [0, 0, 1, 1], [], []>} : vector<6x128xbf16>, vector<128x64xbf16>, vector<6x64xf32> -> vector<6x64xf32>
    %c0_7 = arith.constant 0 : index
    %c0_8 = arith.constant 0 : index
    %14 = vector.load %arg4[%c0_7, %c0_8] : memref<1x64xf32, #tpu.memory_space<vmem>>, vector<1x64xf32>
    %15 = vector.broadcast %14 : vector<1x64xf32> to vector<6x64xf32>
    %16 = arith.addf %13, %15 : vector<6x64xf32>
    %c0_9 = arith.constant 0 : index
    %c0_10 = arith.constant 0 : index
    %c0_11 = arith.constant 0 : index
    %17 = vector.load %arg5[%c0_9, %c0_10, %c0_11] : memref<1x6x64xf32, #tpu.memory_space<vmem>>, vector<1x6x64xf32>
    %18 = vector.shape_cast %17 : vector<1x6x64xf32> to vector<6x64xf32>
    %19 = vector.shape_cast %16 : vector<6x64xf32> to vector<1x6x64xf32>
    tpu.vector_store %arg5[%c0_9, %c0_10, %c0_11], %19 {strides = array<i32>} : memref<1x6x64xf32, #tpu.memory_space<vmem>>, vector<1x6x64xf32>,
    return
  }
  func.func @transform_0(%arg0: i32) -> (i32, i32, i32) {
    %c0_i32 = arith.constant 0 : i32
    %c0_i32_0 = arith.constant 0 : i32
    %c0_i32_1 = arith.constant 0 : i32
    return %arg0, %c0_i32, %c0_i32_0 : i32, i32, i32
  }
  func.func @transform_1(%arg0: i32) -> (i32, i32) {
    %c0_i32 = arith.constant 0 : i32
    %c0_i32_0 = arith.constant 0 : i32
    %c0_i32_1 = arith.constant 0 : i32
    return %c0_i32, %c0_i32_0 : i32, i32
  }
  func.func @transform_2(%arg0: i32) -> (i32, i32) {
    %c0_i32 = arith.constant 0 : i32
    %c0_i32_0 = arith.constant 0 : i32
    %c0_i32_1 = arith.constant 0 : i32
    return %c0_i32, %c0_i32_0 : i32, i32
  }
  func.func @transform_3(%arg0: i32) -> (i32, i32) {
    %c0_i32 = arith.constant 0 : i32
    %c0_i32_0 = arith.constant 0 : i32
    %c0_i32_1 = arith.constant 0 : i32
    return %c0_i32, %c0_i32_0 : i32, i32
  }
  func.func @transform_4(%arg0: i32) -> (i32, i32, i32) {
    %c0_i32 = arith.constant 0 : i32
    %c0_i32_0 = arith.constant 0 : i32
    %c0_i32_1 = arith.constant 0 : i32
    return %arg0, %c0_i32, %c0_i32_0 : i32, i32, i32
  }
}

</mosaic_0001>

<llo_original>
// kernel: tile.24
$region0: #{tile.24}
  %s0 = inlined_call_operand.vmem [shape: f32[2,16,8], index: 0, kind: input, shape index: {}]
  %s1 = inlined_call_operand.vmem [shape: f32[2,128], index: 1, kind: output, shape index: {}]
  $region1: #{tile.24} parent=0
    #allocation0 [shape = 'u8[4096]{0}', space=vmem, size = 0x1000, scoped, tag = 'scoped mem for output reshape']
    %s2 = smov 3
    %v3 = vld [vmem:[%s0] ss:$16 sm:%s2]
    %vm4 = vcmask 64512
    %5 = vst.msk [vmem:[#allocation0] sm:$0x3] %vm4, %v3
    %s6 = scalar_lea.vmem %s0, 15
    %s7 = smov 3
    %v8 = vld [vmem:[%s6] ss:$16 sm:%s7]
    %9 = vrot.lane.b32.xlu0 %v8, 120
    %v10 = vpop.permute.xlu0 %9
    %vm11 = vcmask 1048512
    %12 = vst.msk [vmem:[#allocation0] sm:$0x3] %vm11, %v10
    %s13 = scalar_lea.vmem %s0, 14
    %s14 = smov 3
    %v15 = vld [vmem:[%s13] ss:$16 sm:%s14]
    %16 = vrot.lane.b32.xlu0 %v15, 112
    %v17 = vpop.permute.xlu0 %16
    %vm18 = vcmask 982912
    %19 = vst.msk [vmem:[#allocation0] sm:$0x3] %vm18, %v17
    %s20 = scalar_lea.vmem %s0, 13
    %s21 = smov 3
    %v22 = vld [vmem:[%s20] ss:$16 sm:%s21]
    %23 = vrot.lane.b32.xlu0 %v22, 104
    %v24 = vpop.permute.xlu0 %23
    %vm25 = vcmask 917312
    %26 = vst.msk [vmem:[#allocation0] sm:$0x3] %vm25, %v24
    %s27 = scalar_lea.vmem %s0, 12
    %s28 = smov 3
    %v29 = vld [vmem:[%s27] ss:$16 sm:%s28]
    %30 = vrot.lane.b32.xlu0 %v29, 96
    %v31 = vpop.permute.xlu0 %30
    %vm32 = vcmask 851712
    %33 = vst.msk [vmem:[#allocation0] sm:$0x3] %vm32, %v31
    %s34 = scalar_lea.vmem %s0, 11
    %s35 = smov 3
    %v36 = vld [vmem:[%s34] ss:$16 sm:%s35]
    %37 = vrot.lane.b32.xlu0 %v36, 88
    %v38 = vpop.permute.xlu0 %37
    %vm39 = vcmask 786112
    %40 = vst.msk [vmem:[#allocation0] sm:$0x3] %vm39, %v38
    %s41 = scalar_lea.vmem %s0, 10
    %s42 = smov 3
    %v43 = vld [vmem:[%s41] ss:$16 sm:%s42]
    %44 = vrot.lane.b32.xlu0 %v43, 80
    %v45 = vpop.permute.xlu0 %44
    %vm46 = vcmask 720512
    %47 = vst.msk [vmem:[#allocation0] sm:$0x3] %vm46, %v45
    %s48 = scalar_lea.vmem %s0, 9
    %s49 = smov 3
    %v50 = vld [vmem:[%s48] ss:$16 sm:%s49]
    %51 = vrot.lane.b32.xlu0 %v50, 72
    %v52 = vpop.permute.xlu0 %51
    %vm53 = vcmask 654912
    %54 = vst.msk [vmem:[#allocation0] sm:$0x3] %vm53, %v52
    %s55 = scalar_lea.vmem %s0, 8
    %s56 = smov 3
    %v57 = vld [vmem:[%s55] ss:$16 sm:%s56]
    %58 = vrot.lane.b32.xlu0 %v57, 64
    %v59 = vpop.permute.xlu0 %58
    %vm60 = vcmask 589312
    %61 = vst.msk [vmem:[#allocation0] sm:$0x3] %vm60, %v59
    %s62 = scalar_lea.vmem %s0, 7
    %s63 = smov 3
    %v64 = vld [vmem:[%s62] ss:$16 sm:%s63]
    %65 = vrot.lane.b32.xlu0 %v64, 56
    %v66 = vpop.permute.xlu0 %65
    %vm67 = vcmask 523712
    %68 = vst.msk [vmem:[#allocation0] sm:$0x3] %vm67, %v66
    %s69 = scalar_lea.vmem %s0, 6
    %s70 = smov 3
    %v71 = vld [vmem:[%s69] ss:$16 sm:%s70]
    %72 = vrot.lane.b32.xlu0 %v71, 48
    %v73 = vpop.permute.xlu0 %72
    %vm74 = vcmask 458112
    %75 = vst.msk [vmem:[#allocation0] sm:$0x3] %vm74, %v73
    %s76 = scalar_lea.vmem %s0, 5
    %s77 = smov 3
    %v78 = vld [vmem:[%s76] ss:$16 sm:%s77]
    %79 = vrot.lane.b32.xlu0 %v78, 40
    %v80 = vpop.permute.xlu0 %79
    %vm81 = vcmask 392512
    %82 = vst.msk [vmem:[#allocation0] sm:$0x3] %vm81, %v80
    %s83 = scalar_lea.vmem %s0, 4
    %s84 = smov 3
    %v85 = vld [vmem:[%s83] ss:$16 sm:%s84]
    %86 = vrot.lane.b32.xlu0 %v85, 32
    %v87 = vpop.permute.xlu0 %86
    %vm88 = vcmask 326912
    %89 = vst.msk [vmem:[#allocation0] sm:$0x3] %vm88, %v87
    %s90 = scalar_lea.vmem %s0, 3
    %s91 = smov 3
    %v92 = vld [vmem:[%s90] ss:$16 sm:%s91]
    %93 = vrot.lane.b32.xlu0 %v92, 24
    %v94 = vpop.permute.xlu0 %93
    %vm95 = vcmask 261312
    %96 = vst.msk [vmem:[#allocation0] sm:$0x3] %vm95, %v94
    %s97 = scalar_lea.vmem %s0, 2
    %s98 = smov 3
    %v99 = vld [vmem:[%s97] ss:$16 sm:%s98]
    %100 = vrot.lane.b32.xlu0 %v99, 16
    %v101 = vpop.permute.xlu0 %100
    %vm102 = vcmask 195712
    %103 = vst.msk [vmem:[#allocation0] sm:$0x3] %vm102, %v101
    %s104 = scalar_lea.vmem %s0, 1
    %s105 = smov 3
    %v106 = vld [vmem:[%s104] ss:$16 sm:%s105]
    %107 = vrot.lane.b32.xlu0 %v106, 8
    %v108 = vpop.permute.xlu0 %107
    %vm109 = vcmask 130112
    %110 = vst.msk [vmem:[#allocation0] sm:$0x3] %vm109, %v108
    %s112 = sshllo.u32 0, 2
    %v114 = vld [vmem:[#allocation0] sm:%s112]
    %s115 = sshllo.u32 0, 2
    %116 = vst [vmem:[%s1] sm:%s115] %v114

// kernel: decoder_forward_pallas.5
$region0: #{decoder_forward_pallas.5}
  #allocation0 [shape = 'u32[]', space=smem, size = 0x4, offset = 0x4, fixed_abs, tag = 'smem constant byte address 0x4 - core index']
  #allocation1 [shape = 'u32[144,128]{1,0:T(1,128)}', space=vmem, size = 0x12000, scoped, tag = 'internal scratch']
  %s0 = inlined_call_operand.vmem [shape: f32[2,6,128], index: 0, kind: input, shape index: {}]
  %s1 = inlined_call_operand.vmem [shape: bf16[384,136], index: 1, kind: input, shape index: {}]
  %s2 = inlined_call_operand.vmem [shape: f32[2,6,128], index: 2, kind: output, shape index: {0}]
  %s3 = inlined_call_operand.vmem [shape: f32[2,2,136], index: 3, kind: output, shape index: {1}]
  %4 = xla_tuple %s2, %s3
  %s5 = sld [smem:[#allocation0]]
  $region49: #{decoder_forward_pallas.5} parent=0
    _
  %s7 = ssub.s32 1, %s5
  %s8 = scalar_select 0, %s7, %s5
  loop: start=0, step=1, limit=4
  $region2: #{decoder_forward_pallas.5} parent=0 // loop_pre_header
    _
  $region3: #{decoder_forward_pallas.5} parent=0 // loop_header
    %s10 = sphi 0, %s14
    %p11 = scmp.ge.s32.totalorder %s10, 4
    %s20 = sphi 0, %s22
    %s23 = sphi 0, %s20
    %s24 = sphi 0, %s23
    %s40 = sphi 0, %s24
    %s44 = sphi 0, %s44
    %s46 = sphi 0, %s44
    %s47 = sphi 0, %s46
    %s61 = sphi 0, %s47
    %s67 = sphi 0, %s69
    %s70 = sphi 0, %s67
    %s71 = sphi 0, %s70
    %s87 = sphi 0, %s71
    %s93 = sphi 0, %s95
    %s96 = sphi 0, %s93
    %s97 = sphi 0, %s96
    %s113 = sphi 0, %s97
  $region4: #{decoder_forward_pallas.5} parent=0 // loop_header_branch
    %13 = sbr.rel (%p11) target = $region8
  $region5: #{decoder_forward_pallas.5} parent=0 // loop_body
    %s15 = ssub.s32 %s10, 1
    %s16 = ssub.s32 %s10, 2
    %s17 = sadd.s32 %s10, 1
    %s18 = ssub.s32 %s10, %s17
    %p19 = scmp.eq.s32.totalorder %s18, 0
    %s21 = sadd.s32 %s20, 1
    %s22 = scalar_select %p19, %s20, %s21
    %p25 = pneg %p19
    %p26 = scmp.eq.s32.totalorder %s10, 1
    %p27 = por %p25, %p26
    %p28 = scmp.ne.s32.totalorder %s20, %s23
    %p29 = scmp.eq.s32.totalorder %s10, 0
    %p30 = por %p28, %p29
    %p31 = scmp.ne.s32.totalorder %s20, %s23
    %p32 = scmp.eq.s32.totalorder %s15, 1
    %p33 = por %p31, %p32
    %p34 = scmp.ne.s32.totalorder %s23, %s24
    %p35 = scmp.eq.s32.totalorder %s15, 0
    %p36 = por %p34, %p35
    %p37 = scmp.ne.s32.totalorder %s23, %s24
    %p38 = scmp.eq.s32.totalorder %s16, 1
    %p39 = por %p37, %p38
    %p41 = scmp.ne.s32.totalorder %s24, %s40
    %p42 = scmp.eq.s32.totalorder %s16, 0
    %p43 = por %p41, %p42
    %s45 = sadd.s32 %s44, 1
    %p48 = scmp.eq.s32.totalorder %s10, 1
    %p49 = scmp.ne.s32.totalorder %s44, %s46
    %p50 = scmp.eq.s32.totalorder %s10, 0
    %p51 = por %p49, %p50
    %p52 = scmp.ne.s32.totalorder %s44, %s46
    %p53 = scmp.eq.s32.totalorder %s15, 1
    %p54 = por %p52, %p53
    %p55 = scmp.ne.s32.totalorder %s46, %s47
    %p56 = scmp.eq.s32.totalorder %s15, 0
    %p57 = por %p55, %p56
    %p58 = scmp.ne.s32.totalorder %s46, %s47
    %p59 = scmp.eq.s32.totalorder %s16, 1
    %p60 = por %p58, %p59
    %p62 = scmp.ne.s32.totalorder %s47, %s61
    %p63 = scmp.eq.s32.totalorder %s16, 0
    %p64 = por %p62, %p63
    %s65 = ssub.s32 %s10, %s17
    %p66 = scmp.eq.s32.totalorder %s65, 0
    %s68 = sadd.s32 %s67, 1
    %s69 = scalar_select %p66, %s67, %s68
    %p72 = pneg %p66
    %p73 = scmp.eq.s32.totalorder %s10, 1
    %p74 = por %p72, %p73
    %p75 = scmp.ne.s32.totalorder %s67, %s70
    %p76 = scmp.eq.s32.totalorder %s10, 0
    %p77 = por %p75, %p76
    %p78 = scmp.ne.s32.totalorder %s67, %s70
    %p79 = scmp.eq.s32.totalorder %s15, 1
    %p80 = por %p78, %p79
    %p81 = scmp.ne.s32.totalorder %s70, %s71
    %p82 = scmp.eq.s32.totalorder %s15, 0
    %p83 = por %p81, %p82
    %p84 = scmp.ne.s32.totalorder %s70, %s71
    %p85 = scmp.eq.s32.totalorder %s16, 1
    %p86 = por %p84, %p85
    %p88 = scmp.ne.s32.totalorder %s71, %s87
    %p89 = scmp.eq.s32.totalorder %s16, 0
    %p90 = por %p88, %p89
    %s91 = ssub.s32 %s10, %s17
    %p92 = scmp.eq.s32.totalorder %s91, 0
    %s94 = sadd.s32 %s93, 1
    %s95 = scalar_select %p92, %s93, %s94
    %p98 = pneg %p92
    %p99 = scmp.eq.s32.totalorder %s10, 1
    %p100 = por %p98, %p99
    %p101 = scmp.ne.s32.totalorder %s93, %s96
    %p102 = scmp.eq.s32.totalorder %s10, 0
    %p103 = por %p101, %p102
    %p104 = scmp.ne.s32.totalorder %s93, %s96
    %p105 = scmp.eq.s32.totalorder %s15, 1
    %p106 = por %p104, %p105
    %p107 = scmp.ne.s32.totalorder %s96, %s97
    %p108 = scmp.eq.s32.totalorder %s15, 0
    %p109 = por %p107, %p108
    %p110 = scmp.ne.s32.totalorder %s96, %s97
    %p111 = scmp.eq.s32.totalorder %s16, 1
    %p112 = por %p110, %p111
    %p114 = scmp.ne.s32.totalorder %s97, %s113
    %p115 = scmp.eq.s32.totalorder %s16, 0
    %p116 = por %p114, %p115
    %p117 = scmp.le.s32.totalorder 1, %s10
    %p118 = scmp.lt.s32.totalorder %s10, 3
    %p119 = pnand %p117, %p118
    %p120 = pneg %p119
    // Predicated region
    $region9: #{decoder_forward_pallas.5} parent=5 // pred_check
      _
    $region10: #{decoder_forward_pallas.5} parent=5 // pred_check_branch
      %122 = sbr.rel (%p119) target = $region12
    $region11: #{decoder_forward_pallas.5} parent=5 // pred_region
      %s123 = ssub.s32 %s10, 1
      // Predicated region
      $region13: #{decoder_forward_pallas.5} parent=11 // pred_check
        %p124 = pneg %p57
      $region14: #{decoder_forward_pallas.5} parent=11 // pred_check_branch
        %126 = sbr.rel (%p124) target = $region16
      $region15: #{decoder_forward_pallas.5} parent=11 // pred_region
        _
      $region16: #{decoder_forward_pallas.5} parent=11 // pred_fallthru
        _
    $region12: #{decoder_forward_pallas.5} parent=5 // pred_fallthru
      _
    %p127 = scmp.lt.s32.totalorder %s10, 2
    // Predicated region
    $region17: #{decoder_forward_pallas.5} parent=5 // pred_check
      %p128 = pneg %p127
    $region18: #{decoder_forward_pallas.5} parent=5 // pred_check_branch
      %130 = sbr.rel (%p128) target = $region20
    $region19: #{decoder_forward_pallas.5} parent=5 // pred_region
      // Predicated region
      $region21: #{decoder_forward_pallas.5} parent=19 // pred_check
        %p131 = pneg %p30
      $region22: #{decoder_forward_pallas.5} parent=19 // pred_check_branch
        %133 = sbr.rel (%p131) target = $region24
      $region23: #{decoder_forward_pallas.5} parent=19 // pred_region
        %p134 = scmp.lt.s32.totalorder %s10, 1
        %s135 = scalar_select %p134, %s10, 1
        %s136 = smul.addr %s135, 8
        %s137 = scalar_lea.vmem %s0, %s136
      $region24: #{decoder_forward_pallas.5} parent=19 // pred_fallthru
        _
    $region20: #{decoder_forward_pallas.5} parent=5 // pred_fallthru
      _
    %p138 = scmp.le.s32.totalorder 1, %s10
    %p139 = scmp.lt.s32.totalorder %s10, 3
    %p140 = pnand %p138, %p139
    %p141 = pneg %p140
    // Predicated region
    $region25: #{decoder_forward_pallas.5} parent=5 // pred_check
      _
    $region26: #{decoder_forward_pallas.5} parent=5 // pred_check_branch
      %143 = sbr.rel (%p140) target = $region28
    $region27: #{decoder_forward_pallas.5} parent=5 // pred_region
      %s144 = ssub.s32 %s10, 1
      %p145 = scmp.lt.s32.totalorder %s15, 1
      %s146 = scalar_select %p145, %s15, 1
      %s147 = smul.addr %s146, 8
      %s148 = scalar_lea.vmem %s0, %s147
      %p149 = pneg %p36
      %p150 = pneg %p33
      %p151 = pneg %p57
      %p152 = pneg %p54
      %p153 = pneg %p83
      %p154 = pneg %p80
      %p155 = scmp.lt.s32.totalorder %s15, 1
      %s156 = scalar_select %p155, %s15, 1
      %s157 = smul.addr %s156, 8
      %s158 = scalar_lea.vmem %s2, %s157
      %p159 = pneg %p109
      %p160 = pneg %p106
      %p161 = scmp.lt.s32.totalorder %s15, 1
      %s162 = scalar_select %p161, %s15, 1
      %s163 = smul.addr %s162, 2
      %s164 = smul.addr %s163, 2
      %s165 = scalar_lea.vmem %s3, %s164
      %p166 = scmp.lt.s32.totalorder %s15, 1
      %s167 = scalar_select %p166, %s15, 1
      %s168 = smul.addr %s167, 8
      %s169 = scalar_lea.vmem %s0, %s168
      %p170 = scmp.lt.s32.totalorder %s15, 1
      %s171 = scalar_select %p170, %s15, 1
      %s172 = smul.addr %s171, 8
      %s173 = scalar_lea.vmem %s2, %s172
      %p174 = scmp.lt.s32.totalorder %s15, 1
      %s175 = scalar_select %p174, %s15, 1
      %s176 = smul.addr %s175, 2
      %s177 = smul.addr %s176, 2
      %s178 = scalar_lea.vmem %s3, %s177
      %v180 = vld [vmem:[%s169] sm:$0x3f]
      %v181 = vpack.c.bf16 %v180, %v180
      %v183 = vrot.slane %v181, 7
      %vm184 = vcmask 1040384
      %v187 = vsel %vm184, 0, %v183
      %vm188 = vcmask 1043456
      %v189 = vsel %vm188, %v187, 0
      %v191 = vshrl.u32 %v189, 16
      %v193 = vshll.u32 %v189, 16
      %v195 = vrot.slane %v193, 1
      %v196 = vor.u32 %v191, %v195
      %v199 = vrot.slane %v189, 1
      %v201 = vld [vmem:[%s1] sm:$0xff]
      %v202 = vld [vmem:[%s1 + $0x8] sm:$0xff]
      %v203 = vld [vmem:[%s1 + $0x10] sm:$0xff]
      %v204 = vld [vmem:[%s1 + $0x18] sm:$0xff]
      %v205 = vld [vmem:[%s1 + $0x20] sm:$0xff]
      %v206 = vld [vmem:[%s1 + $0x28] sm:$0xff]
      %v207 = vld [vmem:[%s1 + $0x30] sm:$0xff]
      %v208 = vld [vmem:[%s1 + $0x38] sm:$0xff]
      %v209 = vld [vmem:[%s1 + $0x40] sm:$0xff]
      %v210 = vld [vmem:[%s1 + $0x48] sm:$0xff]
      %v211 = vld [vmem:[%s1 + $0x50] sm:$0xff]
      %v212 = vld [vmem:[%s1 + $0x58] sm:$0xff]
      %v213 = vld [vmem:[%s1 + $0x60] sm:$0xff]
      %v214 = vld [vmem:[%s1 + $0x68] sm:$0xff]
      %v215 = vld [vmem:[%s1 + $0x70] sm:$0xff]
      %v216 = vld [vmem:[%s1 + $0x78] sm:$0xff]
      %v217 = vld [vmem:[%s1 + $0x80] sm:$0xff]
      %v218 = vld [vmem:[%s1 + $0x88] sm:$0xff]
      %v219 = vld [vmem:[%s1 + $0x90] sm:$0xff]
      %v220 = vld [vmem:[%s1 + $0x98] sm:$0xff]
      %v221 = vld [vmem:[%s1 + $0xa0] sm:$0xff]
      %v222 = vld [vmem:[%s1 + $0xa8] sm:$0xff]
      %v223 = vld [vmem:[%s1 + $0xb0] sm:$0xff]
      %v224 = vld [vmem:[%s1 + $0xb8] sm:$0xff]
      %v225 = vld [vmem:[%s1 + $0xc0] sm:$0xff]
      %v226 = vld [vmem:[%s1 + $0xc8] sm:$0xff]
      %v227 = vld [vmem:[%s1 + $0xd0] sm:$0xff]
      %v228 = vld [vmem:[%s1 + $0xd8] sm:$0xff]
      %v229 = vld [vmem:[%s1 + $0xe0] sm:$0xff]
      %v230 = vld [vmem:[%s1 + $0xe8] sm:$0xff]
      %v231 = vld [vmem:[%s1 + $0xf0] sm:$0xff]
      %v232 = vld [vmem:[%s1 + $0xf8] sm:$0xff]
      %v233 = vld [vmem:[%s1 + $0x100] sm:$0xff]
      %v234 = vld [vmem:[%s1 + $0x108] sm:$0xff]
      %v235 = vld [vmem:[%s1 + $0x110] sm:$0xff]
      %v236 = vld [vmem:[%s1 + $0x118] sm:$0xff]
      %v237 = vld [vmem:[%s1 + $0x120] sm:$0xff]
      %v238 = vld [vmem:[%s1 + $0x128] sm:$0xff]
      %v239 = vld [vmem:[%s1 + $0x130] sm:$0xff]
      %v240 = vld [vmem:[%s1 + $0x138] sm:$0xff]
      %v241 = vld [vmem:[%s1 + $0x140] sm:$0xff]
      %v242 = vld [vmem:[%s1 + $0x148] sm:$0xff]
      %v243 = vld [vmem:[%s1 + $0x150] sm:$0xff]
      %v244 = vld [vmem:[%s1 + $0x158] sm:$0xff]
      %v245 = vld [vmem:[%s1 + $0x160] sm:$0xff]
      %v246 = vld [vmem:[%s1 + $0x168] sm:$0xff]
      %v247 = vld [vmem:[%s1 + $0x170] sm:$0xff]
      %v248 = vld [vmem:[%s1 + $0x178] sm:$0xff]
      %v297 = vunpack.c.l.b16 %v201
      %v298 = vunpack.c.h.b16 %v201
      %v299 = vunpack.c.l.b16 %v202
      %v300 = vunpack.c.h.b16 %v202
      %v301 = vunpack.c.l.b16 %v203
      %v302 = vunpack.c.h.b16 %v203
      %v303 = vunpack.c.l.b16 %v204
      %v304 = vunpack.c.h.b16 %v204
      %v305 = vunpack.c.l.b16 %v205
      %v306 = vunpack.c.h.b16 %v205
      %v307 = vunpack.c.l.b16 %v206
      %v308 = vunpack.c.h.b16 %v206
      %v309 = vunpack.c.l.b16 %v207
      %v310 = vunpack.c.h.b16 %v207
      %v311 = vunpack.c.l.b16 %v208
      %v312 = vunpack.c.h.b16 %v208
      %v313 = vunpack.c.l.b16 %v209
      %v314 = vunpack.c.h.b16 %v209
      %v315 = vunpack.c.l.b16 %v210
      %v316 = vunpack.c.h.b16 %v210
      %v317 = vunpack.c.l.b16 %v211
      %v318 = vunpack.c.h.b16 %v211
      %v319 = vunpack.c.l.b16 %v212
      %v320 = vunpack.c.h.b16 %v212
      %v321 = vunpack.c.l.b16 %v213
      %v322 = vunpack.c.h.b16 %v213
      %v323 = vunpack.c.l.b16 %v214
      %v324 = vunpack.c.h.b16 %v214
      %v325 = vunpack.c.l.b16 %v215
      %v326 = vunpack.c.h.b16 %v215
      %v327 = vunpack.c.l.b16 %v216
      %v328 = vunpack.c.h.b16 %v216
      %v329 = vunpack.c.l.b16 %v217
      %v330 = vunpack.c.h.b16 %v217
      %v331 = vunpack.c.l.b16 %v218
      %v332 = vunpack.c.h.b16 %v218
      %v333 = vunpack.c.l.b16 %v219
      %v334 = vunpack.c.h.b16 %v219
      %v335 = vunpack.c.l.b16 %v220
      %v336 = vunpack.c.h.b16 %v220
      %v337 = vunpack.c.l.b16 %v221
      %v338 = vunpack.c.h.b16 %v221
      %v339 = vunpack.c.l.b16 %v222
      %v340 = vunpack.c.h.b16 %v222
      %v341 = vunpack.c.l.b16 %v223
      %v342 = vunpack.c.h.b16 %v223
      %v343 = vunpack.c.l.b16 %v224
      %v344 = vunpack.c.h.b16 %v224
      %v345 = vunpack.c.l.b16 %v225
      %v346 = vunpack.c.h.b16 %v225
      %v347 = vunpack.c.l.b16 %v226
      %v348 = vunpack.c.h.b16 %v226
      %v349 = vunpack.c.l.b16 %v227
      %v350 = vunpack.c.h.b16 %v227
      %v351 = vunpack.c.l.b16 %v228
      %v352 = vunpack.c.h.b16 %v228
      %v353 = vunpack.c.l.b16 %v229
      %v354 = vunpack.c.h.b16 %v229
      %v355 = vunpack.c.l.b16 %v230
      %v356 = vunpack.c.h.b16 %v230
      %v357 = vunpack.c.l.b16 %v231
      %v358 = vunpack.c.h.b16 %v231
      %v359 = vunpack.c.l.b16 %v232
      %v360 = vunpack.c.h.b16 %v232
      %v361 = vunpack.c.l.b16 %v233
      %v362 = vunpack.c.h.b16 %v233
      %v363 = vunpack.c.l.b16 %v234
      %v364 = vunpack.c.h.b16 %v234
      %v365 = vunpack.c.l.b16 %v235
      %v366 = vunpack.c.h.b16 %v235
      %v367 = vunpack.c.l.b16 %v236
      %v368 = vunpack.c.h.b16 %v236
      %v369 = vunpack.c.l.b16 %v237
      %v370 = vunpack.c.h.b16 %v237
      %v371 = vunpack.c.l.b16 %v238
      %v372 = vunpack.c.h.b16 %v238
      %v373 = vunpack.c.l.b16 %v239
      %v374 = vunpack.c.h.b16 %v239
      %v375 = vunpack.c.l.b16 %v240
      %v376 = vunpack.c.h.b16 %v240
      %v377 = vunpack.c.l.b16 %v241
      %v378 = vunpack.c.h.b16 %v241
      %v379 = vunpack.c.l.b16 %v242
      %v380 = vunpack.c.h.b16 %v242
      %v381 = vunpack.c.l.b16 %v243
      %v382 = vunpack.c.h.b16 %v243
      %v383 = vunpack.c.l.b16 %v244
      %v384 = vunpack.c.h.b16 %v244
      %v385 = vunpack.c.l.b16 %v245
      %v386 = vunpack.c.h.b16 %v245
      %v387 = vunpack.c.l.b16 %v246
      %v388 = vunpack.c.h.b16 %v246
      %v389 = vunpack.c.l.b16 %v247
      %v390 = vunpack.c.h.b16 %v247
      %v391 = vunpack.c.l.b16 %v248
      %v392 = vunpack.c.h.b16 %v248
      %v393 = vpack.c.b16 %v299, %v297
      %v394 = vpack.c.b16 %v300, %v298
      %v395 = vpack.c.b16 %v303, %v301
      %v396 = vpack.c.b16 %v304, %v302
      %v397 = vpack.c.b16 %v307, %v305
      %v398 = vpack.c.b16 %v308, %v306
      %v399 = vpack.c.b16 %v311, %v309
      %v400 = vpack.c.b16 %v312, %v310
      %v401 = vpack.c.b16 %v315, %v313
      %v402 = vpack.c.b16 %v316, %v314
      %v403 = vpack.c.b16 %v319, %v317
      %v404 = vpack.c.b16 %v320, %v318
      %v405 = vpack.c.b16 %v323, %v321
      %v406 = vpack.c.b16 %v324, %v322
      %v407 = vpack.c.b16 %v327, %v325
      %v408 = vpack.c.b16 %v328, %v326
      %v409 = vpack.c.b16 %v331, %v329
      %v410 = vpack.c.b16 %v332, %v330
      %v411 = vpack.c.b16 %v335, %v333
      %v412 = vpack.c.b16 %v336, %v334
      %v413 = vpack.c.b16 %v339, %v337
      %v414 = vpack.c.b16 %v340, %v338
      %v415 = vpack.c.b16 %v343, %v341
      %v416 = vpack.c.b16 %v344, %v342
      %v417 = vpack.c.b16 %v347, %v345
      %v418 = vpack.c.b16 %v348, %v346
      %v419 = vpack.c.b16 %v351, %v349
      %v420 = vpack.c.b16 %v352, %v350
      %v421 = vpack.c.b16 %v355, %v353
      %v422 = vpack.c.b16 %v356, %v354
      %v423 = vpack.c.b16 %v359, %v357
      %v424 = vpack.c.b16 %v360, %v358
      %v425 = vpack.c.b16 %v363, %v361
      %v426 = vpack.c.b16 %v364, %v362
      %v427 = vpack.c.b16 %v367, %v365
      %v428 = vpack.c.b16 %v368, %v366
      %v429 = vpack.c.b16 %v371, %v369
      %v430 = vpack.c.b16 %v372, %v370
      %v431 = vpack.c.b16 %v375, %v373
      %v432 = vpack.c.b16 %v376, %v374
      %v433 = vpack.c.b16 %v379, %v377
      %v434 = vpack.c.b16 %v380, %v378
      %v435 = vpack.c.b16 %v383, %v381
      %v436 = vpack.c.b16 %v384, %v382
      %v437 = vpack.c.b16 %v387, %v385
      %v438 = vpack.c.b16 %v388, %v386
      %v439 = vpack.c.b16 %v391, %v389
      %v440 = vpack.c.b16 %v392, %v390
      %489 = vmatprep.subr.bf16.mxu0 %v394
      %490 = vmatpush1.bf16.msra.mxu0 %v393
      %491 = vmatprep.subr.bf16.mxu0 %v396
      %492 = vmatpush1.bf16.msra.mxu0 %v395
      %493 = vmatprep.subr.bf16.mxu0 %v398
      %494 = vmatpush1.bf16.msra.mxu0 %v397
      %495 = vmatprep.subr.bf16.mxu0 %v400
      %496 = vmatpush1.bf16.msra.mxu0 %v399
      %497 = vmatprep.subr.bf16.mxu0 %v402
      %498 = vmatpush1.bf16.msra.mxu0 %v401
      %499 = vmatprep.subr.bf16.mxu0 %v404
      %500 = vmatpush1.bf16.msra.mxu0 %v403
      %501 = vmatprep.subr.bf16.mxu0 %v406
      %502 = vmatpush1.bf16.msra.mxu0 %v405
      %503 = vmatprep.subr.bf16.mxu0 %v408
      %504 = vmatpush1.bf16.msra.mxu0 %v407
      %505 = vmatprep.subr.bf16.mxu0 %v410
      %506 = vmatpush1.bf16.msra.mxu0 %v409
      %507 = vmatprep.subr.bf16.mxu0 %v412
      %508 = vmatpush1.bf16.msra.mxu0 %v411
      %509 = vmatprep.subr.bf16.mxu0 %v414
      %510 = vmatpush1.bf16.msra.mxu0 %v413
      %511 = vmatprep.subr.bf16.mxu0 %v416
      %512 = vmatpush1.bf16.msra.mxu0 %v415
      %513 = vmatprep.subr.bf16.mxu0 %v418
      %514 = vmatpush1.bf16.msra.mxu0 %v417
      %515 = vmatprep.subr.bf16.mxu0 %v420
      %516 = vmatpush1.bf16.msra.mxu0 %v419
      %517 = vmatprep.subr.bf16.mxu0 %v422
      %518 = vmatpush1.bf16.msra.mxu0 %v421
      %519 = vmatprep.subr.bf16.mxu0 %v424
      %520 = vmatpush1.bf16.msra.mxu0 %v423
      %521 = vmatprep.mubr.bf16.mxu0 %v196
      %522 = vmatmul.mubr.bf16.gmra.mrb[0].mxu0 %v189
      %v523 = vpop.f32.mrb[0].mxu0
      %v524 = vadd.f32 0.0, %v523
      %v525 = vpop.f32.mrb[0].mxu0
      %v526 = vadd.f32 0.0, %v525
      %v527 = vpop.f32.mrb[0].mxu0
      %v528 = vpop.f32.mrb[0].mxu0
      %529 = vdwg.mxu0
      %530 = vmatprep.subr.bf16.mxu0 %v426
      %531 = vmatpush1.bf16.msra.mxu0 %v425
      %532 = vmatprep.subr.bf16.mxu0 %v428
      %533 = vmatpush1.bf16.msra.mxu0 %v427
      %534 = vmatprep.subr.bf16.mxu0 %v430
      %535 = vmatpush1.bf16.msra.mxu0 %v429
      %536 = vmatprep.subr.bf16.mxu0 %v432
      %537 = vmatpush1.bf16.msra.mxu0 %v431
      %538 = vmatprep.subr.bf16.mxu0 %v434
      %539 = vmatpush1.bf16.msra.mxu0 %v433
      %540 = vmatprep.subr.bf16.mxu0 %v436
      %541 = vmatpush1.bf16.msra.mxu0 %v435
      %542 = vmatprep.subr.bf16.mxu0 %v438
      %543 = vmatpush1.bf16.msra.mxu0 %v437
      %544 = vmatprep.subr.bf16.mxu0 %v440
      %545 = vmatpush1.bf16.msra.mxu0 %v439
      %546 = vmatprep.subr.bf16.mxu0 0
      %547 = vmatpush1.bf16.msra.mxu0 0
      %548 = vmatprep.subr.bf16.mxu0 0
      %549 = vmatpush1.bf16.msra.mxu0 0
      %550 = vmatprep.subr.bf16.mxu0 0
      %551 = vmatpush1.bf16.msra.mxu0 0
      %552 = vmatprep.subr.bf16.mxu0 0
      %553 = vmatpush1.bf16.msra.mxu0 0
      %554 = vmatprep.subr.bf16.mxu0 0
      %555 = vmatpush1.bf16.msra.mxu0 0
      %556 = vmatprep.subr.bf16.mxu0 0
      %557 = vmatpush1.bf16.msra.mxu0 0
      %558 = vmatprep.subr.bf16.mxu0 0
      %559 = vmatpush1.bf16.msra.mxu0 0
      %560 = vmatprep.subr.bf16.mxu0 0
      %561 = vmatpush1.bf16.msra.mxu0 0
      %562 = vmatprep.mubr.bf16.mxu0 0
      %563 = vmatmul.mubr.bf16.gmra.mrb[0].mxu0 %v199
      %v564 = vpop.f32.mrb[0].mxu0
      %v565 = vadd.f32 %v524, %v564
      %v566 = vpop.f32.mrb[0].mxu0
      %v567 = vadd.f32 %v526, %v566
      %v568 = vpop.f32.mrb[0].mxu0
      %v569 = vpop.f32.mrb[0].mxu0
      %570 = vdwg.mxu0
      %v571 = vrot.slane %v565, 4
      %v572 = vadd.f32 %v565, %v571
      %v573 = vrot.slane %v572, 2
      %v574 = vadd.f32 %v572, %v573
      %v575 = vrot.slane %v574, 1
      %v576 = vadd.f32 %v574, %v575
      %vm577 = vcmask 64512
      %v578 = vsel %vm577, %v567, 0.0
      %v579 = vrot.slane %v578, 4
      %v580 = vadd.f32 %v578, %v579
      %v581 = vrot.slane %v580, 2
      %v582 = vadd.f32 %v580, %v581
      %v583 = vrot.slane %v582, 1
      %v584 = vadd.f32 %v582, %v583
      %v585 = vmul.f32 %v565, %v565
      %v586 = vmul.f32 %v567, %v567
      %v587 = vrot.slane %v585, 4
      %v588 = vadd.f32 %v585, %v587
      %v589 = vrot.slane %v588, 2
      %v590 = vadd.f32 %v588, %v589
      %v591 = vrot.slane %v590, 1
      %v592 = vadd.f32 %v590, %v591
      %v593 = vsel %vm577, %v586, 0.0
      %v594 = vrot.slane %v593, 4
      %v595 = vadd.f32 %v593, %v594
      %v596 = vrot.slane %v595, 2
      %v597 = vadd.f32 %v595, %v596
      %v598 = vrot.slane %v597, 1
      %v599 = vadd.f32 %v597, %v598
      %v600 = vsel %vm184, %v576, %v592
      %v601 = vsel %vm184, %v584, %v599
      %v604 = vcombine.low %v600, %v601
      %v606 = vunpack.c.l.s4 1983009808
      %v607 = vunpack.c.0.s8 %v606
      %v608 = vlaneseq
      %v609 = vshrl.u32 %v608, 7
      %v610 = vsub.s32 %v607, %v609
      %v611 = vrot.slane %v604, %v610
      %vm613 = vcmask 1041408
      %vm614 = vcmask 60418
      %vm615 = vmor %vm614, %vm613
      %616 = vst.msk [vmem:[%s178] sm:$0xf] %vm615, %v611
      %617 = vst [vmem:[%s173 - $0x1] sm:$0x7e] %v565
      %p618 = scmp.lt.s32.totalorder %s15, 1
      %s619 = scalar_select %p618, %s15, 1
      %s620 = smul.addr %s619, 8
      %s621 = scalar_lea.vmem %s2, %s620
      %p622 = scmp.lt.s32.totalorder %s15, 1
      %s623 = scalar_select %p622, %s15, 1
      %s624 = smul.addr %s623, 2
      %s625 = smul.addr %s624, 2
      %s626 = scalar_lea.vmem %s3, %s625
      // Predicated region
      $region29: #{decoder_forward_pallas.5} parent=27 // pred_check
        %p627 = pneg %p80
      $region30: #{decoder_forward_pallas.5} parent=27 // pred_check_branch
        %629 = sbr.rel (%p627) target = $region32
      $region31: #{decoder_forward_pallas.5} parent=27 // pred_region
        _
      $region32: #{decoder_forward_pallas.5} parent=27 // pred_fallthru
        _
      // Predicated region
      $region33: #{decoder_forward_pallas.5} parent=27 // pred_check
        %p630 = pneg %p106
      $region34: #{decoder_forward_pallas.5} parent=27 // pred_check_branch
        %632 = sbr.rel (%p630) target = $region36
      $region35: #{decoder_forward_pallas.5} parent=27 // pred_region
        _
      $region36: #{decoder_forward_pallas.5} parent=27 // pred_fallthru
        _
    $region28: #{decoder_forward_pallas.5} parent=5 // pred_fallthru
      _
    %p633 = scmp.le.s32.totalorder 2, %s10
    // Predicated region
    $region37: #{decoder_forward_pallas.5} parent=5 // pred_check
      %p634 = pneg %p633
    $region38: #{decoder_forward_pallas.5} parent=5 // pred_check_branch
      %636 = sbr.rel (%p634) target = $region40
    $region39: #{decoder_forward_pallas.5} parent=5 // pred_region
      %s637 = ssub.s32 %s10, 2
      // Predicated region
      $region41: #{decoder_forward_pallas.5} parent=39 // pred_check
        %p638 = pneg %p86
      $region42: #{decoder_forward_pallas.5} parent=39 // pred_check_branch
        %640 = sbr.rel (%p638) target = $region44
      $region43: #{decoder_forward_pallas.5} parent=39 // pred_region
        %p641 = scmp.lt.s32.totalorder %s16, 1
        %s642 = scalar_select %p641, %s16, 1
        %s643 = smul.addr %s642, 8
        %s644 = scalar_lea.vmem %s2, %s643
      $region44: #{decoder_forward_pallas.5} parent=39 // pred_fallthru
        _
      // Predicated region
      $region45: #{decoder_forward_pallas.5} parent=39 // pred_check
        %p645 = pneg %p112
      $region46: #{decoder_forward_pallas.5} parent=39 // pred_check_branch
        %647 = sbr.rel (%p645) target = $region48
      $region47: #{decoder_forward_pallas.5} parent=39 // pred_region
        %p648 = scmp.lt.s32.totalorder %s16, 1
        %s649 = scalar_select %p648, %s16, 1
        %s650 = smul.addr %s649, 2
        %s651 = smul.addr %s650, 2
        %s652 = scalar_lea.vmem %s3, %s651
      $region48: #{decoder_forward_pallas.5} parent=39 // pred_fallthru
        _
    $region40: #{decoder_forward_pallas.5} parent=5 // pred_fallthru
      _
  $region6: #{decoder_forward_pallas.5} parent=0 // loop_footer
    %s14 = sadd.s32 1, %s10
  $region7: #{decoder_forward_pallas.5} parent=0 // loop_footer_branch
    %9 = sbr.rel target = $region3
  $region8: #{decoder_forward_pallas.5} parent=0 // loop_exit
    _

// kernel: decoder_forward_pallas.6
$region0: #{decoder_forward_pallas.6}
  #allocation0 [shape = 'u32[]', space=smem, size = 0x4, offset = 0x4, fixed_abs, tag = 'smem constant byte address 0x4 - core index']
  #allocation1 [shape = 'u32[144,128]{1,0:T(1,128)}', space=vmem, size = 0x12000, scoped, tag = 'internal scratch']
  %s0 = inlined_call_operand.vmem [shape: f32[2,6,128], index: 0, kind: input, shape index: {}]
  %s1 = inlined_call_operand.vmem [shape: f32[2,6,128], index: 1, kind: input, shape index: {}]
  %s2 = inlined_call_operand.vmem [shape: f32[2,128], index: 2, kind: input, shape index: {}]
  %s3 = inlined_call_operand.vmem [shape: bf16[768,128], index: 3, kind: input, shape index: {}]
  %s4 = inlined_call_operand.vmem [shape: f32[2,6,128], index: 4, kind: output, shape index: {0}]
  %s5 = inlined_call_operand.vmem [shape: f32[2,2,128], index: 5, kind: output, shape index: {1}]
  %6 = xla_tuple %s4, %s5
  %s7 = sld [smem:[#allocation0]]
  $region57: #{decoder_forward_pallas.6} parent=0
    _
  %s9 = ssub.s32 1, %s7
  %s10 = scalar_select 0, %s9, %s7
  loop: start=0, step=1, limit=4
  $region2: #{decoder_forward_pallas.6} parent=0 // loop_pre_header
    _
  $region3: #{decoder_forward_pallas.6} parent=0 // loop_header
    %s12 = sphi 0, %s16
    %p13 = scmp.ge.s32.totalorder %s12, 4
    %s22 = sphi 0, %s24
    %s25 = sphi 0, %s22
    %s26 = sphi 0, %s25
    %s42 = sphi 0, %s26
    %s48 = sphi 0, %s50
    %s51 = sphi 0, %s48
    %s52 = sphi 0, %s51
    %s68 = sphi 0, %s52
    %s72 = sphi 0, %s72
    %s74 = sphi 0, %s72
    %s75 = sphi 0, %s74
    %s89 = sphi 0, %s75
    %s93 = sphi 0, %s93
    %s95 = sphi 0, %s93
    %s96 = sphi 0, %s95
    %s110 = sphi 0, %s96
    %s116 = sphi 0, %s118
    %s119 = sphi 0, %s116
    %s120 = sphi 0, %s119
    %s136 = sphi 0, %s120
    %s142 = sphi 0, %s144
    %s145 = sphi 0, %s142
    %s146 = sphi 0, %s145
    %s162 = sphi 0, %s146
  $region4: #{decoder_forward_pallas.6} parent=0 // loop_header_branch
    %15 = sbr.rel (%p13) target = $region8
  $region5: #{decoder_forward_pallas.6} parent=0 // loop_body
    %s17 = ssub.s32 %s12, 1
    %s18 = ssub.s32 %s12, 2
    %s19 = sadd.s32 %s12, 1
    %s20 = ssub.s32 %s12, %s19
    %p21 = scmp.eq.s32.totalorder %s20, 0
    %s23 = sadd.s32 %s22, 1
    %s24 = scalar_select %p21, %s22, %s23
    %p27 = pneg %p21
    %p28 = scmp.eq.s32.totalorder %s12, 1
    %p29 = por %p27, %p28
    %p30 = scmp.ne.s32.totalorder %s22, %s25
    %p31 = scmp.eq.s32.totalorder %s12, 0
    %p32 = por %p30, %p31
    %p33 = scmp.ne.s32.totalorder %s22, %s25
    %p34 = scmp.eq.s32.totalorder %s17, 1
    %p35 = por %p33, %p34
    %p36 = scmp.ne.s32.totalorder %s25, %s26
    %p37 = scmp.eq.s32.totalorder %s17, 0
    %p38 = por %p36, %p37
    %p39 = scmp.ne.s32.totalorder %s25, %s26
    %p40 = scmp.eq.s32.totalorder %s18, 1
    %p41 = por %p39, %p40
    %p43 = scmp.ne.s32.totalorder %s26, %s42
    %p44 = scmp.eq.s32.totalorder %s18, 0
    %p45 = por %p43, %p44
    %s46 = ssub.s32 %s12, %s19
    %p47 = scmp.eq.s32.totalorder %s46, 0
    %s49 = sadd.s32 %s48, 1
    %s50 = scalar_select %p47, %s48, %s49
    %p53 = pneg %p47
    %p54 = scmp.eq.s32.totalorder %s12, 1
    %p55 = por %p53, %p54
    %p56 = scmp.ne.s32.totalorder %s48, %s51
    %p57 = scmp.eq.s32.totalorder %s12, 0
    %p58 = por %p56, %p57
    %p59 = scmp.ne.s32.totalorder %s48, %s51
    %p60 = scmp.eq.s32.totalorder %s17, 1
    %p61 = por %p59, %p60
    %p62 = scmp.ne.s32.totalorder %s51, %s52
    %p63 = scmp.eq.s32.totalorder %s17, 0
    %p64 = por %p62, %p63
    %p65 = scmp.ne.s32.totalorder %s51, %s52
    %p66 = scmp.eq.s32.totalorder %s18, 1
    %p67 = por %p65, %p66
    %p69 = scmp.ne.s32.totalorder %s52, %s68
    %p70 = scmp.eq.s32.totalorder %s18, 0
    %p71 = por %p69, %p70
    %s73 = sadd.s32 %s72, 1
    %p76 = scmp.eq.s32.totalorder %s12, 1
    %p77 = scmp.ne.s32.totalorder %s72, %s74
    %p78 = scmp.eq.s32.totalorder %s12, 0
    %p79 = por %p77, %p78
    %p80 = scmp.ne.s32.totalorder %s72, %s74
    %p81 = scmp.eq.s32.totalorder %s17, 1
    %p82 = por %p80, %p81
    %p83 = scmp.ne.s32.totalorder %s74, %s75
    %p84 = scmp.eq.s32.totalorder %s17, 0
    %p85 = por %p83, %p84
    %p86 = scmp.ne.s32.totalorder %s74, %s75
    %p87 = scmp.eq.s32.totalorder %s18, 1
    %p88 = por %p86, %p87
    %p90 = scmp.ne.s32.totalorder %s75, %s89
    %p91 = scmp.eq.s32.totalorder %s18, 0
    %p92 = por %p90, %p91
    %s94 = sadd.s32 %s93, 1
    %p97 = scmp.eq.s32.totalorder %s12, 1
    %p98 = scmp.ne.s32.totalorder %s93, %s95
    %p99 = scmp.eq.s32.totalorder %s12, 0
    %p100 = por %p98, %p99
    %p101 = scmp.ne.s32.totalorder %s93, %s95
    %p102 = scmp.eq.s32.totalorder %s17, 1
    %p103 = por %p101, %p102
    %p104 = scmp.ne.s32.totalorder %s95, %s96
    %p105 = scmp.eq.s32.totalorder %s17, 0
    %p106 = por %p104, %p105
    %p107 = scmp.ne.s32.totalorder %s95, %s96
    %p108 = scmp.eq.s32.totalorder %s18, 1
    %p109 = por %p107, %p108
    %p111 = scmp.ne.s32.totalorder %s96, %s110
    %p112 = scmp.eq.s32.totalorder %s18, 0
    %p113 = por %p111, %p112
    %s114 = ssub.s32 %s12, %s19
    %p115 = scmp.eq.s32.totalorder %s114, 0
    %s117 = sadd.s32 %s116, 1
    %s118 = scalar_select %p115, %s116, %s117
    %p121 = pneg %p115
    %p122 = scmp.eq.s32.totalorder %s12, 1
    %p123 = por %p121, %p122
    %p124 = scmp.ne.s32.totalorder %s116, %s119
    %p125 = scmp.eq.s32.totalorder %s12, 0
    %p126 = por %p124, %p125
    %p127 = scmp.ne.s32.totalorder %s116, %s119
    %p128 = scmp.eq.s32.totalorder %s17, 1
    %p129 = por %p127, %p128
    %p130 = scmp.ne.s32.totalorder %s119, %s120
    %p131 = scmp.eq.s32.totalorder %s17, 0
    %p132 = por %p130, %p131
    %p133 = scmp.ne.s32.totalorder %s119, %s120
    %p134 = scmp.eq.s32.totalorder %s18, 1
    %p135 = por %p133, %p134
    %p137 = scmp.ne.s32.totalorder %s120, %s136
    %p138 = scmp.eq.s32.totalorder %s18, 0
    %p139 = por %p137, %p138
    %s140 = ssub.s32 %s12, %s19
    %p141 = scmp.eq.s32.totalorder %s140, 0
    %s143 = sadd.s32 %s142, 1
    %s144 = scalar_select %p141, %s142, %s143
    %p147 = pneg %p141
    %p148 = scmp.eq.s32.totalorder %s12, 1
    %p149 = por %p147, %p148
    %p150 = scmp.ne.s32.totalorder %s142, %s145
    %p151 = scmp.eq.s32.totalorder %s12, 0
    %p152 = por %p150, %p151
    %p153 = scmp.ne.s32.totalorder %s142, %s145
    %p154 = scmp.eq.s32.totalorder %s17, 1
    %p155 = por %p153, %p154
    %p156 = scmp.ne.s32.totalorder %s145, %s146
    %p157 = scmp.eq.s32.totalorder %s17, 0
    %p158 = por %p156, %p157
    %p159 = scmp.ne.s32.totalorder %s145, %s146
    %p160 = scmp.eq.s32.totalorder %s18, 1
    %p161 = por %p159, %p160
    %p163 = scmp.ne.s32.totalorder %s146, %s162
    %p164 = scmp.eq.s32.totalorder %s18, 0
    %p165 = por %p163, %p164
    %p166 = scmp.le.s32.totalorder 1, %s12
    %p167 = scmp.lt.s32.totalorder %s12, 3
    %p168 = pnand %p166, %p167
    %p169 = pneg %p168
    // Predicated region
    $region9: #{decoder_forward_pallas.6} parent=5 // pred_check
      _
    $region10: #{decoder_forward_pallas.6} parent=5 // pred_check_branch
      %171 = sbr.rel (%p168) target = $region12
    $region11: #{decoder_forward_pallas.6} parent=5 // pred_region
      %s172 = ssub.s32 %s12, 1
      // Predicated region
      $region13: #{decoder_forward_pallas.6} parent=11 // pred_check
        %p173 = pneg %p85
      $region14: #{decoder_forward_pallas.6} parent=11 // pred_check_branch
        %175 = sbr.rel (%p173) target = $region16
      $region15: #{decoder_forward_pallas.6} parent=11 // pred_region
        _
      $region16: #{decoder_forward_pallas.6} parent=11 // pred_fallthru
        _
      // Predicated region
      $region17: #{decoder_forward_pallas.6} parent=11 // pred_check
        %p176 = pneg %p106
      $region18: #{decoder_forward_pallas.6} parent=11 // pred_check_branch
        %178 = sbr.rel (%p176) target = $region20
      $region19: #{decoder_forward_pallas.6} parent=11 // pred_region
        _
      $region20: #{decoder_forward_pallas.6} parent=11 // pred_fallthru
        _
    $region12: #{decoder_forward_pallas.6} parent=5 // pred_fallthru
      _
    %p179 = scmp.lt.s32.totalorder %s12, 2
    // Predicated region
    $region21: #{decoder_forward_pallas.6} parent=5 // pred_check
      %p180 = pneg %p179
    $region22: #{decoder_forward_pallas.6} parent=5 // pred_check_branch
      %182 = sbr.rel (%p180) target = $region24
    $region23: #{decoder_forward_pallas.6} parent=5 // pred_region
      // Predicated region
      $region25: #{decoder_forward_pallas.6} parent=23 // pred_check
        %p183 = pneg %p32
      $region26: #{decoder_forward_pallas.6} parent=23 // pred_check_branch
        %185 = sbr.rel (%p183) target = $region28
      $region27: #{decoder_forward_pallas.6} parent=23 // pred_region
        %p186 = scmp.lt.s32.totalorder %s12, 1
        %s187 = scalar_select %p186, %s12, 1
        %s188 = smul.addr %s187, 8
        %s189 = scalar_lea.vmem %s0, %s188
      $region28: #{decoder_forward_pallas.6} parent=23 // pred_fallthru
        _
      // Predicated region
      $region29: #{decoder_forward_pallas.6} parent=23 // pred_check
        %p190 = pneg %p58
      $region30: #{decoder_forward_pallas.6} parent=23 // pred_check_branch
        %192 = sbr.rel (%p190) target = $region32
      $region31: #{decoder_forward_pallas.6} parent=23 // pred_region
        %p193 = scmp.lt.s32.totalorder %s12, 1
        %s194 = scalar_select %p193, %s12, 1
        %s195 = smul.addr %s194, 8
        %s196 = scalar_lea.vmem %s1, %s195
      $region32: #{decoder_forward_pallas.6} parent=23 // pred_fallthru
        _
    $region24: #{decoder_forward_pallas.6} parent=5 // pred_fallthru
      _
    %p197 = scmp.le.s32.totalorder 1, %s12
    %p198 = scmp.lt.s32.totalorder %s12, 3
    %p199 = pnand %p197, %p198
    %p200 = pneg %p199
    // Predicated region
    $region33: #{decoder_forward_pallas.6} parent=5 // pred_check
      _
    $region34: #{decoder_forward_pallas.6} parent=5 // pred_check_branch
      %202 = sbr.rel (%p199) target = $region36
    $region35: #{decoder_forward_pallas.6} parent=5 // pred_region
      %s203 = ssub.s32 %s12, 1
      %p204 = scmp.lt.s32.totalorder %s17, 1
      %s205 = scalar_select %p204, %s17, 1
      %s206 = smul.addr %s205, 8
      %s207 = scalar_lea.vmem %s0, %s206
      %p208 = pneg %p38
      %p209 = pneg %p35
      %p210 = scmp.lt.s32.totalorder %s17, 1
      %s211 = scalar_select %p210, %s17, 1
      %s212 = smul.addr %s211, 8
      %s213 = scalar_lea.vmem %s1, %s212
      %p214 = pneg %p64
      %p215 = pneg %p61
      %p216 = pneg %p85
      %p217 = pneg %p82
      %p218 = pneg %p106
      %p219 = pneg %p103
      %p220 = pneg %p132
      %p221 = pneg %p129
      %p222 = scmp.lt.s32.totalorder %s17, 1
      %s223 = scalar_select %p222, %s17, 1
      %s224 = smul.addr %s223, 8
      %s225 = scalar_lea.vmem %s4, %s224
      %p226 = pneg %p158
      %p227 = pneg %p155
      %p228 = scmp.lt.s32.totalorder %s17, 1
      %s229 = scalar_select %p228, %s17, 1
      %s230 = smul.addr %s229, 2
      %s231 = scalar_lea.vmem %s5, %s230
      %p232 = scmp.lt.s32.totalorder %s17, 1
      %s233 = scalar_select %p232, %s17, 1
      %s234 = smul.addr %s233, 8
      %s235 = scalar_lea.vmem %s0, %s234
      %p236 = scmp.lt.s32.totalorder %s17, 1
      %s237 = scalar_select %p236, %s17, 1
      %s238 = smul.addr %s237, 8
      %s239 = scalar_lea.vmem %s1, %s238
      %p240 = scmp.lt.s32.totalorder %s17, 1
      %s241 = scalar_select %p240, %s17, 1
      %s242 = smul.addr %s241, 8
      %s243 = scalar_lea.vmem %s4, %s242
      %p244 = scmp.lt.s32.totalorder %s17, 1
      %s245 = scalar_select %p244, %s17, 1
      %s246 = smul.addr %s245, 2
      %s247 = scalar_lea.vmem %s5, %s246
      %v249 = vld [vmem:[%s2] sm:$0x3]
      %v250 = vld [vmem:[%s235] sm:$0x3f]
      %v251 = vlaneseq
      %v252 = vshrl.u32 %v251, 7
      %v253 = vsub.s32 0, %v252
      %v254 = vrot.slane %v249, %v253
      %v255 = vmul.f32 %v250, %v254
      %v256 = vlaneseq
      %v257 = vshrl.u32 %v256, 7
      %v258 = vsub.s32 1, %v257
      %v259 = vrot.slane %v249, %v258
      %v260 = vadd.f32 %v255, %v259
      %v261 = vmax.f32 %v260, 0.0
      %v262 = vpack.c.bf16 %v261, %v261
      %v263 = vld [vmem:[%s239] sm:$0x3f]
      %v264 = vpack.c.bf16 %v263, %v263
      %v266 = vshrl.u32 %v262, 16
      %v268 = vrot.slane %v266, 7
      %v269 = vshll.u32 %v262, 16
      %v271 = vor.u32 %v268, %v269
      %vm273 = vcmask 1040384
      %vm274 = vsmask.f32 256
      %vm275 = vmand %vm273, %vm274
      %v276 = vsel %vm275, 0, %v271
      %vm277 = vcmask 1043456
      %vm278 = vsmask.f32 3328
      %vm279 = vmand %vm277, %vm278
      %v280 = vsel %vm279, %v276, 0
      %v282 = vshrl.u32 %v264, 16
      %v284 = vrot.slane %v282, 7
      %v285 = vshll.u32 %v264, 16
      %v287 = vor.u32 %v284, %v285
      %v289 = vsel %vm275, 0, %v287
      %v290 = vsel %vm279, %v289, 0
      %v292 = vshrl.u32 %v280, 16
      %v294 = vshll.u32 %v280, 16
      %v296 = vrot.slane %v294, 1
      %v297 = vor.u32 %v292, %v296
      %v300 = vshrl.u32 %v290, 16
      %v302 = vshll.u32 %v290, 16
      %v304 = vrot.slane %v302, 1
      %v305 = vor.u32 %v300, %v304
      %v308 = vrot.slane %v280, 1
      %v311 = vrot.slane %v290, 1
      %v313 = vld [vmem:[%s3] sm:$0xf]
      %v314 = vld [vmem:[%s3 + $0x4] sm:$0xf]
      %v315 = vld [vmem:[%s3 + $0x8] sm:$0xf]
      %v316 = vld [vmem:[%s3 + $0xc] sm:$0xf]
      %v317 = vld [vmem:[%s3 + $0x10] sm:$0xf]
      %v318 = vld [vmem:[%s3 + $0x14] sm:$0xf]
      %v319 = vld [vmem:[%s3 + $0x18] sm:$0xf]
      %v320 = vld [vmem:[%s3 + $0x1c] sm:$0xf]
      %v321 = vld [vmem:[%s3 + $0x20] sm:$0xf]
      %v322 = vld [vmem:[%s3 + $0x24] sm:$0xf]
      %v323 = vld [vmem:[%s3 + $0x28] sm:$0xf]
      %v324 = vld [vmem:[%s3 + $0x2c] sm:$0xf]
      %v325 = vld [vmem:[%s3 + $0x30] sm:$0xf]
      %v326 = vld [vmem:[%s3 + $0x34] sm:$0xf]
      %v327 = vld [vmem:[%s3 + $0x38] sm:$0xf]
      %v328 = vld [vmem:[%s3 + $0x3c] sm:$0xf]
      %v329 = vld [vmem:[%s3 + $0x40] sm:$0xf]
      %v330 = vld [vmem:[%s3 + $0x44] sm:$0xf]
      %v331 = vld [vmem:[%s3 + $0x48] sm:$0xf]
      %v332 = vld [vmem:[%s3 + $0x4c] sm:$0xf]
      %v333 = vld [vmem:[%s3 + $0x50] sm:$0xf]
      %v334 = vld [vmem:[%s3 + $0x54] sm:$0xf]
      %v335 = vld [vmem:[%s3 + $0x58] sm:$0xf]
      %v336 = vld [vmem:[%s3 + $0x5c] sm:$0xf]
      %v337 = vld [vmem:[%s3 + $0x60] sm:$0xf]
      %v338 = vld [vmem:[%s3 + $0x64] sm:$0xf]
      %v339 = vld [vmem:[%s3 + $0x68] sm:$0xf]
      %v340 = vld [vmem:[%s3 + $0x6c] sm:$0xf]
      %v341 = vld [vmem:[%s3 + $0x70] sm:$0xf]
      %v342 = vld [vmem:[%s3 + $0x74] sm:$0xf]
      %v343 = vld [vmem:[%s3 + $0x78] sm:$0xf]
      %v344 = vld [vmem:[%s3 + $0x7c] sm:$0xf]
      %v345 = vld [vmem:[%s3 + $0x80] sm:$0xf]
      %v346 = vld [vmem:[%s3 + $0x84] sm:$0xf]
      %v347 = vld [vmem:[%s3 + $0x88] sm:$0xf]
      %v348 = vld [vmem:[%s3 + $0x8c] sm:$0xf]
      %v349 = vld [vmem:[%s3 + $0x90] sm:$0xf]
      %v350 = vld [vmem:[%s3 + $0x94] sm:$0xf]
      %v351 = vld [vmem:[%s3 + $0x98] sm:$0xf]
      %v352 = vld [vmem:[%s3 + $0x9c] sm:$0xf]
      %v353 = vld [vmem:[%s3 + $0xa0] sm:$0xf]
      %v354 = vld [vmem:[%s3 + $0xa4] sm:$0xf]
      %v355 = vld [vmem:[%s3 + $0xa8] sm:$0xf]
      %v356 = vld [vmem:[%s3 + $0xac] sm:$0xf]
      %v357 = vld [vmem:[%s3 + $0xb0] sm:$0xf]
      %v358 = vld [vmem:[%s3 + $0xb4] sm:$0xf]
      %v359 = vld [vmem:[%s3 + $0xb8] sm:$0xf]
      %v360 = vld [vmem:[%s3 + $0xbc] sm:$0xf]
      %v361 = vld [vmem:[%s3 + $0xc0] sm:$0xf]
      %v362 = vld [vmem:[%s3 + $0xc4] sm:$0xf]
      %v363 = vld [vmem:[%s3 + $0xc8] sm:$0xf]
      %v364 = vld [vmem:[%s3 + $0xcc] sm:$0xf]
      %v365 = vld [vmem:[%s3 + $0xd0] sm:$0xf]
      %v366 = vld [vmem:[%s3 + $0xd4] sm:$0xf]
      %v367 = vld [vmem:[%s3 + $0xd8] sm:$0xf]
      %v368 = vld [vmem:[%s3 + $0xdc] sm:$0xf]
      %v369 = vld [vmem:[%s3 + $0xe0] sm:$0xf]
      %v370 = vld [vmem:[%s3 + $0xe4] sm:$0xf]
      %v371 = vld [vmem:[%s3 + $0xe8] sm:$0xf]
      %v372 = vld [vmem:[%s3 + $0xec] sm:$0xf]
      %v373 = vld [vmem:[%s3 + $0xf0] sm:$0xf]
      %v374 = vld [vmem:[%s3 + $0xf4] sm:$0xf]
      %v375 = vld [vmem:[%s3 + $0xf8] sm:$0xf]
      %v376 = vld [vmem:[%s3 + $0xfc] sm:$0xf]
      %v377 = vld [vmem:[%s3 + $0x100] sm:$0xf]
      %v378 = vld [vmem:[%s3 + $0x104] sm:$0xf]
      %v379 = vld [vmem:[%s3 + $0x108] sm:$0xf]
      %v380 = vld [vmem:[%s3 + $0x10c] sm:$0xf]
      %v381 = vld [vmem:[%s3 + $0x110] sm:$0xf]
      %v382 = vld [vmem:[%s3 + $0x114] sm:$0xf]
      %v383 = vld [vmem:[%s3 + $0x118] sm:$0xf]
      %v384 = vld [vmem:[%s3 + $0x11c] sm:$0xf]
      %v385 = vld [vmem:[%s3 + $0x120] sm:$0xf]
      %v386 = vld [vmem:[%s3 + $0x124] sm:$0xf]
      %v387 = vld [vmem:[%s3 + $0x128] sm:$0xf]
      %v388 = vld [vmem:[%s3 + $0x12c] sm:$0xf]
      %v389 = vld [vmem:[%s3 + $0x130] sm:$0xf]
      %v390 = vld [vmem:[%s3 + $0x134] sm:$0xf]
      %v391 = vld [vmem:[%s3 + $0x138] sm:$0xf]
      %v392 = vld [vmem:[%s3 + $0x13c] sm:$0xf]
      %v393 = vld [vmem:[%s3 + $0x140] sm:$0xf]
      %v394 = vld [vmem:[%s3 + $0x144] sm:$0xf]
      %v395 = vld [vmem:[%s3 + $0x148] sm:$0xf]
      %v396 = vld [vmem:[%s3 + $0x14c] sm:$0xf]
      %v397 = vld [vmem:[%s3 + $0x150] sm:$0xf]
      %v398 = vld [vmem:[%s3 + $0x154] sm:$0xf]
      %v399 = vld [vmem:[%s3 + $0x158] sm:$0xf]
      %v400 = vld [vmem:[%s3 + $0x15c] sm:$0xf]
      %v401 = vld [vmem:[%s3 + $0x160] sm:$0xf]
      %v402 = vld [vmem:[%s3 + $0x164] sm:$0xf]
      %v403 = vld [vmem:[%s3 + $0x168] sm:$0xf]
      %v404 = vld [vmem:[%s3 + $0x16c] sm:$0xf]
      %v405 = vld [vmem:[%s3 + $0x170] sm:$0xf]
      %v406 = vld [vmem:[%s3 + $0x174] sm:$0xf]
      %v407 = vld [vmem:[%s3 + $0x178] sm:$0xf]
      %v408 = vld [vmem:[%s3 + $0x17c] sm:$0xf]
      %v505 = vunpack.c.l.b16 %v313
      %v506 = vunpack.c.l.b16 %v314
      %v507 = vunpack.c.l.b16 %v315
      %v508 = vunpack.c.l.b16 %v316
      %v509 = vunpack.c.l.b16 %v317
      %v510 = vunpack.c.l.b16 %v318
      %v511 = vunpack.c.l.b16 %v319
      %v512 = vunpack.c.l.b16 %v320
      %v513 = vunpack.c.l.b16 %v321
      %v514 = vunpack.c.l.b16 %v322
      %v515 = vunpack.c.l.b16 %v323
      %v516 = vunpack.c.l.b16 %v324
      %v517 = vunpack.c.l.b16 %v325
      %v518 = vunpack.c.l.b16 %v326
      %v519 = vunpack.c.l.b16 %v327
      %v520 = vunpack.c.l.b16 %v328
      %v521 = vunpack.c.l.b16 %v329
      %v522 = vunpack.c.l.b16 %v330
      %v523 = vunpack.c.l.b16 %v331
      %v524 = vunpack.c.l.b16 %v332
      %v525 = vunpack.c.l.b16 %v333
      %v526 = vunpack.c.l.b16 %v334
      %v527 = vunpack.c.l.b16 %v335
      %v528 = vunpack.c.l.b16 %v336
      %v529 = vunpack.c.l.b16 %v337
      %v530 = vunpack.c.l.b16 %v338
      %v531 = vunpack.c.l.b16 %v339
      %v532 = vunpack.c.l.b16 %v340
      %v533 = vunpack.c.l.b16 %v341
      %v534 = vunpack.c.l.b16 %v342
      %v535 = vunpack.c.l.b16 %v343
      %v536 = vunpack.c.l.b16 %v344
      %v537 = vunpack.c.l.b16 %v345
      %v538 = vunpack.c.l.b16 %v346
      %v539 = vunpack.c.l.b16 %v347
      %v540 = vunpack.c.l.b16 %v348
      %v541 = vunpack.c.l.b16 %v349
      %v542 = vunpack.c.l.b16 %v350
      %v543 = vunpack.c.l.b16 %v351
      %v544 = vunpack.c.l.b16 %v352
      %v545 = vunpack.c.l.b16 %v353
      %v546 = vunpack.c.l.b16 %v354
      %v547 = vunpack.c.l.b16 %v355
      %v548 = vunpack.c.l.b16 %v356
      %v549 = vunpack.c.l.b16 %v357
      %v550 = vunpack.c.l.b16 %v358
      %v551 = vunpack.c.l.b16 %v359
      %v552 = vunpack.c.l.b16 %v360
      %v553 = vunpack.c.l.b16 %v361
      %v554 = vunpack.c.l.b16 %v362
      %v555 = vunpack.c.l.b16 %v363
      %v556 = vunpack.c.l.b16 %v364
      %v557 = vunpack.c.l.b16 %v365
      %v558 = vunpack.c.l.b16 %v366
      %v559 = vunpack.c.l.b16 %v367
      %v560 = vunpack.c.l.b16 %v368
      %v561 = vunpack.c.l.b16 %v369
      %v562 = vunpack.c.l.b16 %v370
      %v563 = vunpack.c.l.b16 %v371
      %v564 = vunpack.c.l.b16 %v372
      %v565 = vunpack.c.l.b16 %v373
      %v566 = vunpack.c.l.b16 %v374
      %v567 = vunpack.c.l.b16 %v375
      %v568 = vunpack.c.l.b16 %v376
      %v569 = vunpack.c.l.b16 %v377
      %v570 = vunpack.c.l.b16 %v378
      %v571 = vunpack.c.l.b16 %v379
      %v572 = vunpack.c.l.b16 %v380
      %v573 = vunpack.c.l.b16 %v381
      %v574 = vunpack.c.l.b16 %v382
      %v575 = vunpack.c.l.b16 %v383
      %v576 = vunpack.c.l.b16 %v384
      %v577 = vunpack.c.l.b16 %v385
      %v578 = vunpack.c.l.b16 %v386
      %v579 = vunpack.c.l.b16 %v387
      %v580 = vunpack.c.l.b16 %v388
      %v581 = vunpack.c.l.b16 %v389
      %v582 = vunpack.c.l.b16 %v390
      %v583 = vunpack.c.l.b16 %v391
      %v584 = vunpack.c.l.b16 %v392
      %v585 = vunpack.c.l.b16 %v393
      %v586 = vunpack.c.l.b16 %v394
      %v587 = vunpack.c.l.b16 %v395
      %v588 = vunpack.c.l.b16 %v396
      %v589 = vunpack.c.l.b16 %v397
      %v590 = vunpack.c.l.b16 %v398
      %v591 = vunpack.c.l.b16 %v399
      %v592 = vunpack.c.l.b16 %v400
      %v593 = vunpack.c.l.b16 %v401
      %v594 = vunpack.c.l.b16 %v402
      %v595 = vunpack.c.l.b16 %v403
      %v596 = vunpack.c.l.b16 %v404
      %v597 = vunpack.c.l.b16 %v405
      %v598 = vunpack.c.l.b16 %v406
      %v599 = vunpack.c.l.b16 %v407
      %v600 = vunpack.c.l.b16 %v408
      %v601 = vpack.c.b16 %v506, %v505
      %v602 = vpack.c.b16 %v508, %v507
      %v603 = vpack.c.b16 %v510, %v509
      %v604 = vpack.c.b16 %v512, %v511
      %v605 = vpack.c.b16 %v514, %v513
      %v606 = vpack.c.b16 %v516, %v515
      %v607 = vpack.c.b16 %v518, %v517
      %v608 = vpack.c.b16 %v520, %v519
      %v609 = vpack.c.b16 %v522, %v521
      %v610 = vpack.c.b16 %v524, %v523
      %v611 = vpack.c.b16 %v526, %v525
      %v612 = vpack.c.b16 %v528, %v527
      %v613 = vpack.c.b16 %v530, %v529
      %v614 = vpack.c.b16 %v532, %v531
      %v615 = vpack.c.b16 %v534, %v533
      %v616 = vpack.c.b16 %v536, %v535
      %v617 = vpack.c.b16 %v538, %v537
      %v618 = vpack.c.b16 %v540, %v539
      %v619 = vpack.c.b16 %v542, %v541
      %v620 = vpack.c.b16 %v544, %v543
      %v621 = vpack.c.b16 %v546, %v545
      %v622 = vpack.c.b16 %v548, %v547
      %v623 = vpack.c.b16 %v550, %v549
      %v624 = vpack.c.b16 %v552, %v551
      %v625 = vpack.c.b16 %v554, %v553
      %v626 = vpack.c.b16 %v556, %v555
      %v627 = vpack.c.b16 %v558, %v557
      %v628 = vpack.c.b16 %v560, %v559
      %v629 = vpack.c.b16 %v562, %v561
      %v630 = vpack.c.b16 %v564, %v563
      %v631 = vpack.c.b16 %v566, %v565
      %v632 = vpack.c.b16 %v568, %v567
      %v633 = vpack.c.b16 %v570, %v569
      %v634 = vpack.c.b16 %v572, %v571
      %v635 = vpack.c.b16 %v574, %v573
      %v636 = vpack.c.b16 %v576, %v575
      %v637 = vpack.c.b16 %v578, %v577
      %v638 = vpack.c.b16 %v580, %v579
      %v639 = vpack.c.b16 %v582, %v581
      %v640 = vpack.c.b16 %v584, %v583
      %v641 = vpack.c.b16 %v586, %v585
      %v642 = vpack.c.b16 %v588, %v587
      %v643 = vpack.c.b16 %v590, %v589
      %v644 = vpack.c.b16 %v592, %v591
      %v645 = vpack.c.b16 %v594, %v593
      %v646 = vpack.c.b16 %v596, %v595
      %v647 = vpack.c.b16 %v598, %v597
      %v648 = vpack.c.b16 %v600, %v599
      %697 = vmatprep.subr.bf16.mxu0 0
      %698 = vmatpush1.bf16.msra.mxu0 %v601
      %699 = vmatprep.subr.bf16.mxu0 0
      %700 = vmatpush1.bf16.msra.mxu0 %v602
      %701 = vmatprep.subr.bf16.mxu0 0
      %702 = vmatpush1.bf16.msra.mxu0 %v603
      %703 = vmatprep.subr.bf16.mxu0 0
      %704 = vmatpush1.bf16.msra.mxu0 %v604
      %705 = vmatprep.subr.bf16.mxu0 0
      %706 = vmatpush1.bf16.msra.mxu0 %v605
      %707 = vmatprep.subr.bf16.mxu0 0
      %708 = vmatpush1.bf16.msra.mxu0 %v606
      %709 = vmatprep.subr.bf16.mxu0 0
      %710 = vmatpush1.bf16.msra.mxu0 %v607
      %711 = vmatprep.subr.bf16.mxu0 0
      %712 = vmatpush1.bf16.msra.mxu0 %v608
      %713 = vmatprep.subr.bf16.mxu0 0
      %714 = vmatpush1.bf16.msra.mxu0 %v609
      %715 = vmatprep.subr.bf16.mxu0 0
      %716 = vmatpush1.bf16.msra.mxu0 %v610
      %717 = vmatprep.subr.bf16.mxu0 0
      %718 = vmatpush1.bf16.msra.mxu0 %v611
      %719 = vmatprep.subr.bf16.mxu0 0
      %720 = vmatpush1.bf16.msra.mxu0 %v612
      %721 = vmatprep.subr.bf16.mxu0 0
      %722 = vmatpush1.bf16.msra.mxu0 %v613
      %723 = vmatprep.subr.bf16.mxu0 0
      %724 = vmatpush1.bf16.msra.mxu0 %v614
      %725 = vmatprep.subr.bf16.mxu0 0
      %726 = vmatpush1.bf16.msra.mxu0 %v615
      %727 = vmatprep.subr.bf16.mxu0 0
      %728 = vmatpush1.bf16.msra.mxu0 %v616
      %729 = vmatprep.mubr.bf16.mxu0 %v290
      %730 = vmatmul.mubr.bf16.gmra.mrb[0].mxu0 %v280
      %v731 = vpop.f32.mrb[0].mxu0
      %v732 = vadd.f32 0.0, %v731
      %v733 = vpop.f32.mrb[0].mxu0
      %v734 = vpop.f32.mrb[0].mxu0
      %v735 = vpop.f32.mrb[0].mxu0
      %736 = vdwg.mxu0
      %737 = vmatprep.subr.bf16.mxu0 0
      %738 = vmatpush1.bf16.msra.mxu0 %v617
      %739 = vmatprep.subr.bf16.mxu0 0
      %740 = vmatpush1.bf16.msra.mxu0 %v618
      %741 = vmatprep.subr.bf16.mxu0 0
      %742 = vmatpush1.bf16.msra.mxu0 %v619
      %743 = vmatprep.subr.bf16.mxu0 0
      %744 = vmatpush1.bf16.msra.mxu0 %v620
      %745 = vmatprep.subr.bf16.mxu0 0
      %746 = vmatpush1.bf16.msra.mxu0 %v621
      %747 = vmatprep.subr.bf16.mxu0 0
      %748 = vmatpush1.bf16.msra.mxu0 %v622
      %749 = vmatprep.subr.bf16.mxu0 0
      %750 = vmatpush1.bf16.msra.mxu0 %v623
      %751 = vmatprep.subr.bf16.mxu0 0
      %752 = vmatpush1.bf16.msra.mxu0 %v624
      %753 = vmatprep.subr.bf16.mxu0 0
      %754 = vmatpush1.bf16.msra.mxu0 %v625
      %755 = vmatprep.subr.bf16.mxu0 0
      %756 = vmatpush1.bf16.msra.mxu0 %v626
      %757 = vmatprep.subr.bf16.mxu0 0
      %758 = vmatpush1.bf16.msra.mxu0 %v627
      %759 = vmatprep.subr.bf16.mxu0 0
      %760 = vmatpush1.bf16.msra.mxu0 %v628
      %761 = vmatprep.subr.bf16.mxu0 0
      %762 = vmatpush1.bf16.msra.mxu0 %v629
      %763 = vmatprep.subr.bf16.mxu0 0
      %764 = vmatpush1.bf16.msra.mxu0 %v630
      %765 = vmatprep.subr.bf16.mxu0 0
      %766 = vmatpush1.bf16.msra.mxu0 %v631
      %767 = vmatprep.subr.bf16.mxu0 0
      %768 = vmatpush1.bf16.msra.mxu0 %v632
      %769 = vmatprep.mubr.bf16.mxu0 %v305
      %770 = vmatmul.mubr.bf16.gmra.mrb[0].mxu0 %v297
      %v771 = vpop.f32.mrb[0].mxu0
      %v772 = vadd.f32 %v732, %v771
      %v773 = vpop.f32.mrb[0].mxu0
      %v774 = vpop.f32.mrb[0].mxu0
      %v775 = vpop.f32.mrb[0].mxu0
      %776 = vdwg.mxu0
      %777 = vmatprep.subr.bf16.mxu0 0
      %778 = vmatpush1.bf16.msra.mxu0 %v633
      %779 = vmatprep.subr.bf16.mxu0 0
      %780 = vmatpush1.bf16.msra.mxu0 %v634
      %781 = vmatprep.subr.bf16.mxu0 0
      %782 = vmatpush1.bf16.msra.mxu0 %v635
      %783 = vmatprep.subr.bf16.mxu0 0
      %784 = vmatpush1.bf16.msra.mxu0 %v636
      %785 = vmatprep.subr.bf16.mxu0 0
      %786 = vmatpush1.bf16.msra.mxu0 %v637
      %787 = vmatprep.subr.bf16.mxu0 0
      %788 = vmatpush1.bf16.msra.mxu0 %v638
      %789 = vmatprep.subr.bf16.mxu0 0
      %790 = vmatpush1.bf16.msra.mxu0 %v639
      %791 = vmatprep.subr.bf16.mxu0 0
      %792 = vmatpush1.bf16.msra.mxu0 %v640
      %793 = vmatprep.subr.bf16.mxu0 0
      %794 = vmatpush1.bf16.msra.mxu0 %v641
      %795 = vmatprep.subr.bf16.mxu0 0
      %796 = vmatpush1.bf16.msra.mxu0 %v642
      %797 = vmatprep.subr.bf16.mxu0 0
      %798 = vmatpush1.bf16.msra.mxu0 %v643
      %799 = vmatprep.subr.bf16.mxu0 0
      %800 = vmatpush1.bf16.msra.mxu0 %v644
      %801 = vmatprep.subr.bf16.mxu0 0
      %802 = vmatpush1.bf16.msra.mxu0 %v645
      %803 = vmatprep.subr.bf16.mxu0 0
      %804 = vmatpush1.bf16.msra.mxu0 %v646
      %805 = vmatprep.subr.bf16.mxu0 0
      %806 = vmatpush1.bf16.msra.mxu0 %v647
      %807 = vmatprep.subr.bf16.mxu0 0
      %808 = vmatpush1.bf16.msra.mxu0 %v648
      %809 = vmatprep.mubr.bf16.mxu0 %v311
      %810 = vmatmul.mubr.bf16.gmra.mrb[0].mxu0 %v308
      %v811 = vpop.f32.mrb[0].mxu0
      %v812 = vadd.f32 %v772, %v811
      %v813 = vpop.f32.mrb[0].mxu0
      %v814 = vpop.f32.mrb[0].mxu0
      %v815 = vpop.f32.mrb[0].mxu0
      %816 = vdwg.mxu0
      %vm817 = vcmask 1045504
      %v818 = vsel %vm817, %v812, 0.0
      %v819 = vrot.slane %v818, 4
      %v820 = vadd.f32 %v818, %v819
      %v821 = vrot.slane %v820, 2
      %v822 = vadd.f32 %v820, %v821
      %v823 = vrot.slane %v822, 1
      %v824 = vadd.f32 %v822, %v823
      %v825 = vmul.f32 %v812, %v812
      %v826 = vsel %vm817, %v825, 0.0
      %v827 = vrot.slane %v826, 4
      %v828 = vadd.f32 %v826, %v827
      %v829 = vrot.slane %v828, 2
      %v830 = vadd.f32 %v828, %v829
      %v831 = vrot.slane %v830, 1
      %v832 = vadd.f32 %v830, %v831
      %vm833 = vcmask 1040384
      %v834 = vsel %vm833, %v824, %v832
      %835 = vst [vmem:[%s247] sm:$0x3] %v834
      %836 = vst [vmem:[%s243] sm:$0x3f] %v812
      %p837 = scmp.lt.s32.totalorder %s17, 1
      %s838 = scalar_select %p837, %s17, 1
      %s839 = smul.addr %s838, 8
      %s840 = scalar_lea.vmem %s4, %s839
      %p841 = scmp.lt.s32.totalorder %s17, 1
      %s842 = scalar_select %p841, %s17, 1
      %s843 = smul.addr %s842, 2
      %s844 = scalar_lea.vmem %s5, %s843
      // Predicated region
      $region37: #{decoder_forward_pallas.6} parent=35 // pred_check
        %p845 = pneg %p129
      $region38: #{decoder_forward_pallas.6} parent=35 // pred_check_branch
        %847 = sbr.rel (%p845) target = $region40
      $region39: #{decoder_forward_pallas.6} parent=35 // pred_region
        _
      $region40: #{decoder_forward_pallas.6} parent=35 // pred_fallthru
        _
      // Predicated region
      $region41: #{decoder_forward_pallas.6} parent=35 // pred_check
        %p848 = pneg %p155
      $region42: #{decoder_forward_pallas.6} parent=35 // pred_check_branch
        %850 = sbr.rel (%p848) target = $region44
      $region43: #{decoder_forward_pallas.6} parent=35 // pred_region
        _
      $region44: #{decoder_forward_pallas.6} parent=35 // pred_fallthru
        _
    $region36: #{decoder_forward_pallas.6} parent=5 // pred_fallthru
      _
    %p851 = scmp.le.s32.totalorder 2, %s12
    // Predicated region
    $region45: #{decoder_forward_pallas.6} parent=5 // pred_check
      %p852 = pneg %p851
    $region46: #{decoder_forward_pallas.6} parent=5 // pred_check_branch
      %854 = sbr.rel (%p852) target = $region48
    $region47: #{decoder_forward_pallas.6} parent=5 // pred_region
      %s855 = ssub.s32 %s12, 2
      // Predicated region
      $region49: #{decoder_forward_pallas.6} parent=47 // pred_check
        %p856 = pneg %p135
      $region50: #{decoder_forward_pallas.6} parent=47 // pred_check_branch
        %858 = sbr.rel (%p856) target = $region52
      $region51: #{decoder_forward_pallas.6} parent=47 // pred_region
        %p859 = scmp.lt.s32.totalorder %s18, 1
        %s860 = scalar_select %p859, %s18, 1
        %s861 = smul.addr %s860, 8
        %s862 = scalar_lea.vmem %s4, %s861
      $region52: #{decoder_forward_pallas.6} parent=47 // pred_fallthru
        _
      // Predicated region
      $region53: #{decoder_forward_pallas.6} parent=47 // pred_check
        %p863 = pneg %p161
      $region54: #{decoder_forward_pallas.6} parent=47 // pred_check_branch
        %865 = sbr.rel (%p863) target = $region56
      $region55: #{decoder_forward_pallas.6} parent=47 // pred_region
        %p866 = scmp.lt.s32.totalorder %s18, 1
        %s867 = scalar_select %p866, %s18, 1
        %s868 = smul.addr %s867, 2
        %s869 = scalar_lea.vmem %s5, %s868
      $region56: #{decoder_forward_pallas.6} parent=47 // pred_fallthru
        _
    $region48: #{decoder_forward_pallas.6} parent=5 // pred_fallthru
      _
  $region6: #{decoder_forward_pallas.6} parent=0 // loop_footer
    %s16 = sadd.s32 1, %s12
  $region7: #{decoder_forward_pallas.6} parent=0 // loop_footer_branch
    %11 = sbr.rel target = $region3
  $region8: #{decoder_forward_pallas.6} parent=0 // loop_exit
    _

// kernel: tile.34
$region0: #{tile.34}
  %s0 = inlined_call_operand.vmem [shape: f32[2,32,4], index: 0, kind: input, shape index: {}]
  %s1 = inlined_call_operand.vmem [shape: f32[2,128], index: 1, kind: output, shape index: {}]
  $region1: #{tile.34} parent=0
    #allocation0 [shape = 'u8[4096]{0}', space=vmem, size = 0x1000, scoped, tag = 'scoped mem for output reshape']
    %v2 = vld [vmem:[%s0] sm:$0x1]
    %s3 = scalar_lea.vmem %s0, 31
    %v4 = vld [vmem:[%s3] sm:$0x2]
    %vm5 = vcmask 1041409
    %v6 = vsel %vm5, %v4, %v2
    %vm7 = vcmask 31744
    %8 = vst.msk [vmem:[#allocation0] sm:$0x3] %vm7, %v6
    %s9 = scalar_lea.vmem %s0, 31
    %v10 = vld [vmem:[%s9] sm:$0x1]
    %s11 = scalar_lea.vmem %s0, 62
    %v12 = vld [vmem:[%s11] sm:$0x2]
    %vm13 = vcmask 1041409
    %v14 = vsel %vm13, %v12, %v10
    %15 = vrot.lane.b32.xlu0 %v14, 124
    %v16 = vpop.permute.xlu0 %15
    %vm17 = vcmask 1048544
    %18 = vst.msk [vmem:[#allocation0] sm:$0x3] %vm17, %v16
    %s19 = scalar_lea.vmem %s0, 30
    %v20 = vld [vmem:[%s19] sm:$0x1]
    %s21 = scalar_lea.vmem %s0, 61
    %v22 = vld [vmem:[%s21] sm:$0x2]
    %vm23 = vcmask 1041409
    %v24 = vsel %vm23, %v22, %v20
    %25 = vrot.lane.b32.xlu0 %v24, 120
    %v26 = vpop.permute.xlu0 %25
    %vm27 = vcmask 1015744
    %28 = vst.msk [vmem:[#allocation0] sm:$0x3] %vm27, %v26
    %s29 = scalar_lea.vmem %s0, 29
    %v30 = vld [vmem:[%s29] sm:$0x1]
    %s31 = scalar_lea.vmem %s0, 60
    %v32 = vld [vmem:[%s31] sm:$0x2]
    %vm33 = vcmask 1041409
    %v34 = vsel %vm33, %v32, %v30
    %35 = vrot.lane.b32.xlu0 %v34, 116
    %v36 = vpop.permute.xlu0 %35
    %vm37 = vcmask 982944
    %38 = vst.msk [vmem:[#allocation0] sm:$0x3] %vm37, %v36
    %s39 = scalar_lea.vmem %s0, 28
    %v40 = vld [vmem:[%s39] sm:$0x1]
    %s41 = scalar_lea.vmem %s0, 59
    %v42 = vld [vmem:[%s41] sm:$0x2]
    %vm43 = vcmask 1041409
    %v44 = vsel %vm43, %v42, %v40
    %45 = vrot.lane.b32.xlu0 %v44, 112
    %v46 = vpop.permute.xlu0 %45
    %vm47 = vcmask 950144
    %48 = vst.msk [vmem:[#allocation0] sm:$0x3] %vm47, %v46
    %s49 = scalar_lea.vmem %s0, 27
    %v50 = vld [vmem:[%s49] sm:$0x1]
    %s51 = scalar_lea.vmem %s0, 58
    %v52 = vld [vmem:[%s51] sm:$0x2]
    %vm53 = vcmask 1041409
    %v54 = vsel %vm53, %v52, %v50
    %55 = vrot.lane.b32.xlu0 %v54, 108
    %v56 = vpop.permute.xlu0 %55
    %vm57 = vcmask 917344
    %58 = vst.msk [vmem:[#allocation0] sm:$0x3] %vm57, %v56
    %s59 = scalar_lea.vmem %s0, 26
    %v60 = vld [vmem:[%s59] sm:$0x1]
    %s61 = scalar_lea.vmem %s0, 57
    %v62 = vld [vmem:[%s61] sm:$0x2]
    %vm63 = vcmask 1041409
    %v64 = vsel %vm63, %v62, %v60
    %65 = vrot.lane.b32.xlu0 %v64, 104
    %v66 = vpop.permute.xlu0 %65
    %vm67 = vcmask 884544
    %68 = vst.msk [vmem:[#allocation0] sm:$0x3] %vm67, %v66
    %s69 = scalar_lea.vmem %s0, 25
    %v70 = vld [vmem:[%s69] sm:$0x1]
    %s71 = scalar_lea.vmem %s0, 56
    %v72 = vld [vmem:[%s71] sm:$0x2]
    %vm73 = vcmask 1041409
    %v74 = vsel %vm73, %v72, %v70
    %75 = vrot.lane.b32.xlu0 %v74, 100
    %v76 = vpop.permute.xlu0 %75
    %vm77 = vcmask 851744
    %78 = vst.msk [vmem:[#allocation0] sm:$0x3] %vm77, %v76
    %s79 = scalar_lea.vmem %s0, 24
    %v80 = vld [vmem:[%s79] sm:$0x1]
    %s81 = scalar_lea.vmem %s0, 55
    %v82 = vld [vmem:[%s81] sm:$0x2]
    %vm83 = vcmask 1041409
    %v84 = vsel %vm83, %v82, %v80
    %85 = vrot.lane.b32.xlu0 %v84, 96
    %v86 = vpop.permute.xlu0 %85
    %vm87 = vcmask 818944
    %88 = vst.msk [vmem:[#allocation0] sm:$0x3] %vm87, %v86
    %s89 = scalar_lea.vmem %s0, 23
    %v90 = vld [vmem:[%s89] sm:$0x1]
    %s91 = scalar_lea.vmem %s0, 54
    %v92 = vld [vmem:[%s91] sm:$0x2]
    %vm93 = vcmask 1041409
    %v94 = vsel %vm93, %v92, %v90
    %95 = vrot.lane.b32.xlu0 %v94, 92
    %v96 = vpop.permute.xlu0 %95
    %vm97 = vcmask 786144
    %98 = vst.msk [vmem:[#allocation0] sm:$0x3] %vm97, %v96
    %s99 = scalar_lea.vmem %s0, 22
    %v100 = vld [vmem:[%s99] sm:$0x1]
    %s101 = scalar_lea.vmem %s0, 53
    %v102 = vld [vmem:[%s101] sm:$0x2]
    %vm103 = vcmask 1041409
    %v104 = vsel %vm103, %v102, %v100
    %105 = vrot.lane.b32.xlu0 %v104, 88
    %v106 = vpop.permute.xlu0 %105
    %vm107 = vcmask 753344
    %108 = vst.msk [vmem:[#allocation0] sm:$0x3] %vm107, %v106
    %s109 = scalar_lea.vmem %s0, 21
    %v110 = vld [vmem:[%s109] sm:$0x1]
    %s111 = scalar_lea.vmem %s0, 52
    %v112 = vld [vmem:[%s111] sm:$0x2]
    %vm113 = vcmask 1041409
    %v114 = vsel %vm113, %v112, %v110
    %115 = vrot.lane.b32.xlu0 %v114, 84
    %v116 = vpop.permute.xlu0 %115
    %vm117 = vcmask 720544
    %118 = vst.msk [vmem:[#allocation0] sm:$0x3] %vm117, %v116
    %s119 = scalar_lea.vmem %s0, 20
    %v120 = vld [vmem:[%s119] sm:$0x1]
    %s121 = scalar_lea.vmem %s0, 51
    %v122 = vld [vmem:[%s121] sm:$0x2]
    %vm123 = vcmask 1041409
    %v124 = vsel %vm123, %v122, %v120
    %125 = vrot.lane.b32.xlu0 %v124, 80
    %v126 = vpop.permute.xlu0 %125
    %vm127 = vcmask 687744
    %128 = vst.msk [vmem:[#allocation0] sm:$0x3] %vm127, %v126
    %s129 = scalar_lea.vmem %s0, 19
    %v130 = vld [vmem:[%s129] sm:$0x1]
    %s131 = scalar_lea.vmem %s0, 50
    %v132 = vld [vmem:[%s131] sm:$0x2]
    %vm133 = vcmask 1041409
    %v134 = vsel %vm133, %v132, %v130
    %135 = vrot.lane.b32.xlu0 %v134, 76
    %v136 = vpop.permute.xlu0 %135
    %vm137 = vcmask 654944
    %138 = vst.msk [vmem:[#allocation0] sm:$0x3] %vm137, %v136
    %s139 = scalar_lea.vmem %s0, 18
    %v140 = vld [vmem:[%s139] sm:$0x1]
    %s141 = scalar_lea.vmem %s0, 49
    %v142 = vld [vmem:[%s141] sm:$0x2]
    %vm143 = vcmask 1041409
    %v144 = vsel %vm143, %v142, %v140
    %145 = vrot.lane.b32.xlu0 %v144, 72
    %v146 = vpop.permute.xlu0 %145
    %vm147 = vcmask 622144
    %148 = vst.msk [vmem:[#allocation0] sm:$0x3] %vm147, %v146
    %s149 = scalar_lea.vmem %s0, 17
    %v150 = vld [vmem:[%s149] sm:$0x1]
    %s151 = scalar_lea.vmem %s0, 48
    %v152 = vld [vmem:[%s151] sm:$0x2]
    %vm153 = vcmask 1041409
    %v154 = vsel %vm153, %v152, %v150
    %155 = vrot.lane.b32.xlu0 %v154, 68
    %v156 = vpop.permute.xlu0 %155
    %vm157 = vcmask 589344
    %158 = vst.msk [vmem:[#allocation0] sm:$0x3] %vm157, %v156
    %s159 = scalar_lea.vmem %s0, 16
    %v160 = vld [vmem:[%s159] sm:$0x1]
    %s161 = scalar_lea.vmem %s0, 47
    %v162 = vld [vmem:[%s161] sm:$0x2]
    %vm163 = vcmask 1041409
    %v164 = vsel %vm163, %v162, %v160
    %165 = vrot.lane.b32.xlu0 %v164, 64
    %v166 = vpop.permute.xlu0 %165
    %vm167 = vcmask 556544
    %168 = vst.msk [vmem:[#allocation0] sm:$0x3] %vm167, %v166
    %s169 = scalar_lea.vmem %s0, 15
    %v170 = vld [vmem:[%s169] sm:$0x1]
    %s171 = scalar_lea.vmem %s0, 46
    %v172 = vld [vmem:[%s171] sm:$0x2]
    %vm173 = vcmask 1041409
    %v174 = vsel %vm173, %v172, %v170
    %175 = vrot.lane.b32.xlu0 %v174, 60
    %v176 = vpop.permute.xlu0 %175
    %vm177 = vcmask 523744
    %178 = vst.msk [vmem:[#allocation0] sm:$0x3] %vm177, %v176
    %s179 = scalar_lea.vmem %s0, 14
    %v180 = vld [vmem:[%s179] sm:$0x1]
    %s181 = scalar_lea.vmem %s0, 45
    %v182 = vld [vmem:[%s181] sm:$0x2]
    %vm183 = vcmask 1041409
    %v184 = vsel %vm183, %v182, %v180
    %185 = vrot.lane.b32.xlu0 %v184, 56
    %v186 = vpop.permute.xlu0 %185
    %vm187 = vcmask 490944
    %188 = vst.msk [vmem:[#allocation0] sm:$0x3] %vm187, %v186
    %s189 = scalar_lea.vmem %s0, 13
    %v190 = vld [vmem:[%s189] sm:$0x1]
    %s191 = scalar_lea.vmem %s0, 44
    %v192 = vld [vmem:[%s191] sm:$0x2]
    %vm193 = vcmask 1041409
    %v194 = vsel %vm193, %v192, %v190
    %195 = vrot.lane.b32.xlu0 %v194, 52
    %v196 = vpop.permute.xlu0 %195
    %vm197 = vcmask 458144
    %198 = vst.msk [vmem:[#allocation0] sm:$0x3] %vm197, %v196
    %s199 = scalar_lea.vmem %s0, 12
    %v200 = vld [vmem:[%s199] sm:$0x1]
    %s201 = scalar_lea.vmem %s0, 43
    %v202 = vld [vmem:[%s201] sm:$0x2]
    %vm203 = vcmask 1041409
    %v204 = vsel %vm203, %v202, %v200
    %205 = vrot.lane.b32.xlu0 %v204, 48
    %v206 = vpop.permute.xlu0 %205
    %vm207 = vcmask 425344
    %208 = vst.msk [vmem:[#allocation0] sm:$0x3] %vm207, %v206
    %s209 = scalar_lea.vmem %s0, 11
    %v210 = vld [vmem:[%s209] sm:$0x1]
    %s211 = scalar_lea.vmem %s0, 42
    %v212 = vld [vmem:[%s211] sm:$0x2]
    %vm213 = vcmask 1041409
    %v214 = vsel %vm213, %v212, %v210
    %215 = vrot.lane.b32.xlu0 %v214, 44
    %v216 = vpop.permute.xlu0 %215
    %vm217 = vcmask 392544
    %218 = vst.msk [vmem:[#allocation0] sm:$0x3] %vm217, %v216
    %s219 = scalar_lea.vmem %s0, 10
    %v220 = vld [vmem:[%s219] sm:$0x1]
    %s221 = scalar_lea.vmem %s0, 41
    %v222 = vld [vmem:[%s221] sm:$0x2]
    %vm223 = vcmask 1041409
    %v224 = vsel %vm223, %v222, %v220
    %225 = vrot.lane.b32.xlu0 %v224, 40
    %v226 = vpop.permute.xlu0 %225
    %vm227 = vcmask 359744
    %228 = vst.msk [vmem:[#allocation0] sm:$0x3] %vm227, %v226
    %s229 = scalar_lea.vmem %s0, 9
    %v230 = vld [vmem:[%s229] sm:$0x1]
    %s231 = scalar_lea.vmem %s0, 40
    %v232 = vld [vmem:[%s231] sm:$0x2]
    %vm233 = vcmask 1041409
    %v234 = vsel %vm233, %v232, %v230
    %235 = vrot.lane.b32.xlu0 %v234, 36
    %v236 = vpop.permute.xlu0 %235
    %vm237 = vcmask 326944
    %238 = vst.msk [vmem:[#allocation0] sm:$0x3] %vm237, %v236
    %s239 = scalar_lea.vmem %s0, 8
    %v240 = vld [vmem:[%s239] sm:$0x1]
    %s241 = scalar_lea.vmem %s0, 39
    %v242 = vld [vmem:[%s241] sm:$0x2]
    %vm243 = vcmask 1041409
    %v244 = vsel %vm243, %v242, %v240
    %245 = vrot.lane.b32.xlu0 %v244, 32
    %v246 = vpop.permute.xlu0 %245
    %vm247 = vcmask 294144
    %248 = vst.msk [vmem:[#allocation0] sm:$0x3] %vm247, %v246
    %s249 = scalar_lea.vmem %s0, 7
    %v250 = vld [vmem:[%s249] sm:$0x1]
    %s251 = scalar_lea.vmem %s0, 38
    %v252 = vld [vmem:[%s251] sm:$0x2]
    %vm253 = vcmask 1041409
    %v254 = vsel %vm253, %v252, %v250
    %255 = vrot.lane.b32.xlu0 %v254, 28
    %v256 = vpop.permute.xlu0 %255
    %vm257 = vcmask 261344
    %258 = vst.msk [vmem:[#allocation0] sm:$0x3] %vm257, %v256
    %s259 = scalar_lea.vmem %s0, 6
    %v260 = vld [vmem:[%s259] sm:$0x1]
    %s261 = scalar_lea.vmem %s0, 37
    %v262 = vld [vmem:[%s261] sm:$0x2]
    %vm263 = vcmask 1041409
    %v264 = vsel %vm263, %v262, %v260
    %265 = vrot.lane.b32.xlu0 %v264, 24
    %v266 = vpop.permute.xlu0 %265
    %vm267 = vcmask 228544
    %268 = vst.msk [vmem:[#allocation0] sm:$0x3] %vm267, %v266
    %s269 = scalar_lea.vmem %s0, 5
    %v270 = vld [vmem:[%s269] sm:$0x1]
    %s271 = scalar_lea.vmem %s0, 36
    %v272 = vld [vmem:[%s271] sm:$0x2]
    %vm273 = vcmask 1041409
    %v274 = vsel %vm273, %v272, %v270
    %275 = vrot.lane.b32.xlu0 %v274, 20
    %v276 = vpop.permute.xlu0 %275
    %vm277 = vcmask 195744
    %278 = vst.msk [vmem:[#allocation0] sm:$0x3] %vm277, %v276
    %s279 = scalar_lea.vmem %s0, 4
    %v280 = vld [vmem:[%s279] sm:$0x1]
    %s281 = scalar_lea.vmem %s0, 35
    %v282 = vld [vmem:[%s281] sm:$0x2]
    %vm283 = vcmask 1041409
    %v284 = vsel %vm283, %v282, %v280
    %285 = vrot.lane.b32.xlu0 %v284, 16
    %v286 = vpop.permute.xlu0 %285
    %vm287 = vcmask 162944
    %288 = vst.msk [vmem:[#allocation0] sm:$0x3] %vm287, %v286
    %s289 = scalar_lea.vmem %s0, 3
    %v290 = vld [vmem:[%s289] sm:$0x1]
    %s291 = scalar_lea.vmem %s0, 34
    %v292 = vld [vmem:[%s291] sm:$0x2]
    %vm293 = vcmask 1041409
    %v294 = vsel %vm293, %v292, %v290
    %295 = vrot.lane.b32.xlu0 %v294, 12
    %v296 = vpop.permute.xlu0 %295
    %vm297 = vcmask 130144
    %298 = vst.msk [vmem:[#allocation0] sm:$0x3] %vm297, %v296
    %s299 = scalar_lea.vmem %s0, 2
    %v300 = vld [vmem:[%s299] sm:$0x1]
    %s301 = scalar_lea.vmem %s0, 33
    %v302 = vld [vmem:[%s301] sm:$0x2]
    %vm303 = vcmask 1041409
    %v304 = vsel %vm303, %v302, %v300
    %305 = vrot.lane.b32.xlu0 %v304, 8
    %v306 = vpop.permute.xlu0 %305
    %vm307 = vcmask 97344
    %308 = vst.msk [vmem:[#allocation0] sm:$0x3] %vm307, %v306
    %s309 = scalar_lea.vmem %s0, 1
    %v310 = vld [vmem:[%s309] sm:$0x1]
    %s311 = scalar_lea.vmem %s0, 32
    %v312 = vld [vmem:[%s311] sm:$0x2]
    %vm313 = vcmask 1041409
    %v314 = vsel %vm313, %v312, %v310
    %315 = vrot.lane.b32.xlu0 %v314, 4
    %v316 = vpop.permute.xlu0 %315
    %vm317 = vcmask 64544
    %318 = vst.msk [vmem:[#allocation0] sm:$0x3] %vm317, %v316
    %s320 = sshllo.u32 0, 2
    %v322 = vld [vmem:[#allocation0] sm:%s320]
    %s323 = sshllo.u32 0, 2
    %324 = vst [vmem:[%s1] sm:%s323] %v322

// kernel: decoder_forward_pallas.7
$region0: #{decoder_forward_pallas.7}
  #allocation0 [shape = 'u32[]', space=smem, size = 0x4, offset = 0x4, fixed_abs, tag = 'smem constant byte address 0x4 - core index']
  #allocation1 [shape = 'u32[144,128]{1,0:T(1,128)}', space=vmem, size = 0x12000, scoped, tag = 'internal scratch']
  %s0 = inlined_call_operand.vmem [shape: f32[2,6,128], index: 0, kind: input, shape index: {}]
  %s1 = inlined_call_operand.vmem [shape: f32[2,128], index: 1, kind: input, shape index: {}]
  %s2 = inlined_call_operand.vmem [shape: bf16[384,132], index: 2, kind: input, shape index: {}]
  %s3 = inlined_call_operand.vmem [shape: f32[2,6,128], index: 3, kind: output, shape index: {0}]
  %s4 = inlined_call_operand.vmem [shape: f32[2,2,132], index: 4, kind: output, shape index: {1}]
  %5 = xla_tuple %s3, %s4
  %s6 = sld [smem:[#allocation0]]
  $region53: #{decoder_forward_pallas.7} parent=0
    _
  %s8 = ssub.s32 1, %s6
  %s9 = scalar_select 0, %s8, %s6
  loop: start=0, step=1, limit=4
  $region2: #{decoder_forward_pallas.7} parent=0 // loop_pre_header
    _
  $region3: #{decoder_forward_pallas.7} parent=0 // loop_header
    %s11 = sphi 0, %s15
    %p12 = scmp.ge.s32.totalorder %s11, 4
    %s21 = sphi 0, %s23
    %s24 = sphi 0, %s21
    %s25 = sphi 0, %s24
    %s41 = sphi 0, %s25
    %s45 = sphi 0, %s45
    %s47 = sphi 0, %s45
    %s48 = sphi 0, %s47
    %s62 = sphi 0, %s48
    %s66 = sphi 0, %s66
    %s68 = sphi 0, %s66
    %s69 = sphi 0, %s68
    %s83 = sphi 0, %s69
    %s89 = sphi 0, %s91
    %s92 = sphi 0, %s89
    %s93 = sphi 0, %s92
    %s109 = sphi 0, %s93
    %s115 = sphi 0, %s117
    %s118 = sphi 0, %s115
    %s119 = sphi 0, %s118
    %s135 = sphi 0, %s119
  $region4: #{decoder_forward_pallas.7} parent=0 // loop_header_branch
    %14 = sbr.rel (%p12) target = $region8
  $region5: #{decoder_forward_pallas.7} parent=0 // loop_body
    %s16 = ssub.s32 %s11, 1
    %s17 = ssub.s32 %s11, 2
    %s18 = sadd.s32 %s11, 1
    %s19 = ssub.s32 %s11, %s18
    %p20 = scmp.eq.s32.totalorder %s19, 0
    %s22 = sadd.s32 %s21, 1
    %s23 = scalar_select %p20, %s21, %s22
    %p26 = pneg %p20
    %p27 = scmp.eq.s32.totalorder %s11, 1
    %p28 = por %p26, %p27
    %p29 = scmp.ne.s32.totalorder %s21, %s24
    %p30 = scmp.eq.s32.totalorder %s11, 0
    %p31 = por %p29, %p30
    %p32 = scmp.ne.s32.totalorder %s21, %s24
    %p33 = scmp.eq.s32.totalorder %s16, 1
    %p34 = por %p32, %p33
    %p35 = scmp.ne.s32.totalorder %s24, %s25
    %p36 = scmp.eq.s32.totalorder %s16, 0
    %p37 = por %p35, %p36
    %p38 = scmp.ne.s32.totalorder %s24, %s25
    %p39 = scmp.eq.s32.totalorder %s17, 1
    %p40 = por %p38, %p39
    %p42 = scmp.ne.s32.totalorder %s25, %s41
    %p43 = scmp.eq.s32.totalorder %s17, 0
    %p44 = por %p42, %p43
    %s46 = sadd.s32 %s45, 1
    %p49 = scmp.eq.s32.totalorder %s11, 1
    %p50 = scmp.ne.s32.totalorder %s45, %s47
    %p51 = scmp.eq.s32.totalorder %s11, 0
    %p52 = por %p50, %p51
    %p53 = scmp.ne.s32.totalorder %s45, %s47
    %p54 = scmp.eq.s32.totalorder %s16, 1
    %p55 = por %p53, %p54
    %p56 = scmp.ne.s32.totalorder %s47, %s48
    %p57 = scmp.eq.s32.totalorder %s16, 0
    %p58 = por %p56, %p57
    %p59 = scmp.ne.s32.totalorder %s47, %s48
    %p60 = scmp.eq.s32.totalorder %s17, 1
    %p61 = por %p59, %p60
    %p63 = scmp.ne.s32.totalorder %s48, %s62
    %p64 = scmp.eq.s32.totalorder %s17, 0
    %p65 = por %p63, %p64
    %s67 = sadd.s32 %s66, 1
    %p70 = scmp.eq.s32.totalorder %s11, 1
    %p71 = scmp.ne.s32.totalorder %s66, %s68
    %p72 = scmp.eq.s32.totalorder %s11, 0
    %p73 = por %p71, %p72
    %p74 = scmp.ne.s32.totalorder %s66, %s68
    %p75 = scmp.eq.s32.totalorder %s16, 1
    %p76 = por %p74, %p75
    %p77 = scmp.ne.s32.totalorder %s68, %s69
    %p78 = scmp.eq.s32.totalorder %s16, 0
    %p79 = por %p77, %p78
    %p80 = scmp.ne.s32.totalorder %s68, %s69
    %p81 = scmp.eq.s32.totalorder %s17, 1
    %p82 = por %p80, %p81
    %p84 = scmp.ne.s32.totalorder %s69, %s83
    %p85 = scmp.eq.s32.totalorder %s17, 0
    %p86 = por %p84, %p85
    %s87 = ssub.s32 %s11, %s18
    %p88 = scmp.eq.s32.totalorder %s87, 0
    %s90 = sadd.s32 %s89, 1
    %s91 = scalar_select %p88, %s89, %s90
    %p94 = pneg %p88
    %p95 = scmp.eq.s32.totalorder %s11, 1
    %p96 = por %p94, %p95
    %p97 = scmp.ne.s32.totalorder %s89, %s92
    %p98 = scmp.eq.s32.totalorder %s11, 0
    %p99 = por %p97, %p98
    %p100 = scmp.ne.s32.totalorder %s89, %s92
    %p101 = scmp.eq.s32.totalorder %s16, 1
    %p102 = por %p100, %p101
    %p103 = scmp.ne.s32.totalorder %s92, %s93
    %p104 = scmp.eq.s32.totalorder %s16, 0
    %p105 = por %p103, %p104
    %p106 = scmp.ne.s32.totalorder %s92, %s93
    %p107 = scmp.eq.s32.totalorder %s17, 1
    %p108 = por %p106, %p107
    %p110 = scmp.ne.s32.totalorder %s93, %s109
    %p111 = scmp.eq.s32.totalorder %s17, 0
    %p112 = por %p110, %p111
    %s113 = ssub.s32 %s11, %s18
    %p114 = scmp.eq.s32.totalorder %s113, 0
    %s116 = sadd.s32 %s115, 1
    %s117 = scalar_select %p114, %s115, %s116
    %p120 = pneg %p114
    %p121 = scmp.eq.s32.totalorder %s11, 1
    %p122 = por %p120, %p121
    %p123 = scmp.ne.s32.totalorder %s115, %s118
    %p124 = scmp.eq.s32.totalorder %s11, 0
    %p125 = por %p123, %p124
    %p126 = scmp.ne.s32.totalorder %s115, %s118
    %p127 = scmp.eq.s32.totalorder %s16, 1
    %p128 = por %p126, %p127
    %p129 = scmp.ne.s32.totalorder %s118, %s119
    %p130 = scmp.eq.s32.totalorder %s16, 0
    %p131 = por %p129, %p130
    %p132 = scmp.ne.s32.totalorder %s118, %s119
    %p133 = scmp.eq.s32.totalorder %s17, 1
    %p134 = por %p132, %p133
    %p136 = scmp.ne.s32.totalorder %s119, %s135
    %p137 = scmp.eq.s32.totalorder %s17, 0
    %p138 = por %p136, %p137
    %p139 = scmp.le.s32.totalorder 1, %s11
    %p140 = scmp.lt.s32.totalorder %s11, 3
    %p141 = pnand %p139, %p140
    %p142 = pneg %p141
    // Predicated region
    $region9: #{decoder_forward_pallas.7} parent=5 // pred_check
      _
    $region10: #{decoder_forward_pallas.7} parent=5 // pred_check_branch
      %144 = sbr.rel (%p141) target = $region12
    $region11: #{decoder_forward_pallas.7} parent=5 // pred_region
      %s145 = ssub.s32 %s11, 1
      // Predicated region
      $region13: #{decoder_forward_pallas.7} parent=11 // pred_check
        %p146 = pneg %p58
      $region14: #{decoder_forward_pallas.7} parent=11 // pred_check_branch
        %148 = sbr.rel (%p146) target = $region16
      $region15: #{decoder_forward_pallas.7} parent=11 // pred_region
        _
      $region16: #{decoder_forward_pallas.7} parent=11 // pred_fallthru
        _
      // Predicated region
      $region17: #{decoder_forward_pallas.7} parent=11 // pred_check
        %p149 = pneg %p79
      $region18: #{decoder_forward_pallas.7} parent=11 // pred_check_branch
        %151 = sbr.rel (%p149) target = $region20
      $region19: #{decoder_forward_pallas.7} parent=11 // pred_region
        _
      $region20: #{decoder_forward_pallas.7} parent=11 // pred_fallthru
        _
    $region12: #{decoder_forward_pallas.7} parent=5 // pred_fallthru
      _
    %p152 = scmp.lt.s32.totalorder %s11, 2
    // Predicated region
    $region21: #{decoder_forward_pallas.7} parent=5 // pred_check
      %p153 = pneg %p152
    $region22: #{decoder_forward_pallas.7} parent=5 // pred_check_branch
      %155 = sbr.rel (%p153) target = $region24
    $region23: #{decoder_forward_pallas.7} parent=5 // pred_region
      // Predicated region
      $region25: #{decoder_forward_pallas.7} parent=23 // pred_check
        %p156 = pneg %p31
      $region26: #{decoder_forward_pallas.7} parent=23 // pred_check_branch
        %158 = sbr.rel (%p156) target = $region28
      $region27: #{decoder_forward_pallas.7} parent=23 // pred_region
        %p159 = scmp.lt.s32.totalorder %s11, 1
        %s160 = scalar_select %p159, %s11, 1
        %s161 = smul.addr %s160, 8
        %s162 = scalar_lea.vmem %s0, %s161
      $region28: #{decoder_forward_pallas.7} parent=23 // pred_fallthru
        _
    $region24: #{decoder_forward_pallas.7} parent=5 // pred_fallthru
      _
    %p163 = scmp.le.s32.totalorder 1, %s11
    %p164 = scmp.lt.s32.totalorder %s11, 3
    %p165 = pnand %p163, %p164
    %p166 = pneg %p165
    // Predicated region
    $region29: #{decoder_forward_pallas.7} parent=5 // pred_check
      _
    $region30: #{decoder_forward_pallas.7} parent=5 // pred_check_branch
      %168 = sbr.rel (%p165) target = $region32
    $region31: #{decoder_forward_pallas.7} parent=5 // pred_region
      %s169 = ssub.s32 %s11, 1
      %p170 = scmp.lt.s32.totalorder %s16, 1
      %s171 = scalar_select %p170, %s16, 1
      %s172 = smul.addr %s171, 8
      %s173 = scalar_lea.vmem %s0, %s172
      %p174 = pneg %p37
      %p175 = pneg %p34
      %p176 = pneg %p58
      %p177 = pneg %p55
      %p178 = pneg %p79
      %p179 = pneg %p76
      %p180 = pneg %p105
      %p181 = pneg %p102
      %p182 = scmp.lt.s32.totalorder %s16, 1
      %s183 = scalar_select %p182, %s16, 1
      %s184 = smul.addr %s183, 8
      %s185 = scalar_lea.vmem %s3, %s184
      %p186 = pneg %p131
      %p187 = pneg %p128
      %p188 = scmp.lt.s32.totalorder %s16, 1
      %s189 = scalar_select %p188, %s16, 1
      %s190 = smul.addr %s189, 2
      %s191 = smul.addr %s190, 2
      %s192 = scalar_lea.vmem %s4, %s191
      %p193 = scmp.lt.s32.totalorder %s16, 1
      %s194 = scalar_select %p193, %s16, 1
      %s195 = smul.addr %s194, 8
      %s196 = scalar_lea.vmem %s0, %s195
      %p197 = scmp.lt.s32.totalorder %s16, 1
      %s198 = scalar_select %p197, %s16, 1
      %s199 = smul.addr %s198, 8
      %s200 = scalar_lea.vmem %s3, %s199
      %p201 = scmp.lt.s32.totalorder %s16, 1
      %s202 = scalar_select %p201, %s16, 1
      %s203 = smul.addr %s202, 2
      %s204 = smul.addr %s203, 2
      %s205 = scalar_lea.vmem %s4, %s204
      %v207 = vld [vmem:[%s1] sm:$0x3]
      %v208 = vld [vmem:[%s196] sm:$0x3f]
      %v209 = vlaneseq
      %v210 = vshrl.u32 %v209, 7
      %v211 = vsub.s32 0, %v210
      %v212 = vrot.slane %v207, %v211
      %v213 = vmul.f32 %v208, %v212
      %v214 = vlaneseq
      %v215 = vshrl.u32 %v214, 7
      %v216 = vsub.s32 1, %v215
      %v217 = vrot.slane %v207, %v216
      %v218 = vadd.f32 %v213, %v217
      %v219 = vmax.f32 %v218, 0.0
      %v220 = vpack.c.bf16 %v219, %v219
      %v222 = vrot.slane %v220, 7
      %vm223 = vcmask 1040384
      %v226 = vsel %vm223, 0, %v222
      %vm227 = vcmask 1043456
      %v228 = vsel %vm227, %v226, 0
      %v230 = vshrl.u32 %v228, 16
      %v232 = vshll.u32 %v228, 16
      %v234 = vrot.slane %v232, 1
      %v235 = vor.u32 %v230, %v234
      %v238 = vrot.slane %v228, 1
      %v240 = vld [vmem:[%s2] sm:$0xff]
      %v241 = vld [vmem:[%s2 + $0x8] sm:$0xff]
      %v242 = vld [vmem:[%s2 + $0x10] sm:$0xff]
      %v243 = vld [vmem:[%s2 + $0x18] sm:$0xff]
      %v244 = vld [vmem:[%s2 + $0x20] sm:$0xff]
      %v245 = vld [vmem:[%s2 + $0x28] sm:$0xff]
      %v246 = vld [vmem:[%s2 + $0x30] sm:$0xff]
      %v247 = vld [vmem:[%s2 + $0x38] sm:$0xff]
      %v248 = vld [vmem:[%s2 + $0x40] sm:$0xff]
      %v249 = vld [vmem:[%s2 + $0x48] sm:$0xff]
      %v250 = vld [vmem:[%s2 + $0x50] sm:$0xff]
      %v251 = vld [vmem:[%s2 + $0x58] sm:$0xff]
      %v252 = vld [vmem:[%s2 + $0x60] sm:$0xff]
      %v253 = vld [vmem:[%s2 + $0x68] sm:$0xff]
      %v254 = vld [vmem:[%s2 + $0x70] sm:$0xff]
      %v255 = vld [vmem:[%s2 + $0x78] sm:$0xff]
      %v256 = vld [vmem:[%s2 + $0x80] sm:$0xff]
      %v257 = vld [vmem:[%s2 + $0x88] sm:$0xff]
      %v258 = vld [vmem:[%s2 + $0x90] sm:$0xff]
      %v259 = vld [vmem:[%s2 + $0x98] sm:$0xff]
      %v260 = vld [vmem:[%s2 + $0xa0] sm:$0xff]
      %v261 = vld [vmem:[%s2 + $0xa8] sm:$0xff]
      %v262 = vld [vmem:[%s2 + $0xb0] sm:$0xff]
      %v263 = vld [vmem:[%s2 + $0xb8] sm:$0xff]
      %v264 = vld [vmem:[%s2 + $0xc0] sm:$0xff]
      %v265 = vld [vmem:[%s2 + $0xc8] sm:$0xff]
      %v266 = vld [vmem:[%s2 + $0xd0] sm:$0xff]
      %v267 = vld [vmem:[%s2 + $0xd8] sm:$0xff]
      %v268 = vld [vmem:[%s2 + $0xe0] sm:$0xff]
      %v269 = vld [vmem:[%s2 + $0xe8] sm:$0xff]
      %v270 = vld [vmem:[%s2 + $0xf0] sm:$0xff]
      %v271 = vld [vmem:[%s2 + $0xf8] sm:$0xff]
      %v272 = vld [vmem:[%s2 + $0x100] sm:$0xff]
      %v273 = vld [vmem:[%s2 + $0x108] sm:$0xff]
      %v274 = vld [vmem:[%s2 + $0x110] sm:$0xff]
      %v275 = vld [vmem:[%s2 + $0x118] sm:$0xff]
      %v276 = vld [vmem:[%s2 + $0x120] sm:$0xff]
      %v277 = vld [vmem:[%s2 + $0x128] sm:$0xff]
      %v278 = vld [vmem:[%s2 + $0x130] sm:$0xff]
      %v279 = vld [vmem:[%s2 + $0x138] sm:$0xff]
      %v280 = vld [vmem:[%s2 + $0x140] sm:$0xff]
      %v281 = vld [vmem:[%s2 + $0x148] sm:$0xff]
      %v282 = vld [vmem:[%s2 + $0x150] sm:$0xff]
      %v283 = vld [vmem:[%s2 + $0x158] sm:$0xff]
      %v284 = vld [vmem:[%s2 + $0x160] sm:$0xff]
      %v285 = vld [vmem:[%s2 + $0x168] sm:$0xff]
      %v286 = vld [vmem:[%s2 + $0x170] sm:$0xff]
      %v287 = vld [vmem:[%s2 + $0x178] sm:$0xff]
      %v336 = vunpack.c.l.b16 %v240
      %v337 = vunpack.c.h.b16 %v240
      %v338 = vunpack.c.l.b16 %v241
      %v339 = vunpack.c.h.b16 %v241
      %v340 = vunpack.c.l.b16 %v242
      %v341 = vunpack.c.h.b16 %v242
      %v342 = vunpack.c.l.b16 %v243
      %v343 = vunpack.c.h.b16 %v243
      %v344 = vunpack.c.l.b16 %v244
      %v345 = vunpack.c.h.b16 %v244
      %v346 = vunpack.c.l.b16 %v245
      %v347 = vunpack.c.h.b16 %v245
      %v348 = vunpack.c.l.b16 %v246
      %v349 = vunpack.c.h.b16 %v246
      %v350 = vunpack.c.l.b16 %v247
      %v351 = vunpack.c.h.b16 %v247
      %v352 = vunpack.c.l.b16 %v248
      %v353 = vunpack.c.h.b16 %v248
      %v354 = vunpack.c.l.b16 %v249
      %v355 = vunpack.c.h.b16 %v249
      %v356 = vunpack.c.l.b16 %v250
      %v357 = vunpack.c.h.b16 %v250
      %v358 = vunpack.c.l.b16 %v251
      %v359 = vunpack.c.h.b16 %v251
      %v360 = vunpack.c.l.b16 %v252
      %v361 = vunpack.c.h.b16 %v252
      %v362 = vunpack.c.l.b16 %v253
      %v363 = vunpack.c.h.b16 %v253
      %v364 = vunpack.c.l.b16 %v254
      %v365 = vunpack.c.h.b16 %v254
      %v366 = vunpack.c.l.b16 %v255
      %v367 = vunpack.c.h.b16 %v255
      %v368 = vunpack.c.l.b16 %v256
      %v369 = vunpack.c.h.b16 %v256
      %v370 = vunpack.c.l.b16 %v257
      %v371 = vunpack.c.h.b16 %v257
      %v372 = vunpack.c.l.b16 %v258
      %v373 = vunpack.c.h.b16 %v258
      %v374 = vunpack.c.l.b16 %v259
      %v375 = vunpack.c.h.b16 %v259
      %v376 = vunpack.c.l.b16 %v260
      %v377 = vunpack.c.h.b16 %v260
      %v378 = vunpack.c.l.b16 %v261
      %v379 = vunpack.c.h.b16 %v261
      %v380 = vunpack.c.l.b16 %v262
      %v381 = vunpack.c.h.b16 %v262
      %v382 = vunpack.c.l.b16 %v263
      %v383 = vunpack.c.h.b16 %v263
      %v384 = vunpack.c.l.b16 %v264
      %v385 = vunpack.c.h.b16 %v264
      %v386 = vunpack.c.l.b16 %v265
      %v387 = vunpack.c.h.b16 %v265
      %v388 = vunpack.c.l.b16 %v266
      %v389 = vunpack.c.h.b16 %v266
      %v390 = vunpack.c.l.b16 %v267
      %v391 = vunpack.c.h.b16 %v267
      %v392 = vunpack.c.l.b16 %v268
      %v393 = vunpack.c.h.b16 %v268
      %v394 = vunpack.c.l.b16 %v269
      %v395 = vunpack.c.h.b16 %v269
      %v396 = vunpack.c.l.b16 %v270
      %v397 = vunpack.c.h.b16 %v270
      %v398 = vunpack.c.l.b16 %v271
      %v399 = vunpack.c.h.b16 %v271
      %v400 = vunpack.c.l.b16 %v272
      %v401 = vunpack.c.h.b16 %v272
      %v402 = vunpack.c.l.b16 %v273
      %v403 = vunpack.c.h.b16 %v273
      %v404 = vunpack.c.l.b16 %v274
      %v405 = vunpack.c.h.b16 %v274
      %v406 = vunpack.c.l.b16 %v275
      %v407 = vunpack.c.h.b16 %v275
      %v408 = vunpack.c.l.b16 %v276
      %v409 = vunpack.c.h.b16 %v276
      %v410 = vunpack.c.l.b16 %v277
      %v411 = vunpack.c.h.b16 %v277
      %v412 = vunpack.c.l.b16 %v278
      %v413 = vunpack.c.h.b16 %v278
      %v414 = vunpack.c.l.b16 %v279
      %v415 = vunpack.c.h.b16 %v279
      %v416 = vunpack.c.l.b16 %v280
      %v417 = vunpack.c.h.b16 %v280
      %v418 = vunpack.c.l.b16 %v281
      %v419 = vunpack.c.h.b16 %v281
      %v420 = vunpack.c.l.b16 %v282
      %v421 = vunpack.c.h.b16 %v282
      %v422 = vunpack.c.l.b16 %v283
      %v423 = vunpack.c.h.b16 %v283
      %v424 = vunpack.c.l.b16 %v284
      %v425 = vunpack.c.h.b16 %v284
      %v426 = vunpack.c.l.b16 %v285
      %v427 = vunpack.c.h.b16 %v285
      %v428 = vunpack.c.l.b16 %v286
      %v429 = vunpack.c.h.b16 %v286
      %v430 = vunpack.c.l.b16 %v287
      %v431 = vunpack.c.h.b16 %v287
      %v432 = vpack.c.b16 %v338, %v336
      %v433 = vpack.c.b16 %v339, %v337
      %v434 = vpack.c.b16 %v342, %v340
      %v435 = vpack.c.b16 %v343, %v341
      %v436 = vpack.c.b16 %v346, %v344
      %v437 = vpack.c.b16 %v347, %v345
      %v438 = vpack.c.b16 %v350, %v348
      %v439 = vpack.c.b16 %v351, %v349
      %v440 = vpack.c.b16 %v354, %v352
      %v441 = vpack.c.b16 %v355, %v353
      %v442 = vpack.c.b16 %v358, %v356
      %v443 = vpack.c.b16 %v359, %v357
      %v444 = vpack.c.b16 %v362, %v360
      %v445 = vpack.c.b16 %v363, %v361
      %v446 = vpack.c.b16 %v366, %v364
      %v447 = vpack.c.b16 %v367, %v365
      %v448 = vpack.c.b16 %v370, %v368
      %v449 = vpack.c.b16 %v371, %v369
      %v450 = vpack.c.b16 %v374, %v372
      %v451 = vpack.c.b16 %v375, %v373
      %v452 = vpack.c.b16 %v378, %v376
      %v453 = vpack.c.b16 %v379, %v377
      %v454 = vpack.c.b16 %v382, %v380
      %v455 = vpack.c.b16 %v383, %v381
      %v456 = vpack.c.b16 %v386, %v384
      %v457 = vpack.c.b16 %v387, %v385
      %v458 = vpack.c.b16 %v390, %v388
      %v459 = vpack.c.b16 %v391, %v389
      %v460 = vpack.c.b16 %v394, %v392
      %v461 = vpack.c.b16 %v395, %v393
      %v462 = vpack.c.b16 %v398, %v396
      %v463 = vpack.c.b16 %v399, %v397
      %v464 = vpack.c.b16 %v402, %v400
      %v465 = vpack.c.b16 %v403, %v401
      %v466 = vpack.c.b16 %v406, %v404
      %v467 = vpack.c.b16 %v407, %v405
      %v468 = vpack.c.b16 %v410, %v408
      %v469 = vpack.c.b16 %v411, %v409
      %v470 = vpack.c.b16 %v414, %v412
      %v471 = vpack.c.b16 %v415, %v413
      %v472 = vpack.c.b16 %v418, %v416
      %v473 = vpack.c.b16 %v419, %v417
      %v474 = vpack.c.b16 %v422, %v420
      %v475 = vpack.c.b16 %v423, %v421
      %v476 = vpack.c.b16 %v426, %v424
      %v477 = vpack.c.b16 %v427, %v425
      %v478 = vpack.c.b16 %v430, %v428
      %v479 = vpack.c.b16 %v431, %v429
      %528 = vmatprep.subr.bf16.mxu0 %v433
      %529 = vmatpush1.bf16.msra.mxu0 %v432
      %530 = vmatprep.subr.bf16.mxu0 %v435
      %531 = vmatpush1.bf16.msra.mxu0 %v434
      %532 = vmatprep.subr.bf16.mxu0 %v437
      %533 = vmatpush1.bf16.msra.mxu0 %v436
      %534 = vmatprep.subr.bf16.mxu0 %v439
      %535 = vmatpush1.bf16.msra.mxu0 %v438
      %536 = vmatprep.subr.bf16.mxu0 %v441
      %537 = vmatpush1.bf16.msra.mxu0 %v440
      %538 = vmatprep.subr.bf16.mxu0 %v443
      %539 = vmatpush1.bf16.msra.mxu0 %v442
      %540 = vmatprep.subr.bf16.mxu0 %v445
      %541 = vmatpush1.bf16.msra.mxu0 %v444
      %542 = vmatprep.subr.bf16.mxu0 %v447
      %543 = vmatpush1.bf16.msra.mxu0 %v446
      %544 = vmatprep.subr.bf16.mxu0 %v449
      %545 = vmatpush1.bf16.msra.mxu0 %v448
      %546 = vmatprep.subr.bf16.mxu0 %v451
      %547 = vmatpush1.bf16.msra.mxu0 %v450
      %548 = vmatprep.subr.bf16.mxu0 %v453
      %549 = vmatpush1.bf16.msra.mxu0 %v452
      %550 = vmatprep.subr.bf16.mxu0 %v455
      %551 = vmatpush1.bf16.msra.mxu0 %v454
      %552 = vmatprep.subr.bf16.mxu0 %v457
      %553 = vmatpush1.bf16.msra.mxu0 %v456
      %554 = vmatprep.subr.bf16.mxu0 %v459
      %555 = vmatpush1.bf16.msra.mxu0 %v458
      %556 = vmatprep.subr.bf16.mxu0 %v461
      %557 = vmatpush1.bf16.msra.mxu0 %v460
      %558 = vmatprep.subr.bf16.mxu0 %v463
      %559 = vmatpush1.bf16.msra.mxu0 %v462
      %560 = vmatprep.mubr.bf16.mxu0 %v235
      %561 = vmatmul.mubr.bf16.gmra.mrb[0].mxu0 %v228
      %v562 = vpop.f32.mrb[0].mxu0
      %v563 = vadd.f32 0.0, %v562
      %v564 = vpop.f32.mrb[0].mxu0
      %v565 = vadd.f32 0.0, %v564
      %v566 = vpop.f32.mrb[0].mxu0
      %v567 = vpop.f32.mrb[0].mxu0
      %568 = vdwg.mxu0
      %569 = vmatprep.subr.bf16.mxu0 %v465
      %570 = vmatpush1.bf16.msra.mxu0 %v464
      %571 = vmatprep.subr.bf16.mxu0 %v467
      %572 = vmatpush1.bf16.msra.mxu0 %v466
      %573 = vmatprep.subr.bf16.mxu0 %v469
      %574 = vmatpush1.bf16.msra.mxu0 %v468
      %575 = vmatprep.subr.bf16.mxu0 %v471
      %576 = vmatpush1.bf16.msra.mxu0 %v470
      %577 = vmatprep.subr.bf16.mxu0 %v473
      %578 = vmatpush1.bf16.msra.mxu0 %v472
      %579 = vmatprep.subr.bf16.mxu0 %v475
      %580 = vmatpush1.bf16.msra.mxu0 %v474
      %581 = vmatprep.subr.bf16.mxu0 %v477
      %582 = vmatpush1.bf16.msra.mxu0 %v476
      %583 = vmatprep.subr.bf16.mxu0 %v479
      %584 = vmatpush1.bf16.msra.mxu0 %v478
      %585 = vmatprep.subr.bf16.mxu0 0
      %586 = vmatpush1.bf16.msra.mxu0 0
      %587 = vmatprep.subr.bf16.mxu0 0
      %588 = vmatpush1.bf16.msra.mxu0 0
      %589 = vmatprep.subr.bf16.mxu0 0
      %590 = vmatpush1.bf16.msra.mxu0 0
      %591 = vmatprep.subr.bf16.mxu0 0
      %592 = vmatpush1.bf16.msra.mxu0 0
      %593 = vmatprep.subr.bf16.mxu0 0
      %594 = vmatpush1.bf16.msra.mxu0 0
      %595 = vmatprep.subr.bf16.mxu0 0
      %596 = vmatpush1.bf16.msra.mxu0 0
      %597 = vmatprep.subr.bf16.mxu0 0
      %598 = vmatpush1.bf16.msra.mxu0 0
      %599 = vmatprep.subr.bf16.mxu0 0
      %600 = vmatpush1.bf16.msra.mxu0 0
      %601 = vmatprep.mubr.bf16.mxu0 0
      %602 = vmatmul.mubr.bf16.gmra.mrb[0].mxu0 %v238
      %v603 = vpop.f32.mrb[0].mxu0
      %v604 = vadd.f32 %v563, %v603
      %v605 = vpop.f32.mrb[0].mxu0
      %v606 = vadd.f32 %v565, %v605
      %v607 = vpop.f32.mrb[0].mxu0
      %v608 = vpop.f32.mrb[0].mxu0
      %609 = vdwg.mxu0
      %v610 = vrot.slane %v604, 4
      %v611 = vadd.f32 %v604, %v610
      %v612 = vrot.slane %v611, 2
      %v613 = vadd.f32 %v611, %v612
      %v614 = vrot.slane %v613, 1
      %v615 = vadd.f32 %v613, %v614
      %vm616 = vcmask 31744
      %v617 = vsel %vm616, %v606, 0.0
      %v618 = vrot.slane %v617, 4
      %v619 = vadd.f32 %v617, %v618
      %v620 = vrot.slane %v619, 2
      %v621 = vadd.f32 %v619, %v620
      %v622 = vrot.slane %v621, 1
      %v623 = vadd.f32 %v621, %v622
      %v624 = vmul.f32 %v604, %v604
      %v625 = vmul.f32 %v606, %v606
      %v626 = vrot.slane %v624, 4
      %v627 = vadd.f32 %v624, %v626
      %v628 = vrot.slane %v627, 2
      %v629 = vadd.f32 %v627, %v628
      %v630 = vrot.slane %v629, 1
      %v631 = vadd.f32 %v629, %v630
      %v632 = vsel %vm616, %v625, 0.0
      %v633 = vrot.slane %v632, 4
      %v634 = vadd.f32 %v632, %v633
      %v635 = vrot.slane %v634, 2
      %v636 = vadd.f32 %v634, %v635
      %v637 = vrot.slane %v636, 1
      %v638 = vadd.f32 %v636, %v637
      %v639 = vsel %vm223, %v615, %v631
      %v640 = vsel %vm223, %v623, %v638
      %v643 = vcombine.low %v639, %v640
      %v645 = vunpack.c.l.s4 1983009808
      %v646 = vunpack.c.0.s8 %v645
      %v647 = vlaneseq
      %v648 = vshrl.u32 %v647, 7
      %v649 = vsub.s32 %v646, %v648
      %v650 = vrot.slane %v643, %v649
      %vm652 = vcmask 1041408
      %vm653 = vcmask 27650
      %vm654 = vmor %vm653, %vm652
      %655 = vst.msk [vmem:[%s205] sm:$0xf] %vm654, %v650
      %656 = vst [vmem:[%s200 - $0x1] sm:$0x7e] %v604
      %p657 = scmp.lt.s32.totalorder %s16, 1
      %s658 = scalar_select %p657, %s16, 1
      %s659 = smul.addr %s658, 8
      %s660 = scalar_lea.vmem %s3, %s659
      %p661 = scmp.lt.s32.totalorder %s16, 1
      %s662 = scalar_select %p661, %s16, 1
      %s663 = smul.addr %s662, 2
      %s664 = smul.addr %s663, 2
      %s665 = scalar_lea.vmem %s4, %s664
      // Predicated region
      $region33: #{decoder_forward_pallas.7} parent=31 // pred_check
        %p666 = pneg %p102
      $region34: #{decoder_forward_pallas.7} parent=31 // pred_check_branch
        %668 = sbr.rel (%p666) target = $region36
      $region35: #{decoder_forward_pallas.7} parent=31 // pred_region
        _
      $region36: #{decoder_forward_pallas.7} parent=31 // pred_fallthru
        _
      // Predicated region
      $region37: #{decoder_forward_pallas.7} parent=31 // pred_check
        %p669 = pneg %p128
      $region38: #{decoder_forward_pallas.7} parent=31 // pred_check_branch
        %671 = sbr.rel (%p669) target = $region40
      $region39: #{decoder_forward_pallas.7} parent=31 // pred_region
        _
      $region40: #{decoder_forward_pallas.7} parent=31 // pred_fallthru
        _
    $region32: #{decoder_forward_pallas.7} parent=5 // pred_fallthru
      _
    %p672 = scmp.le.s32.totalorder 2, %s11
    // Predicated region
    $region41: #{decoder_forward_pallas.7} parent=5 // pred_check
      %p673 = pneg %p672
    $region42: #{decoder_forward_pallas.7} parent=5 // pred_check_branch
      %675 = sbr.rel (%p673) target = $region44
    $region43: #{decoder_forward_pallas.7} parent=5 // pred_region
      %s676 = ssub.s32 %s11, 2
      // Predicated region
      $region45: #{decoder_forward_pallas.7} parent=43 // pred_check
        %p677 = pneg %p108
      $region46: #{decoder_forward_pallas.7} parent=43 // pred_check_branch
        %679 = sbr.rel (%p677) target = $region48
      $region47: #{decoder_forward_pallas.7} parent=43 // pred_region
        %p680 = scmp.lt.s32.totalorder %s17, 1
        %s681 = scalar_select %p680, %s17, 1
        %s682 = smul.addr %s681, 8
        %s683 = scalar_lea.vmem %s3, %s682
      $region48: #{decoder_forward_pallas.7} parent=43 // pred_fallthru
        _
      // Predicated region
      $region49: #{decoder_forward_pallas.7} parent=43 // pred_check
        %p684 = pneg %p134
      $region50: #{decoder_forward_pallas.7} parent=43 // pred_check_branch
        %686 = sbr.rel (%p684) target = $region52
      $region51: #{decoder_forward_pallas.7} parent=43 // pred_region
        %p687 = scmp.lt.s32.totalorder %s17, 1
        %s688 = scalar_select %p687, %s17, 1
        %s689 = smul.addr %s688, 2
        %s690 = smul.addr %s689, 2
        %s691 = scalar_lea.vmem %s4, %s690
      $region52: #{decoder_forward_pallas.7} parent=43 // pred_fallthru
        _
    $region44: #{decoder_forward_pallas.7} parent=5 // pred_fallthru
      _
  $region6: #{decoder_forward_pallas.7} parent=0 // loop_footer
    %s15 = sadd.s32 1, %s11
  $region7: #{decoder_forward_pallas.7} parent=0 // loop_footer_branch
    %10 = sbr.rel target = $region3
  $region8: #{decoder_forward_pallas.7} parent=0 // loop_exit
    _

// kernel: decoder_forward_pallas.9
$region0: #{decoder_forward_pallas.9}
  #allocation0 [shape = 'u32[]', space=smem, size = 0x4, offset = 0x4, fixed_abs, tag = 'smem constant byte address 0x4 - core index']
  #allocation1 [shape = 'u32[144,128]{1,0:T(1,128)}', space=vmem, size = 0x12000, scoped, tag = 'internal scratch']
  %s0 = inlined_call_operand.vmem [shape: f32[2,6,128], index: 0, kind: input, shape index: {}]
  %s1 = inlined_call_operand.vmem [shape: f32[2,128], index: 1, kind: input, shape index: {}]
  %s2 = inlined_call_operand.vmem [shape: bf16[128,64], index: 2, kind: input, shape index: {}]
  %s3 = inlined_call_operand.vmem [shape: f32[1,64], index: 3, kind: input, shape index: {}]
  %s4 = inlined_call_operand.vmem [shape: f32[2,6,64], index: 4, kind: output, shape index: {}]
  %s5 = sld [smem:[#allocation0]]
  $region49: #{decoder_forward_pallas.9} parent=0
    _
  %s7 = ssub.s32 1, %s5
  %s8 = scalar_select 0, %s7, %s5
  loop: start=0, step=1, limit=4
  $region2: #{decoder_forward_pallas.9} parent=0 // loop_pre_header
    _
  $region3: #{decoder_forward_pallas.9} parent=0 // loop_header
    %s10 = sphi 0, %s14
    %p11 = scmp.ge.s32.totalorder %s10, 4
    %s20 = sphi 0, %s22
    %s23 = sphi 0, %s20
    %s24 = sphi 0, %s23
    %s40 = sphi 0, %s24
    %s44 = sphi 0, %s44
    %s46 = sphi 0, %s44
    %s47 = sphi 0, %s46
    %s61 = sphi 0, %s47
    %s65 = sphi 0, %s65
    %s67 = sphi 0, %s65
    %s68 = sphi 0, %s67
    %s82 = sphi 0, %s68
    %s86 = sphi 0, %s86
    %s88 = sphi 0, %s86
    %s89 = sphi 0, %s88
    %s103 = sphi 0, %s89
    %s109 = sphi 0, %s111
    %s112 = sphi 0, %s109
    %s113 = sphi 0, %s112
    %s129 = sphi 0, %s113
  $region4: #{decoder_forward_pallas.9} parent=0 // loop_header_branch
    %13 = sbr.rel (%p11) target = $region8
  $region5: #{decoder_forward_pallas.9} parent=0 // loop_body
    %s15 = ssub.s32 %s10, 1
    %s16 = ssub.s32 %s10, 2
    %s17 = sadd.s32 %s10, 1
    %s18 = ssub.s32 %s10, %s17
    %p19 = scmp.eq.s32.totalorder %s18, 0
    %s21 = sadd.s32 %s20, 1
    %s22 = scalar_select %p19, %s20, %s21
    %p25 = pneg %p19
    %p26 = scmp.eq.s32.totalorder %s10, 1
    %p27 = por %p25, %p26
    %p28 = scmp.ne.s32.totalorder %s20, %s23
    %p29 = scmp.eq.s32.totalorder %s10, 0
    %p30 = por %p28, %p29
    %p31 = scmp.ne.s32.totalorder %s20, %s23
    %p32 = scmp.eq.s32.totalorder %s15, 1
    %p33 = por %p31, %p32
    %p34 = scmp.ne.s32.totalorder %s23, %s24
    %p35 = scmp.eq.s32.totalorder %s15, 0
    %p36 = por %p34, %p35
    %p37 = scmp.ne.s32.totalorder %s23, %s24
    %p38 = scmp.eq.s32.totalorder %s16, 1
    %p39 = por %p37, %p38
    %p41 = scmp.ne.s32.totalorder %s24, %s40
    %p42 = scmp.eq.s32.totalorder %s16, 0
    %p43 = por %p41, %p42
    %s45 = sadd.s32 %s44, 1
    %p48 = scmp.eq.s32.totalorder %s10, 1
    %p49 = scmp.ne.s32.totalorder %s44, %s46
    %p50 = scmp.eq.s32.totalorder %s10, 0
    %p51 = por %p49, %p50
    %p52 = scmp.ne.s32.totalorder %s44, %s46
    %p53 = scmp.eq.s32.totalorder %s15, 1
    %p54 = por %p52, %p53
    %p55 = scmp.ne.s32.totalorder %s46, %s47
    %p56 = scmp.eq.s32.totalorder %s15, 0
    %p57 = por %p55, %p56
    %p58 = scmp.ne.s32.totalorder %s46, %s47
    %p59 = scmp.eq.s32.totalorder %s16, 1
    %p60 = por %p58, %p59
    %p62 = scmp.ne.s32.totalorder %s47, %s61
    %p63 = scmp.eq.s32.totalorder %s16, 0
    %p64 = por %p62, %p63
    %s66 = sadd.s32 %s65, 1
    %p69 = scmp.eq.s32.totalorder %s10, 1
    %p70 = scmp.ne.s32.totalorder %s65, %s67
    %p71 = scmp.eq.s32.totalorder %s10, 0
    %p72 = por %p70, %p71
    %p73 = scmp.ne.s32.totalorder %s65, %s67
    %p74 = scmp.eq.s32.totalorder %s15, 1
    %p75 = por %p73, %p74
    %p76 = scmp.ne.s32.totalorder %s67, %s68
    %p77 = scmp.eq.s32.totalorder %s15, 0
    %p78 = por %p76, %p77
    %p79 = scmp.ne.s32.totalorder %s67, %s68
    %p80 = scmp.eq.s32.totalorder %s16, 1
    %p81 = por %p79, %p80
    %p83 = scmp.ne.s32.totalorder %s68, %s82
    %p84 = scmp.eq.s32.totalorder %s16, 0
    %p85 = por %p83, %p84
    %s87 = sadd.s32 %s86, 1
    %p90 = scmp.eq.s32.totalorder %s10, 1
    %p91 = scmp.ne.s32.totalorder %s86, %s88
    %p92 = scmp.eq.s32.totalorder %s10, 0
    %p93 = por %p91, %p92
    %p94 = scmp.ne.s32.totalorder %s86, %s88
    %p95 = scmp.eq.s32.totalorder %s15, 1
    %p96 = por %p94, %p95
    %p97 = scmp.ne.s32.totalorder %s88, %s89
    %p98 = scmp.eq.s32.totalorder %s15, 0
    %p99 = por %p97, %p98
    %p100 = scmp.ne.s32.totalorder %s88, %s89
    %p101 = scmp.eq.s32.totalorder %s16, 1
    %p102 = por %p100, %p101
    %p104 = scmp.ne.s32.totalorder %s89, %s103
    %p105 = scmp.eq.s32.totalorder %s16, 0
    %p106 = por %p104, %p105
    %s107 = ssub.s32 %s10, %s17
    %p108 = scmp.eq.s32.totalorder %s107, 0
    %s110 = sadd.s32 %s109, 1
    %s111 = scalar_select %p108, %s109, %s110
    %p114 = pneg %p108
    %p115 = scmp.eq.s32.totalorder %s10, 1
    %p116 = por %p114, %p115
    %p117 = scmp.ne.s32.totalorder %s109, %s112
    %p118 = scmp.eq.s32.totalorder %s10, 0
    %p119 = por %p117, %p118
    %p120 = scmp.ne.s32.totalorder %s109, %s112
    %p121 = scmp.eq.s32.totalorder %s15, 1
    %p122 = por %p120, %p121
    %p123 = scmp.ne.s32.totalorder %s112, %s113
    %p124 = scmp.eq.s32.totalorder %s15, 0
    %p125 = por %p123, %p124
    %p126 = scmp.ne.s32.totalorder %s112, %s113
    %p127 = scmp.eq.s32.totalorder %s16, 1
    %p128 = por %p126, %p127
    %p130 = scmp.ne.s32.totalorder %s113, %s129
    %p131 = scmp.eq.s32.totalorder %s16, 0
    %p132 = por %p130, %p131
    %p133 = scmp.le.s32.totalorder 1, %s10
    %p134 = scmp.lt.s32.totalorder %s10, 3
    %p135 = pnand %p133, %p134
    %p136 = pneg %p135
    // Predicated region
    $region9: #{decoder_forward_pallas.9} parent=5 // pred_check
      _
    $region10: #{decoder_forward_pallas.9} parent=5 // pred_check_branch
      %138 = sbr.rel (%p135) target = $region12
    $region11: #{decoder_forward_pallas.9} parent=5 // pred_region
      %s139 = ssub.s32 %s10, 1
      // Predicated region
      $region13: #{decoder_forward_pallas.9} parent=11 // pred_check
        %p140 = pneg %p57
      $region14: #{decoder_forward_pallas.9} parent=11 // pred_check_branch
        %142 = sbr.rel (%p140) target = $region16
      $region15: #{decoder_forward_pallas.9} parent=11 // pred_region
        _
      $region16: #{decoder_forward_pallas.9} parent=11 // pred_fallthru
        _
      // Predicated region
      $region17: #{decoder_forward_pallas.9} parent=11 // pred_check
        %p143 = pneg %p78
      $region18: #{decoder_forward_pallas.9} parent=11 // pred_check_branch
        %145 = sbr.rel (%p143) target = $region20
      $region19: #{decoder_forward_pallas.9} parent=11 // pred_region
        _
      $region20: #{decoder_forward_pallas.9} parent=11 // pred_fallthru
        _
      // Predicated region
      $region21: #{decoder_forward_pallas.9} parent=11 // pred_check
        %p146 = pneg %p99
      $region22: #{decoder_forward_pallas.9} parent=11 // pred_check_branch
        %148 = sbr.rel (%p146) target = $region24
      $region23: #{decoder_forward_pallas.9} parent=11 // pred_region
        _
      $region24: #{decoder_forward_pallas.9} parent=11 // pred_fallthru
        _
    $region12: #{decoder_forward_pallas.9} parent=5 // pred_fallthru
      _
    %p149 = scmp.lt.s32.totalorder %s10, 2
    // Predicated region
    $region25: #{decoder_forward_pallas.9} parent=5 // pred_check
      %p150 = pneg %p149
    $region26: #{decoder_forward_pallas.9} parent=5 // pred_check_branch
      %152 = sbr.rel (%p150) target = $region28
    $region27: #{decoder_forward_pallas.9} parent=5 // pred_region
      // Predicated region
      $region29: #{decoder_forward_pallas.9} parent=27 // pred_check
        %p153 = pneg %p30
      $region30: #{decoder_forward_pallas.9} parent=27 // pred_check_branch
        %155 = sbr.rel (%p153) target = $region32
      $region31: #{decoder_forward_pallas.9} parent=27 // pred_region
        %p156 = scmp.lt.s32.totalorder %s10, 1
        %s157 = scalar_select %p156, %s10, 1
        %s158 = smul.addr %s157, 8
        %s159 = scalar_lea.vmem %s0, %s158
      $region32: #{decoder_forward_pallas.9} parent=27 // pred_fallthru
        _
    $region28: #{decoder_forward_pallas.9} parent=5 // pred_fallthru
      _
    %p160 = scmp.le.s32.totalorder 1, %s10
    %p161 = scmp.lt.s32.totalorder %s10, 3
    %p162 = pnand %p160, %p161
    %p163 = pneg %p162
    // Predicated region
    $region33: #{decoder_forward_pallas.9} parent=5 // pred_check
      _
    $region34: #{decoder_forward_pallas.9} parent=5 // pred_check_branch
      %165 = sbr.rel (%p162) target = $region36
    $region35: #{decoder_forward_pallas.9} parent=5 // pred_region
      %s166 = ssub.s32 %s10, 1
      %p167 = scmp.lt.s32.totalorder %s15, 1
      %s168 = scalar_select %p167, %s15, 1
      %s169 = smul.addr %s168, 8
      %s170 = scalar_lea.vmem %s0, %s169
      %p171 = pneg %p36
      %p172 = pneg %p33
      %p173 = pneg %p57
      %p174 = pneg %p54
      %p175 = pneg %p78
      %p176 = pneg %p75
      %p177 = pneg %p99
      %p178 = pneg %p96
      %p179 = pneg %p125
      %p180 = pneg %p122
      %p181 = scmp.lt.s32.totalorder %s15, 1
      %s182 = scalar_select %p181, %s15, 1
      %s183 = smul.addr %s182, 8
      %s184 = scalar_lea.vmem %s4, %s183
      %p185 = scmp.lt.s32.totalorder %s15, 1
      %s186 = scalar_select %p185, %s15, 1
      %s187 = smul.addr %s186, 8
      %s188 = scalar_lea.vmem %s0, %s187
      %p189 = scmp.lt.s32.totalorder %s15, 1
      %s190 = scalar_select %p189, %s15, 1
      %s191 = smul.addr %s190, 8
      %s192 = scalar_lea.vmem %s4, %s191
      %v194 = vld [vmem:[%s1] sm:$0x3]
      %v195 = vld [vmem:[%s188] sm:$0x3f]
      %v196 = vlaneseq
      %v197 = vshrl.u32 %v196, 7
      %v198 = vsub.s32 0, %v197
      %v199 = vrot.slane %v194, %v198
      %v200 = vmul.f32 %v195, %v199
      %v201 = vlaneseq
      %v202 = vshrl.u32 %v201, 7
      %v203 = vsub.s32 1, %v202
      %v204 = vrot.slane %v194, %v203
      %v205 = vadd.f32 %v200, %v204
      %v206 = vmax.f32 %v205, 0.0
      %v207 = vpack.c.bf16 %v206, %v206
      %v208 = vld [vmem:[%s2] sm:$0xf]
      %v209 = vld [vmem:[%s2 + $0x4] sm:$0xf]
      %v210 = vld [vmem:[%s2 + $0x8] sm:$0xf]
      %v211 = vld [vmem:[%s2 + $0xc] sm:$0xf]
      %v212 = vld [vmem:[%s2 + $0x10] sm:$0xf]
      %v213 = vld [vmem:[%s2 + $0x14] sm:$0xf]
      %v214 = vld [vmem:[%s2 + $0x18] sm:$0xf]
      %v215 = vld [vmem:[%s2 + $0x1c] sm:$0xf]
      %v216 = vld [vmem:[%s2 + $0x20] sm:$0xf]
      %v217 = vld [vmem:[%s2 + $0x24] sm:$0xf]
      %v218 = vld [vmem:[%s2 + $0x28] sm:$0xf]
      %v219 = vld [vmem:[%s2 + $0x2c] sm:$0xf]
      %v220 = vld [vmem:[%s2 + $0x30] sm:$0xf]
      %v221 = vld [vmem:[%s2 + $0x34] sm:$0xf]
      %v222 = vld [vmem:[%s2 + $0x38] sm:$0xf]
      %v223 = vld [vmem:[%s2 + $0x3c] sm:$0xf]
      %v224 = vld [vmem:[%s3] sm:$0x1]
      %v226 = vlaneseq
      %v227 = vshrl.u32 %v226, 7
      %v228 = vsub.s32 0, %v227
      %v229 = vrot.slane %v224, %v228
      %v247 = vunpack.c.l.b16 %v208
      %v248 = vunpack.c.l.b16 %v209
      %v249 = vunpack.c.l.b16 %v210
      %v250 = vunpack.c.l.b16 %v211
      %v251 = vunpack.c.l.b16 %v212
      %v252 = vunpack.c.l.b16 %v213
      %v253 = vunpack.c.l.b16 %v214
      %v254 = vunpack.c.l.b16 %v215
      %v255 = vunpack.c.l.b16 %v216
      %v256 = vunpack.c.l.b16 %v217
      %v257 = vunpack.c.l.b16 %v218
      %v258 = vunpack.c.l.b16 %v219
      %v259 = vunpack.c.l.b16 %v220
      %v260 = vunpack.c.l.b16 %v221
      %v261 = vunpack.c.l.b16 %v222
      %v262 = vunpack.c.l.b16 %v223
      %v263 = vpack.c.b16 %v248, %v247
      %v264 = vpack.c.b16 %v250, %v249
      %v265 = vpack.c.b16 %v252, %v251
      %v266 = vpack.c.b16 %v254, %v253
      %v267 = vpack.c.b16 %v256, %v255
      %v268 = vpack.c.b16 %v258, %v257
      %v269 = vpack.c.b16 %v260, %v259
      %v270 = vpack.c.b16 %v262, %v261
      %279 = vmatprep.subr.bf16.mxu0 0
      %280 = vmatpush1.bf16.msra.mxu0 %v263
      %281 = vmatprep.subr.bf16.mxu0 0
      %282 = vmatpush1.bf16.msra.mxu0 %v264
      %283 = vmatprep.subr.bf16.mxu0 0
      %284 = vmatpush1.bf16.msra.mxu0 %v265
      %285 = vmatprep.subr.bf16.mxu0 0
      %286 = vmatpush1.bf16.msra.mxu0 %v266
      %287 = vmatprep.subr.bf16.mxu0 0
      %288 = vmatpush1.bf16.msra.mxu0 %v267
      %289 = vmatprep.subr.bf16.mxu0 0
      %290 = vmatpush1.bf16.msra.mxu0 %v268
      %291 = vmatprep.subr.bf16.mxu0 0
      %292 = vmatpush1.bf16.msra.mxu0 %v269
      %293 = vmatprep.subr.bf16.mxu0 0
      %294 = vmatpush1.bf16.msra.mxu0 %v270
      %295 = vmatprep.subr.bf16.mxu0 0
      %296 = vmatpush1.bf16.msra.mxu0 0
      %297 = vmatprep.subr.bf16.mxu0 0
      %298 = vmatpush1.bf16.msra.mxu0 0
      %299 = vmatprep.subr.bf16.mxu0 0
      %300 = vmatpush1.bf16.msra.mxu0 0
      %301 = vmatprep.subr.bf16.mxu0 0
      %302 = vmatpush1.bf16.msra.mxu0 0
      %303 = vmatprep.subr.bf16.mxu0 0
      %304 = vmatpush1.bf16.msra.mxu0 0
      %305 = vmatprep.subr.bf16.mxu0 0
      %306 = vmatpush1.bf16.msra.mxu0 0
      %307 = vmatprep.subr.bf16.mxu0 0
      %308 = vmatpush1.bf16.msra.mxu0 0
      %309 = vmatprep.subr.bf16.mxu0 0
      %310 = vmatpush1.bf16.msra.mxu0 0
      %311 = vmatprep.mubr.bf16.mxu0 0
      %312 = vmatmul.mubr.bf16.gmra.mrb[0].mxu0 %v207
      %v313 = vpop.f32.mrb[0].mxu0
      %v314 = vadd.f32 %v229, %v313
      %v315 = vpop.f32.mrb[0].mxu0
      %v316 = vpop.f32.mrb[0].mxu0
      %v317 = vpop.f32.mrb[0].mxu0
      %318 = vdwg.mxu0
      %vm319 = vcmask 521216
      %320 = vst.msk [vmem:[%s192] sm:$0x3f] %vm319, %v314
      %p321 = scmp.lt.s32.totalorder %s15, 1
      %s322 = scalar_select %p321, %s15, 1
      %s323 = smul.addr %s322, 8
      %s324 = scalar_lea.vmem %s4, %s323
      // Predicated region
      $region37: #{decoder_forward_pallas.9} parent=35 // pred_check
        %p325 = pneg %p122
      $region38: #{decoder_forward_pallas.9} parent=35 // pred_check_branch
        %327 = sbr.rel (%p325) target = $region40
      $region39: #{decoder_forward_pallas.9} parent=35 // pred_region
        _
      $region40: #{decoder_forward_pallas.9} parent=35 // pred_fallthru
        _
    $region36: #{decoder_forward_pallas.9} parent=5 // pred_fallthru
      _
    %p328 = scmp.le.s32.totalorder 2, %s10
    // Predicated region
    $region41: #{decoder_forward_pallas.9} parent=5 // pred_check
      %p329 = pneg %p328
    $region42: #{decoder_forward_pallas.9} parent=5 // pred_check_branch
      %331 = sbr.rel (%p329) target = $region44
    $region43: #{decoder_forward_pallas.9} parent=5 // pred_region
      %s332 = ssub.s32 %s10, 2
      // Predicated region
      $region45: #{decoder_forward_pallas.9} parent=43 // pred_check
        %p333 = pneg %p128
      $region46: #{decoder_forward_pallas.9} parent=43 // pred_check_branch
        %335 = sbr.rel (%p333) target = $region48
      $region47: #{decoder_forward_pallas.9} parent=43 // pred_region
        %p336 = scmp.lt.s32.totalorder %s16, 1
        %s337 = scalar_select %p336, %s16, 1
        %s338 = smul.addr %s337, 8
        %s339 = scalar_lea.vmem %s4, %s338
      $region48: #{decoder_forward_pallas.9} parent=43 // pred_fallthru
        _
    $region44: #{decoder_forward_pallas.9} parent=5 // pred_fallthru
      _
  $region6: #{decoder_forward_pallas.9} parent=0 // loop_footer
    %s14 = sadd.s32 1, %s10
  $region7: #{decoder_forward_pallas.9} parent=0 // loop_footer_branch
    %9 = sbr.rel target = $region3
  $region8: #{decoder_forward_pallas.9} parent=0 // loop_exit
    _

</llo_original>
